<compile_context>
chip_gen: v6e
topology: v6e:2x2x1
jax: 0.10.0
libtpu: 0.0.40
codegen_flags: <defaults>
</compile_context>

<pallas_src>
import jax
import jax.numpy as jnp
from jax.experimental import pallas as pl
from jax.experimental.pallas import tpu as pltpu


def _round_up(x, m):
    return ((x + m - 1) // m) * m


def _make_rnn_kernel(num_layers, ts, total_t):
    """ts timesteps per grid step; total_t is the (unpadded) sequence length."""
    needs_mask = (total_t % ts) != 0

    def kernel(*refs):
        # refs = [x_ref, (wx, wh, wy, b_h, b_y) * L, out_ref, hid_ref, hpre_ref]
        x_ref = refs[0]
        w_refs = refs[1:1 + 5 * num_layers]
        out_ref = refs[1 + 5 * num_layers]
        hid_ref = refs[2 + 5 * num_layers]
        hpre_ref = refs[3 + 5 * num_layers]      # VMEM scratch [ts, bb, Hp] f32

        t_chunk = pl.program_id(1)
        ts_k, bb, _ = x_ref.shape                # static block shape
        hp = hid_ref.shape[-1]

        # Resident-accumulator init: hidden defaults to zeros (RNN.init_hidden).
        @pl.when(t_chunk == 0)
        def _():
            hid_ref[...] = jnp.zeros(hid_ref.shape, hid_ref.dtype)

        inp = x_ref[...]                         # [ts, bb, in_dim]
        for l in range(num_layers):
            wx_ref, wh_ref, wy_ref, bh_ref, by_ref = w_refs[5 * l:5 * l + 5]
            in_dim = inp.shape[-1]

            # (1) Batched input projection over the whole time chunk (tall M).
            #     bias (bx + bh) folded in once per layer per chunk.
            pre = jnp.dot(
                inp.reshape(ts_k * bb, in_dim).astype(wx_ref.dtype),
                wx_ref[...],
                preferred_element_type=jnp.float32) + bh_ref[...]
            hpre_ref[...] = pre.reshape(ts_k, bb, hp)

            # (2) Sequential recurrence: only h_prev @ Wh stays in the loop.
            def step(s, h):
                h_pre = hpre_ref[s] + jnp.dot(
                    h.astype(wh_ref.dtype), wh_ref[...],
                    preferred_element_type=jnp.float32)
                hpre_ref[s] = h_pre
                h_new = jnp.tanh(h_pre)
                if needs_mask:
                    valid = (t_chunk * ts_k + s) < total_t
                    h_new = jnp.where(valid, h_new, h)
                return h_new

            hid_ref[l] = jax.lax.fori_loop(0, ts_k, step, hid_ref[l],
                                           unroll=True)

            # (3) Batched output projection + tanh over the whole chunk.
            y = jnp.tanh(
                jnp.dot(hpre_ref[...].reshape(ts_k * bb, hp).astype(wy_ref.dtype),
                        wy_ref[...],
                        preferred_element_type=jnp.float32) + by_ref[...])
            inp = y.reshape(ts_k, bb, hp)        # feeds the next layer

        out_ref[...] = inp.astype(out_ref.dtype)

    return kernel


def _prep_params(params, input_size, hp, ip, weight_dtype):
    """Pad per-layer weights -> flat list [Wx, Wh, Wy, b_h, b_y] * L."""
    H = params[0][0].shape[1]
    flat = []
    in_size, in_pad = input_size, ip
    for (wx, wh, wy, bx, bh, by) in params:
        wx_p = jnp.zeros((in_pad, hp), jnp.float32).at[:in_size, :H].set(wx)
        wh_p = jnp.zeros((hp, hp), jnp.float32).at[:H, :H].set(wh)
        wy_p = jnp.zeros((hp, hp), jnp.float32).at[:H, :H].set(wy)
        b_h = jnp.zeros((1, hp), jnp.float32).at[0, :H].set(bx + bh)
        b_y = jnp.zeros((1, hp), jnp.float32).at[0, :H].set(by)
        flat += [wx_p.astype(weight_dtype), wh_p.astype(weight_dtype),
                 wy_p.astype(weight_dtype), b_h, b_y]
        in_size, in_pad = H, hp
    return flat


def rnn_forward(x, params, *, t_chunk=16, b_chunk=128,
                weight_dtype=jnp.float32):
    """x: [T, B, I] float32; params: list of (wx, wh, wy, bx, bh, by) per layer.

    weight_dtype=jnp.bfloat16 is recommended on v6e/v7x (f32 accumulation is
    kept via preferred_element_type; biases stay f32).
    """
    T, B, I = x.shape
    L = len(params)
    H = params[0][0].shape[1]

    LANE, SUBLANE = 128, 8
    Hp = _round_up(H, LANE)                     # lane-dense / MXU N dimension
    Ip = _round_up(I, LANE)
    ts = max(1, min(t_chunk, T))                # timesteps per grid step
    Tp = _round_up(T, ts)
    B8 = _round_up(B, SUBLANE)
    bb = min(B8, _round_up(min(b_chunk, B8), SUBLANE))   # batch tile
    Bp = _round_up(B8, bb)

    x_p = jnp.zeros((Tp, Bp, Ip), jnp.float32).at[:T, :B, :I].set(
        x.astype(jnp.float32))
    flat = _prep_params(params, I, Hp, Ip, weight_dtype)

    grid = (Bp // bb, Tp // ts)                 # (batch: parallel, time: arbitrary)
    kernel = _make_rnn_kernel(L, ts, T)

    x_spec = pl.BlockSpec((ts, bb, Ip), lambda b, t: (t, b, 0))
    # Constant block index -> weights are DMA'd once per batch chunk.
    w_specs = [pl.BlockSpec(w.shape, lambda b, t: (0, 0)) for w in flat]
    out_specs = [
        pl.BlockSpec((ts, bb, Hp), lambda b, t: (t, b, 0)),
        # hidden stays resident in VMEM across the whole time axis (accumulator)
        pl.BlockSpec((L, bb, Hp), lambda b, t: (0, b, 0)),
    ]
    out_shape = (
        jax.ShapeDtypeStruct((Tp, Bp, Hp), jnp.float32),
        jax.ShapeDtypeStruct((L, Bp, Hp), jnp.float32),
    )

    # Advisory cost estimate for XLA's scheduler.
    flops, trans, in_size = 0, 0, I
    for _ in range(L):
        flops += 2 * T * B * H * (in_size + 2 * H)
        trans += 2 * T * B * H
        in_size = H
    weight_bytes = sum(int(w.size) * jnp.dtype(w.dtype).itemsize for w in flat)
    cost = pl.CostEstimate(
        flops=int(flops), transcendentals=int(trans),
        bytes_accessed=int(weight_bytes + 4 * (T * B * I + T * B * H + L * B * H)))

    # VMEM budget: double-buffered weights + double-buffered x/out chunks +
    # resident hidden block + h_pre scratch. Raise the scoped limit whenever
    # the estimate exceeds v5e's 16 MiB default; cap at 56 MiB so the same
    # config keeps headroom on v7x (64 MiB physical VMEM per TensorCore).
    act_bytes = 4 * (2 * ts * bb * Ip + 2 * ts * bb * Hp + 2 * L * bb * Hp
                     + ts * bb * Hp)
    vmem_needed = int(1.3 * (2 * weight_bytes + act_bytes))
    vmem_limit = None
    if vmem_needed > 16 * 1024 * 1024:
        vmem_limit = min(vmem_needed, 56 * 1024 * 1024)

    out_p, hid_p = pl.pallas_call(
        kernel,
        out_shape=out_shape,
        grid_spec=pltpu.PrefetchScalarGridSpec(
            num_scalar_prefetch=0,
            grid=grid,
            in_specs=[x_spec] + w_specs,
            out_specs=out_specs,
            scratch_shapes=[pltpu.VMEM((ts, bb, Hp), jnp.float32)]),
        compiler_params=pltpu.CompilerParams(
            dimension_semantics=("parallel", "arbitrary"),
            vmem_limit_bytes=vmem_limit),
        cost_estimate=cost,
    )(x_p, *flat)

    return out_p[:T, :B, :H], hid_p[:, :B, :H]


def rnn_reference(x, params):
    """Pure-JAX reference mirroring the PyTorch module."""
    T, B, _ = x.shape
    L = len(params)
    H = params[0][0].shape[1]
    hidden = [jnp.zeros((B, H), jnp.float32) for _ in range(L)]
    outs = []
    for t in range(T):
        output = x[t]
        for i, (wx, wh, wy, bx, bh, by) in enumerate(params):
            h = output @ wx + bx + hidden[i] @ wh + bh
            y = h @ wy + by
            output = jnp.tanh(y)
            hidden[i] = jnp.tanh(h)
        outs.append(output)
    return jnp.stack(outs), jnp.stack(hidden)


def init_params(key, input_size, hidden_size, num_layers):
    params = []
    in_size = input_size
    for _ in range(num_layers):
        keys = jax.random.split(key, 7)
        key = keys[0]
        scale = 0.1
        wx = scale * jax.random.normal(keys[1], (in_size, hidden_size), jnp.float32)
        wh = scale * jax.random.normal(keys[2], (hidden_size, hidden_size), jnp.float32)
        wy = scale * jax.random.normal(keys[3], (hidden_size, hidden_size), jnp.float32)
        bx = scale * jax.random.normal(keys[4], (hidden_size,), jnp.float32)
        bh = scale * jax.random.normal(keys[5], (hidden_size,), jnp.float32)
        by = scale * jax.random.normal(keys[6], (hidden_size,), jnp.float32)
        params.append((wx, wh, wy, bx, bh, by))
        in_size = hidden_size
    return params


if __name__ == "__main__":
    T, B, I, H, L = 8, 4, 16, 32, 2

    key = jax.random.PRNGKey(0)
    kx, kp = jax.random.split(key)
    x = jax.random.normal(kx, (T, B, I), jnp.float32)
    params = init_params(kp, I, H, L)

    out, hidden = rnn_forward(x, params)
    out, hidden = jax.block_until_ready((out, hidden))

    ref_out, ref_hidden = rnn_reference(x, params)
    assert out.shape == (T, B, H) and hidden.shape == (L, B, H)
    assert jnp.allclose(out, ref_out, atol=1e-4, rtol=1e-4)
    assert jnp.allclose(hidden, ref_hidden, atol=1e-4, rtol=1e-4)

    print("KERNEL_OK")
</pallas_src>

<mosaic_0001>
module attributes {stable_mosaic.version = 11 : i64} {
  func.func @kernel(%arg0: i32, %arg1: i32, %arg2: memref<8x8x128xf32, #tpu.memory_space<vmem>>, %arg3: memref<128x128xf32, #tpu.memory_space<vmem>>, %arg4: memref<128x128xf32, #tpu.memory_space<vmem>>, %arg5: memref<128x128xf32, #tpu.memory_space<vmem>>, %arg6: memref<1x128xf32, #tpu.memory_space<vmem>>, %arg7: memref<1x128xf32, #tpu.memory_space<vmem>>, %arg8: memref<128x128xf32, #tpu.memory_space<vmem>>, %arg9: memref<128x128xf32, #tpu.memory_space<vmem>>, %arg10: memref<128x128xf32, #tpu.memory_space<vmem>>, %arg11: memref<1x128xf32, #tpu.memory_space<vmem>>, %arg12: memref<1x128xf32, #tpu.memory_space<vmem>>, %arg13: memref<8x8x128xf32, #tpu.memory_space<vmem>>, %arg14: memref<2x8x128xf32, #tpu.memory_space<vmem>>, %arg15: memref<8x8x128xf32, #tpu.memory_space<vmem>>) attributes {dimension_semantics = [#tpu.dimension_semantics<parallel>, #tpu.dimension_semantics<arbitrary>], iteration_bounds = array<i64: 1, 1>, scalar_prefetch = 0 : i64, scratch_operands = 1 : i64, tpu.core_type = #tpu.core_type<tc>, window_params = [{transform_indices = @transform_0, window_bounds = array<i64: 8, 8, 128>}, {pipeline_mode = #tpu.pipeline_mode<synchronous>, transform_indices = @transform_1, window_bounds = array<i64: 128, 128>}, {pipeline_mode = #tpu.pipeline_mode<synchronous>, transform_indices = @transform_2, window_bounds = array<i64: 128, 128>}, {pipeline_mode = #tpu.pipeline_mode<synchronous>, transform_indices = @transform_3, window_bounds = array<i64: 128, 128>}, {pipeline_mode = #tpu.pipeline_mode<synchronous>, transform_indices = @transform_4, window_bounds = array<i64: 1, 128>}, {pipeline_mode = #tpu.pipeline_mode<synchronous>, transform_indices = @transform_5, window_bounds = array<i64: 1, 128>}, {pipeline_mode = #tpu.pipeline_mode<synchronous>, transform_indices = @transform_6, window_bounds = array<i64: 128, 128>}, {pipeline_mode = #tpu.pipeline_mode<synchronous>, transform_indices = @transform_7, window_bounds = array<i64: 128, 128>}, {pipeline_mode = #tpu.pipeline_mode<synchronous>, transform_indices = @transform_8, window_bounds = array<i64: 128, 128>}, {pipeline_mode = #tpu.pipeline_mode<synchronous>, transform_indices = @transform_9, window_bounds = array<i64: 1, 128>}, {pipeline_mode = #tpu.pipeline_mode<synchronous>, transform_indices = @transform_10, window_bounds = array<i64: 1, 128>}, {transform_indices = @transform_11, window_bounds = array<i64: 8, 8, 128>}, {transform_indices = @transform_12, window_bounds = array<i64: 2, 8, 128>}]} {
    %c0_i32 = arith.constant 0 : i32
    %0 = arith.cmpi eq, %arg1, %c0_i32 : i32
    %1 = arith.extui %0 : i1 to i32
    %c0_i32_0 = arith.constant 0 : i32
    %2 = arith.cmpi ne, %1, %c0_i32_0 : i32
    scf.if %2 {
      %cst_170 = arith.constant 0.000000e+00 : f32
      %225 = vector.broadcast %cst_170 : f32 to vector<2x8x128xf32>
      %c0_171 = arith.constant 0 : index
      %c0_172 = arith.constant 0 : index
      %c0_173 = arith.constant 0 : index
      %226 = vector.load %arg14[%c0_171, %c0_172, %c0_173] : memref<2x8x128xf32, #tpu.memory_space<vmem>>, vector<2x8x128xf32>
      tpu.vector_store %arg14[%c0_171, %c0_172, %c0_173], %225 {strides = array<i32>} : memref<2x8x128xf32, #tpu.memory_space<vmem>>, vector<2x8x128xf32>,
    } else {
    }
    %c0 = arith.constant 0 : index
    %c0_1 = arith.constant 0 : index
    %c0_2 = arith.constant 0 : index
    %3 = vector.load %arg2[%c0, %c0_1, %c0_2] : memref<8x8x128xf32, #tpu.memory_space<vmem>>, vector<8x8x128xf32>
    %4 = vector.shape_cast %3 : vector<8x8x128xf32> to vector<64x128xf32>
    %c0_3 = arith.constant 0 : index
    %c0_4 = arith.constant 0 : index
    %5 = vector.load %arg3[%c0_3, %c0_4] : memref<128x128xf32, #tpu.memory_space<vmem>>, vector<128x128xf32>
    %cst = arith.constant dense<0.000000e+00> : vector<64x128xf32>
    %6 = tpu.matmul %4, %5, %cst {dimension_numbers = #tpu.dot_dimension_numbers<[1], [0], [0], [1], [0, 0, 1, 1], [], []>} : vector<64x128xf32>, vector<128x128xf32>, vector<64x128xf32> -> vector<64x128xf32>
    %c0_5 = arith.constant 0 : index
    %c0_6 = arith.constant 0 : index
    %7 = vector.load %arg6[%c0_5, %c0_6] : memref<1x128xf32, #tpu.memory_space<vmem>>, vector<1x128xf32>
    %8 = vector.broadcast %7 : vector<1x128xf32> to vector<64x128xf32>
    %9 = arith.addf %6, %8 : vector<64x128xf32>
    %10 = vector.shape_cast %9 : vector<64x128xf32> to vector<8x8x128xf32>
    %c0_7 = arith.constant 0 : index
    %c0_8 = arith.constant 0 : index
    %c0_9 = arith.constant 0 : index
    %11 = vector.load %arg15[%c0_7, %c0_8, %c0_9] : memref<8x8x128xf32, #tpu.memory_space<vmem>>, vector<8x8x128xf32>
    tpu.vector_store %arg15[%c0_7, %c0_8, %c0_9], %10 {strides = array<i32>} : memref<8x8x128xf32, #tpu.memory_space<vmem>>, vector<8x8x128xf32>,
    %c0_10 = arith.constant 0 : index
    %c0_11 = arith.constant 0 : index
    %c0_12 = arith.constant 0 : index
    %12 = vector.load %arg14[%c0_10, %c0_11, %c0_12] : memref<2x8x128xf32, #tpu.memory_space<vmem>>, vector<1x8x128xf32>
    %13 = vector.shape_cast %12 : vector<1x8x128xf32> to vector<8x128xf32>
    %c0_i32_13 = arith.constant 0 : i32
    %14 = arith.index_cast %c0_i32_13 : i32 to index
    %c0_14 = arith.constant 0 : index
    %c0_15 = arith.constant 0 : index
    %15 = vector.load %arg15[%14, %c0_14, %c0_15] : memref<8x8x128xf32, #tpu.memory_space<vmem>>, vector<1x8x128xf32>
    %16 = vector.shape_cast %15 : vector<1x8x128xf32> to vector<8x128xf32>
    %c0_16 = arith.constant 0 : index
    %c0_17 = arith.constant 0 : index
    %17 = vector.load %arg4[%c0_16, %c0_17] : memref<128x128xf32, #tpu.memory_space<vmem>>, vector<128x128xf32>
    %cst_18 = arith.constant dense<0.000000e+00> : vector<8x128xf32>
    %18 = tpu.matmul %13, %17, %cst_18 {dimension_numbers = #tpu.dot_dimension_numbers<[1], [0], [0], [1], [0, 0, 1, 1], [], []>} : vector<8x128xf32>, vector<128x128xf32>, vector<8x128xf32> -> vector<8x128xf32>
    %19 = arith.addf %16, %18 : vector<8x128xf32>
    %20 = arith.index_cast %c0_i32_13 : i32 to index
    %c0_19 = arith.constant 0 : index
    %c0_20 = arith.constant 0 : index
    %21 = vector.load %arg15[%20, %c0_19, %c0_20] : memref<8x8x128xf32, #tpu.memory_space<vmem>>, vector<1x8x128xf32>
    %22 = vector.shape_cast %21 : vector<1x8x128xf32> to vector<8x128xf32>
    %23 = vector.shape_cast %19 : vector<8x128xf32> to vector<1x8x128xf32>
    tpu.vector_store %arg15[%20, %c0_19, %c0_20], %23 {strides = array<i32>} : memref<8x8x128xf32, #tpu.memory_space<vmem>>, vector<1x8x128xf32>,
    %24 = math.tanh %19 : vector<8x128xf32>
    %c1_i32 = arith.constant 1 : i32
    %25 = arith.index_cast %c1_i32 : i32 to index
    %c0_21 = arith.constant 0 : index
    %c0_22 = arith.constant 0 : index
    %26 = vector.load %arg15[%25, %c0_21, %c0_22] : memref<8x8x128xf32, #tpu.memory_space<vmem>>, vector<1x8x128xf32>
    %27 = vector.shape_cast %26 : vector<1x8x128xf32> to vector<8x128xf32>
    %c0_23 = arith.constant 0 : index
    %c0_24 = arith.constant 0 : index
    %28 = vector.load %arg4[%c0_23, %c0_24] : memref<128x128xf32, #tpu.memory_space<vmem>>, vector<128x128xf32>
    %cst_25 = arith.constant dense<0.000000e+00> : vector<8x128xf32>
    %29 = tpu.matmul %24, %28, %cst_25 {dimension_numbers = #tpu.dot_dimension_numbers<[1], [0], [0], [1], [0, 0, 1, 1], [], []>} : vector<8x128xf32>, vector<128x128xf32>, vector<8x128xf32> -> vector<8x128xf32>
    %30 = arith.addf %27, %29 : vector<8x128xf32>
    %31 = arith.index_cast %c1_i32 : i32 to index
    %c0_26 = arith.constant 0 : index
    %c0_27 = arith.constant 0 : index
    %32 = vector.load %arg15[%31, %c0_26, %c0_27] : memref<8x8x128xf32, #tpu.memory_space<vmem>>, vector<1x8x128xf32>
    %33 = vector.shape_cast %32 : vector<1x8x128xf32> to vector<8x128xf32>
    %34 = vector.shape_cast %30 : vector<8x128xf32> to vector<1x8x128xf32>
    tpu.vector_store %arg15[%31, %c0_26, %c0_27], %34 {strides = array<i32>} : memref<8x8x128xf32, #tpu.memory_space<vmem>>, vector<1x8x128xf32>,
    %35 = math.tanh %30 : vector<8x128xf32>
    %c2_i32 = arith.constant 2 : i32
    %36 = arith.index_cast %c2_i32 : i32 to index
    %c0_28 = arith.constant 0 : index
    %c0_29 = arith.constant 0 : index
    %37 = vector.load %arg15[%36, %c0_28, %c0_29] : memref<8x8x128xf32, #tpu.memory_space<vmem>>, vector<1x8x128xf32>
    %38 = vector.shape_cast %37 : vector<1x8x128xf32> to vector<8x128xf32>
    %c0_30 = arith.constant 0 : index
    %c0_31 = arith.constant 0 : index
    %39 = vector.load %arg4[%c0_30, %c0_31] : memref<128x128xf32, #tpu.memory_space<vmem>>, vector<128x128xf32>
    %cst_32 = arith.constant dense<0.000000e+00> : vector<8x128xf32>
    %40 = tpu.matmul %35, %39, %cst_32 {dimension_numbers = #tpu.dot_dimension_numbers<[1], [0], [0], [1], [0, 0, 1, 1], [], []>} : vector<8x128xf32>, vector<128x128xf32>, vector<8x128xf32> -> vector<8x128xf32>
    %41 = arith.addf %38, %40 : vector<8x128xf32>
    %42 = arith.index_cast %c2_i32 : i32 to index
    %c0_33 = arith.constant 0 : index
    %c0_34 = arith.constant 0 : index
    %43 = vector.load %arg15[%42, %c0_33, %c0_34] : memref<8x8x128xf32, #tpu.memory_space<vmem>>, vector<1x8x128xf32>
    %44 = vector.shape_cast %43 : vector<1x8x128xf32> to vector<8x128xf32>
    %45 = vector.shape_cast %41 : vector<8x128xf32> to vector<1x8x128xf32>
    tpu.vector_store %arg15[%42, %c0_33, %c0_34], %45 {strides = array<i32>} : memref<8x8x128xf32, #tpu.memory_space<vmem>>, vector<1x8x128xf32>,
    %46 = math.tanh %41 : vector<8x128xf32>
    %c3_i32 = arith.constant 3 : i32
    %47 = arith.index_cast %c3_i32 : i32 to index
    %c0_35 = arith.constant 0 : index
    %c0_36 = arith.constant 0 : index
    %48 = vector.load %arg15[%47, %c0_35, %c0_36] : memref<8x8x128xf32, #tpu.memory_space<vmem>>, vector<1x8x128xf32>
    %49 = vector.shape_cast %48 : vector<1x8x128xf32> to vector<8x128xf32>
    %c0_37 = arith.constant 0 : index
    %c0_38 = arith.constant 0 : index
    %50 = vector.load %arg4[%c0_37, %c0_38] : memref<128x128xf32, #tpu.memory_space<vmem>>, vector<128x128xf32>
    %cst_39 = arith.constant dense<0.000000e+00> : vector<8x128xf32>
    %51 = tpu.matmul %46, %50, %cst_39 {dimension_numbers = #tpu.dot_dimension_numbers<[1], [0], [0], [1], [0, 0, 1, 1], [], []>} : vector<8x128xf32>, vector<128x128xf32>, vector<8x128xf32> -> vector<8x128xf32>
    %52 = arith.addf %49, %51 : vector<8x128xf32>
    %53 = arith.index_cast %c3_i32 : i32 to index
    %c0_40 = arith.constant 0 : index
    %c0_41 = arith.constant 0 : index
    %54 = vector.load %arg15[%53, %c0_40, %c0_41] : memref<8x8x128xf32, #tpu.memory_space<vmem>>, vector<1x8x128xf32>
    %55 = vector.shape_cast %54 : vector<1x8x128xf32> to vector<8x128xf32>
    %56 = vector.shape_cast %52 : vector<8x128xf32> to vector<1x8x128xf32>
    tpu.vector_store %arg15[%53, %c0_40, %c0_41], %56 {strides = array<i32>} : memref<8x8x128xf32, #tpu.memory_space<vmem>>, vector<1x8x128xf32>,
    %57 = math.tanh %52 : vector<8x128xf32>
    %c4_i32 = arith.constant 4 : i32
    %58 = arith.index_cast %c4_i32 : i32 to index
    %c0_42 = arith.constant 0 : index
    %c0_43 = arith.constant 0 : index
    %59 = vector.load %arg15[%58, %c0_42, %c0_43] : memref<8x8x128xf32, #tpu.memory_space<vmem>>, vector<1x8x128xf32>
    %60 = vector.shape_cast %59 : vector<1x8x128xf32> to vector<8x128xf32>
    %c0_44 = arith.constant 0 : index
    %c0_45 = arith.constant 0 : index
    %61 = vector.load %arg4[%c0_44, %c0_45] : memref<128x128xf32, #tpu.memory_space<vmem>>, vector<128x128xf32>
    %cst_46 = arith.constant dense<0.000000e+00> : vector<8x128xf32>
    %62 = tpu.matmul %57, %61, %cst_46 {dimension_numbers = #tpu.dot_dimension_numbers<[1], [0], [0], [1], [0, 0, 1, 1], [], []>} : vector<8x128xf32>, vector<128x128xf32>, vector<8x128xf32> -> vector<8x128xf32>
    %63 = arith.addf %60, %62 : vector<8x128xf32>
    %64 = arith.index_cast %c4_i32 : i32 to index
    %c0_47 = arith.constant 0 : index
    %c0_48 = arith.constant 0 : index
    %65 = vector.load %arg15[%64, %c0_47, %c0_48] : memref<8x8x128xf32, #tpu.memory_space<vmem>>, vector<1x8x128xf32>
    %66 = vector.shape_cast %65 : vector<1x8x128xf32> to vector<8x128xf32>
    %67 = vector.shape_cast %63 : vector<8x128xf32> to vector<1x8x128xf32>
    tpu.vector_store %arg15[%64, %c0_47, %c0_48], %67 {strides = array<i32>} : memref<8x8x128xf32, #tpu.memory_space<vmem>>, vector<1x8x128xf32>,
    %68 = math.tanh %63 : vector<8x128xf32>
    %c5_i32 = arith.constant 5 : i32
    %69 = arith.index_cast %c5_i32 : i32 to index
    %c0_49 = arith.constant 0 : index
    %c0_50 = arith.constant 0 : index
    %70 = vector.load %arg15[%69, %c0_49, %c0_50] : memref<8x8x128xf32, #tpu.memory_space<vmem>>, vector<1x8x128xf32>
    %71 = vector.shape_cast %70 : vector<1x8x128xf32> to vector<8x128xf32>
    %c0_51 = arith.constant 0 : index
    %c0_52 = arith.constant 0 : index
    %72 = vector.load %arg4[%c0_51, %c0_52] : memref<128x128xf32, #tpu.memory_space<vmem>>, vector<128x128xf32>
    %cst_53 = arith.constant dense<0.000000e+00> : vector<8x128xf32>
    %73 = tpu.matmul %68, %72, %cst_53 {dimension_numbers = #tpu.dot_dimension_numbers<[1], [0], [0], [1], [0, 0, 1, 1], [], []>} : vector<8x128xf32>, vector<128x128xf32>, vector<8x128xf32> -> vector<8x128xf32>
    %74 = arith.addf %71, %73 : vector<8x128xf32>
    %75 = arith.index_cast %c5_i32 : i32 to index
    %c0_54 = arith.constant 0 : index
    %c0_55 = arith.constant 0 : index
    %76 = vector.load %arg15[%75, %c0_54, %c0_55] : memref<8x8x128xf32, #tpu.memory_space<vmem>>, vector<1x8x128xf32>
    %77 = vector.shape_cast %76 : vector<1x8x128xf32> to vector<8x128xf32>
    %78 = vector.shape_cast %74 : vector<8x128xf32> to vector<1x8x128xf32>
    tpu.vector_store %arg15[%75, %c0_54, %c0_55], %78 {strides = array<i32>} : memref<8x8x128xf32, #tpu.memory_space<vmem>>, vector<1x8x128xf32>,
    %79 = math.tanh %74 : vector<8x128xf32>
    %c6_i32 = arith.constant 6 : i32
    %80 = arith.index_cast %c6_i32 : i32 to index
    %c0_56 = arith.constant 0 : index
    %c0_57 = arith.constant 0 : index
    %81 = vector.load %arg15[%80, %c0_56, %c0_57] : memref<8x8x128xf32, #tpu.memory_space<vmem>>, vector<1x8x128xf32>
    %82 = vector.shape_cast %81 : vector<1x8x128xf32> to vector<8x128xf32>
    %c0_58 = arith.constant 0 : index
    %c0_59 = arith.constant 0 : index
    %83 = vector.load %arg4[%c0_58, %c0_59] : memref<128x128xf32, #tpu.memory_space<vmem>>, vector<128x128xf32>
    %cst_60 = arith.constant dense<0.000000e+00> : vector<8x128xf32>
    %84 = tpu.matmul %79, %83, %cst_60 {dimension_numbers = #tpu.dot_dimension_numbers<[1], [0], [0], [1], [0, 0, 1, 1], [], []>} : vector<8x128xf32>, vector<128x128xf32>, vector<8x128xf32> -> vector<8x128xf32>
    %85 = arith.addf %82, %84 : vector<8x128xf32>
    %86 = arith.index_cast %c6_i32 : i32 to index
    %c0_61 = arith.constant 0 : index
    %c0_62 = arith.constant 0 : index
    %87 = vector.load %arg15[%86, %c0_61, %c0_62] : memref<8x8x128xf32, #tpu.memory_space<vmem>>, vector<1x8x128xf32>
    %88 = vector.shape_cast %87 : vector<1x8x128xf32> to vector<8x128xf32>
    %89 = vector.shape_cast %85 : vector<8x128xf32> to vector<1x8x128xf32>
    tpu.vector_store %arg15[%86, %c0_61, %c0_62], %89 {strides = array<i32>} : memref<8x8x128xf32, #tpu.memory_space<vmem>>, vector<1x8x128xf32>,
    %90 = math.tanh %85 : vector<8x128xf32>
    %c7_i32 = arith.constant 7 : i32
    %91 = arith.index_cast %c7_i32 : i32 to index
    %c0_63 = arith.constant 0 : index
    %c0_64 = arith.constant 0 : index
    %92 = vector.load %arg15[%91, %c0_63, %c0_64] : memref<8x8x128xf32, #tpu.memory_space<vmem>>, vector<1x8x128xf32>
    %93 = vector.shape_cast %92 : vector<1x8x128xf32> to vector<8x128xf32>
    %c0_65 = arith.constant 0 : index
    %c0_66 = arith.constant 0 : index
    %94 = vector.load %arg4[%c0_65, %c0_66] : memref<128x128xf32, #tpu.memory_space<vmem>>, vector<128x128xf32>
    %cst_67 = arith.constant dense<0.000000e+00> : vector<8x128xf32>
    %95 = tpu.matmul %90, %94, %cst_67 {dimension_numbers = #tpu.dot_dimension_numbers<[1], [0], [0], [1], [0, 0, 1, 1], [], []>} : vector<8x128xf32>, vector<128x128xf32>, vector<8x128xf32> -> vector<8x128xf32>
    %96 = arith.addf %93, %95 : vector<8x128xf32>
    %97 = arith.index_cast %c7_i32 : i32 to index
    %c0_68 = arith.constant 0 : index
    %c0_69 = arith.constant 0 : index
    %98 = vector.load %arg15[%97, %c0_68, %c0_69] : memref<8x8x128xf32, #tpu.memory_space<vmem>>, vector<1x8x128xf32>
    %99 = vector.shape_cast %98 : vector<1x8x128xf32> to vector<8x128xf32>
    %100 = vector.shape_cast %96 : vector<8x128xf32> to vector<1x8x128xf32>
    tpu.vector_store %arg15[%97, %c0_68, %c0_69], %100 {strides = array<i32>} : memref<8x8x128xf32, #tpu.memory_space<vmem>>, vector<1x8x128xf32>,
    %101 = math.tanh %96 : vector<8x128xf32>
    %c8_i32 = arith.constant 8 : i32
    %c0_70 = arith.constant 0 : index
    %c0_71 = arith.constant 0 : index
    %c0_72 = arith.constant 0 : index
    %102 = vector.load %arg14[%c0_70, %c0_71, %c0_72] : memref<2x8x128xf32, #tpu.memory_space<vmem>>, vector<1x8x128xf32>
    %103 = vector.shape_cast %102 : vector<1x8x128xf32> to vector<8x128xf32>
    %104 = vector.shape_cast %101 : vector<8x128xf32> to vector<1x8x128xf32>
    tpu.vector_store %arg14[%c0_70, %c0_71, %c0_72], %104 {strides = array<i32>} : memref<2x8x128xf32, #tpu.memory_space<vmem>>, vector<1x8x128xf32>,
    %c0_73 = arith.constant 0 : index
    %c0_74 = arith.constant 0 : index
    %c0_75 = arith.constant 0 : index
    %105 = vector.load %arg15[%c0_73, %c0_74, %c0_75] : memref<8x8x128xf32, #tpu.memory_space<vmem>>, vector<8x8x128xf32>
    %106 = vector.shape_cast %105 : vector<8x8x128xf32> to vector<64x128xf32>
    %c0_76 = arith.constant 0 : index
    %c0_77 = arith.constant 0 : index
    %107 = vector.load %arg5[%c0_76, %c0_77] : memref<128x128xf32, #tpu.memory_space<vmem>>, vector<128x128xf32>
    %cst_78 = arith.constant dense<0.000000e+00> : vector<64x128xf32>
    %108 = tpu.matmul %106, %107, %cst_78 {dimension_numbers = #tpu.dot_dimension_numbers<[1], [0], [0], [1], [0, 0, 1, 1], [], []>} : vector<64x128xf32>, vector<128x128xf32>, vector<64x128xf32> -> vector<64x128xf32>
    %c0_79 = arith.constant 0 : index
    %c0_80 = arith.constant 0 : index
    %109 = vector.load %arg7[%c0_79, %c0_80] : memref<1x128xf32, #tpu.memory_space<vmem>>, vector<1x128xf32>
    %110 = vector.broadcast %109 : vector<1x128xf32> to vector<64x128xf32>
    %111 = arith.addf %108, %110 : vector<64x128xf32>
    %112 = math.tanh %111 : vector<64x128xf32>
    %113 = vector.shape_cast %112 : vector<64x128xf32> to vector<8x8x128xf32>
    %114 = vector.shape_cast %113 : vector<8x8x128xf32> to vector<64x128xf32>
    %c0_81 = arith.constant 0 : index
    %c0_82 = arith.constant 0 : index
    %115 = vector.load %arg8[%c0_81, %c0_82] : memref<128x128xf32, #tpu.memory_space<vmem>>, vector<128x128xf32>
    %cst_83 = arith.constant dense<0.000000e+00> : vector<64x128xf32>
    %116 = tpu.matmul %114, %115, %cst_83 {dimension_numbers = #tpu.dot_dimension_numbers<[1], [0], [0], [1], [0, 0, 1, 1], [], []>} : vector<64x128xf32>, vector<128x128xf32>, vector<64x128xf32> -> vector<64x128xf32>
    %c0_84 = arith.constant 0 : index
    %c0_85 = arith.constant 0 : index
    %117 = vector.load %arg11[%c0_84, %c0_85] : memref<1x128xf32, #tpu.memory_space<vmem>>, vector<1x128xf32>
    %118 = vector.broadcast %117 : vector<1x128xf32> to vector<64x128xf32>
    %119 = arith.addf %116, %118 : vector<64x128xf32>
    %120 = vector.shape_cast %119 : vector<64x128xf32> to vector<8x8x128xf32>
    %c0_86 = arith.constant 0 : index
    %c0_87 = arith.constant 0 : index
    %c0_88 = arith.constant 0 : index
    %121 = vector.load %arg15[%c0_86, %c0_87, %c0_88] : memref<8x8x128xf32, #tpu.memory_space<vmem>>, vector<8x8x128xf32>
    tpu.vector_store %arg15[%c0_86, %c0_87, %c0_88], %120 {strides = array<i32>} : memref<8x8x128xf32, #tpu.memory_space<vmem>>, vector<8x8x128xf32>,
    %c1 = arith.constant 1 : index
    %c0_89 = arith.constant 0 : index
    %c0_90 = arith.constant 0 : index
    %122 = vector.load %arg14[%c1, %c0_89, %c0_90] : memref<2x8x128xf32, #tpu.memory_space<vmem>>, vector<1x8x128xf32>
    %123 = vector.shape_cast %122 : vector<1x8x128xf32> to vector<8x128xf32>
    %c0_i32_91 = arith.constant 0 : i32
    %124 = arith.index_cast %c0_i32_91 : i32 to index
    %c0_92 = arith.constant 0 : index
    %c0_93 = arith.constant 0 : index
    %125 = vector.load %arg15[%124, %c0_92, %c0_93] : memref<8x8x128xf32, #tpu.memory_space<vmem>>, vector<1x8x128xf32>
    %126 = vector.shape_cast %125 : vector<1x8x128xf32> to vector<8x128xf32>
    %c0_94 = arith.constant 0 : index
    %c0_95 = arith.constant 0 : index
    %127 = vector.load %arg9[%c0_94, %c0_95] : memref<128x128xf32, #tpu.memory_space<vmem>>, vector<128x128xf32>
    %cst_96 = arith.constant dense<0.000000e+00> : vector<8x128xf32>
    %128 = tpu.matmul %123, %127, %cst_96 {dimension_numbers = #tpu.dot_dimension_numbers<[1], [0], [0], [1], [0, 0, 1, 1], [], []>} : vector<8x128xf32>, vector<128x128xf32>, vector<8x128xf32> -> vector<8x128xf32>
    %129 = arith.addf %126, %128 : vector<8x128xf32>
    %130 = arith.index_cast %c0_i32_91 : i32 to index
    %c0_97 = arith.constant 0 : index
    %c0_98 = arith.constant 0 : index
    %131 = vector.load %arg15[%130, %c0_97, %c0_98] : memref<8x8x128xf32, #tpu.memory_space<vmem>>, vector<1x8x128xf32>
    %132 = vector.shape_cast %131 : vector<1x8x128xf32> to vector<8x128xf32>
    %133 = vector.shape_cast %129 : vector<8x128xf32> to vector<1x8x128xf32>
    tpu.vector_store %arg15[%130, %c0_97, %c0_98], %133 {strides = array<i32>} : memref<8x8x128xf32, #tpu.memory_space<vmem>>, vector<1x8x128xf32>,
    %134 = math.tanh %129 : vector<8x128xf32>
    %c1_i32_99 = arith.constant 1 : i32
    %135 = arith.index_cast %c1_i32_99 : i32 to index
    %c0_100 = arith.constant 0 : index
    %c0_101 = arith.constant 0 : index
    %136 = vector.load %arg15[%135, %c0_100, %c0_101] : memref<8x8x128xf32, #tpu.memory_space<vmem>>, vector<1x8x128xf32>
    %137 = vector.shape_cast %136 : vector<1x8x128xf32> to vector<8x128xf32>
    %c0_102 = arith.constant 0 : index
    %c0_103 = arith.constant 0 : index
    %138 = vector.load %arg9[%c0_102, %c0_103] : memref<128x128xf32, #tpu.memory_space<vmem>>, vector<128x128xf32>
    %cst_104 = arith.constant dense<0.000000e+00> : vector<8x128xf32>
    %139 = tpu.matmul %134, %138, %cst_104 {dimension_numbers = #tpu.dot_dimension_numbers<[1], [0], [0], [1], [0, 0, 1, 1], [], []>} : vector<8x128xf32>, vector<128x128xf32>, vector<8x128xf32> -> vector<8x128xf32>
    %140 = arith.addf %137, %139 : vector<8x128xf32>
    %141 = arith.index_cast %c1_i32_99 : i32 to index
    %c0_105 = arith.constant 0 : index
    %c0_106 = arith.constant 0 : index
    %142 = vector.load %arg15[%141, %c0_105, %c0_106] : memref<8x8x128xf32, #tpu.memory_space<vmem>>, vector<1x8x128xf32>
    %143 = vector.shape_cast %142 : vector<1x8x128xf32> to vector<8x128xf32>
    %144 = vector.shape_cast %140 : vector<8x128xf32> to vector<1x8x128xf32>
    tpu.vector_store %arg15[%141, %c0_105, %c0_106], %144 {strides = array<i32>} : memref<8x8x128xf32, #tpu.memory_space<vmem>>, vector<1x8x128xf32>,
    %145 = math.tanh %140 : vector<8x128xf32>
    %c2_i32_107 = arith.constant 2 : i32
    %146 = arith.index_cast %c2_i32_107 : i32 to index
    %c0_108 = arith.constant 0 : index
    %c0_109 = arith.constant 0 : index
    %147 = vector.load %arg15[%146, %c0_108, %c0_109] : memref<8x8x128xf32, #tpu.memory_space<vmem>>, vector<1x8x128xf32>
    %148 = vector.shape_cast %147 : vector<1x8x128xf32> to vector<8x128xf32>
    %c0_110 = arith.constant 0 : index
    %c0_111 = arith.constant 0 : index
    %149 = vector.load %arg9[%c0_110, %c0_111] : memref<128x128xf32, #tpu.memory_space<vmem>>, vector<128x128xf32>
    %cst_112 = arith.constant dense<0.000000e+00> : vector<8x128xf32>
    %150 = tpu.matmul %145, %149, %cst_112 {dimension_numbers = #tpu.dot_dimension_numbers<[1], [0], [0], [1], [0, 0, 1, 1], [], []>} : vector<8x128xf32>, vector<128x128xf32>, vector<8x128xf32> -> vector<8x128xf32>
    %151 = arith.addf %148, %150 : vector<8x128xf32>
    %152 = arith.index_cast %c2_i32_107 : i32 to index
    %c0_113 = arith.constant 0 : index
    %c0_114 = arith.constant 0 : index
    %153 = vector.load %arg15[%152, %c0_113, %c0_114] : memref<8x8x128xf32, #tpu.memory_space<vmem>>, vector<1x8x128xf32>
    %154 = vector.shape_cast %153 : vector<1x8x128xf32> to vector<8x128xf32>
    %155 = vector.shape_cast %151 : vector<8x128xf32> to vector<1x8x128xf32>
    tpu.vector_store %arg15[%152, %c0_113, %c0_114], %155 {strides = array<i32>} : memref<8x8x128xf32, #tpu.memory_space<vmem>>, vector<1x8x128xf32>,
    %156 = math.tanh %151 : vector<8x128xf32>
    %c3_i32_115 = arith.constant 3 : i32
    %157 = arith.index_cast %c3_i32_115 : i32 to index
    %c0_116 = arith.constant 0 : index
    %c0_117 = arith.constant 0 : index
    %158 = vector.load %arg15[%157, %c0_116, %c0_117] : memref<8x8x128xf32, #tpu.memory_space<vmem>>, vector<1x8x128xf32>
    %159 = vector.shape_cast %158 : vector<1x8x128xf32> to vector<8x128xf32>
    %c0_118 = arith.constant 0 : index
    %c0_119 = arith.constant 0 : index
    %160 = vector.load %arg9[%c0_118, %c0_119] : memref<128x128xf32, #tpu.memory_space<vmem>>, vector<128x128xf32>
    %cst_120 = arith.constant dense<0.000000e+00> : vector<8x128xf32>
    %161 = tpu.matmul %156, %160, %cst_120 {dimension_numbers = #tpu.dot_dimension_numbers<[1], [0], [0], [1], [0, 0, 1, 1], [], []>} : vector<8x128xf32>, vector<128x128xf32>, vector<8x128xf32> -> vector<8x128xf32>
    %162 = arith.addf %159, %161 : vector<8x128xf32>
    %163 = arith.index_cast %c3_i32_115 : i32 to index
    %c0_121 = arith.constant 0 : index
    %c0_122 = arith.constant 0 : index
    %164 = vector.load %arg15[%163, %c0_121, %c0_122] : memref<8x8x128xf32, #tpu.memory_space<vmem>>, vector<1x8x128xf32>
    %165 = vector.shape_cast %164 : vector<1x8x128xf32> to vector<8x128xf32>
    %166 = vector.shape_cast %162 : vector<8x128xf32> to vector<1x8x128xf32>
    tpu.vector_store %arg15[%163, %c0_121, %c0_122], %166 {strides = array<i32>} : memref<8x8x128xf32, #tpu.memory_space<vmem>>, vector<1x8x128xf32>,
    %167 = math.tanh %162 : vector<8x128xf32>
    %c4_i32_123 = arith.constant 4 : i32
    %168 = arith.index_cast %c4_i32_123 : i32 to index
    %c0_124 = arith.constant 0 : index
    %c0_125 = arith.constant 0 : index
    %169 = vector.load %arg15[%168, %c0_124, %c0_125] : memref<8x8x128xf32, #tpu.memory_space<vmem>>, vector<1x8x128xf32>
    %170 = vector.shape_cast %169 : vector<1x8x128xf32> to vector<8x128xf32>
    %c0_126 = arith.constant 0 : index
    %c0_127 = arith.constant 0 : index
    %171 = vector.load %arg9[%c0_126, %c0_127] : memref<128x128xf32, #tpu.memory_space<vmem>>, vector<128x128xf32>
    %cst_128 = arith.constant dense<0.000000e+00> : vector<8x128xf32>
    %172 = tpu.matmul %167, %171, %cst_128 {dimension_numbers = #tpu.dot_dimension_numbers<[1], [0], [0], [1], [0, 0, 1, 1], [], []>} : vector<8x128xf32>, vector<128x128xf32>, vector<8x128xf32> -> vector<8x128xf32>
    %173 = arith.addf %170, %172 : vector<8x128xf32>
    %174 = arith.index_cast %c4_i32_123 : i32 to index
    %c0_129 = arith.constant 0 : index
    %c0_130 = arith.constant 0 : index
    %175 = vector.load %arg15[%174, %c0_129, %c0_130] : memref<8x8x128xf32, #tpu.memory_space<vmem>>, vector<1x8x128xf32>
    %176 = vector.shape_cast %175 : vector<1x8x128xf32> to vector<8x128xf32>
    %177 = vector.shape_cast %173 : vector<8x128xf32> to vector<1x8x128xf32>
    tpu.vector_store %arg15[%174, %c0_129, %c0_130], %177 {strides = array<i32>} : memref<8x8x128xf32, #tpu.memory_space<vmem>>, vector<1x8x128xf32>,
    %178 = math.tanh %173 : vector<8x128xf32>
    %c5_i32_131 = arith.constant 5 : i32
    %179 = arith.index_cast %c5_i32_131 : i32 to index
    %c0_132 = arith.constant 0 : index
    %c0_133 = arith.constant 0 : index
    %180 = vector.load %arg15[%179, %c0_132, %c0_133] : memref<8x8x128xf32, #tpu.memory_space<vmem>>, vector<1x8x128xf32>
    %181 = vector.shape_cast %180 : vector<1x8x128xf32> to vector<8x128xf32>
    %c0_134 = arith.constant 0 : index
    %c0_135 = arith.constant 0 : index
    %182 = vector.load %arg9[%c0_134, %c0_135] : memref<128x128xf32, #tpu.memory_space<vmem>>, vector<128x128xf32>
    %cst_136 = arith.constant dense<0.000000e+00> : vector<8x128xf32>
    %183 = tpu.matmul %178, %182, %cst_136 {dimension_numbers = #tpu.dot_dimension_numbers<[1], [0], [0], [1], [0, 0, 1, 1], [], []>} : vector<8x128xf32>, vector<128x128xf32>, vector<8x128xf32> -> vector<8x128xf32>
    %184 = arith.addf %181, %183 : vector<8x128xf32>
    %185 = arith.index_cast %c5_i32_131 : i32 to index
    %c0_137 = arith.constant 0 : index
    %c0_138 = arith.constant 0 : index
    %186 = vector.load %arg15[%185, %c0_137, %c0_138] : memref<8x8x128xf32, #tpu.memory_space<vmem>>, vector<1x8x128xf32>
    %187 = vector.shape_cast %186 : vector<1x8x128xf32> to vector<8x128xf32>
    %188 = vector.shape_cast %184 : vector<8x128xf32> to vector<1x8x128xf32>
    tpu.vector_store %arg15[%185, %c0_137, %c0_138], %188 {strides = array<i32>} : memref<8x8x128xf32, #tpu.memory_space<vmem>>, vector<1x8x128xf32>,
    %189 = math.tanh %184 : vector<8x128xf32>
    %c6_i32_139 = arith.constant 6 : i32
    %190 = arith.index_cast %c6_i32_139 : i32 to index
    %c0_140 = arith.constant 0 : index
    %c0_141 = arith.constant 0 : index
    %191 = vector.load %arg15[%190, %c0_140, %c0_141] : memref<8x8x128xf32, #tpu.memory_space<vmem>>, vector<1x8x128xf32>
    %192 = vector.shape_cast %191 : vector<1x8x128xf32> to vector<8x128xf32>
    %c0_142 = arith.constant 0 : index
    %c0_143 = arith.constant 0 : index
    %193 = vector.load %arg9[%c0_142, %c0_143] : memref<128x128xf32, #tpu.memory_space<vmem>>, vector<128x128xf32>
    %cst_144 = arith.constant dense<0.000000e+00> : vector<8x128xf32>
    %194 = tpu.matmul %189, %193, %cst_144 {dimension_numbers = #tpu.dot_dimension_numbers<[1], [0], [0], [1], [0, 0, 1, 1], [], []>} : vector<8x128xf32>, vector<128x128xf32>, vector<8x128xf32> -> vector<8x128xf32>
    %195 = arith.addf %192, %194 : vector<8x128xf32>
    %196 = arith.index_cast %c6_i32_139 : i32 to index
    %c0_145 = arith.constant 0 : index
    %c0_146 = arith.constant 0 : index
    %197 = vector.load %arg15[%196, %c0_145, %c0_146] : memref<8x8x128xf32, #tpu.memory_space<vmem>>, vector<1x8x128xf32>
    %198 = vector.shape_cast %197 : vector<1x8x128xf32> to vector<8x128xf32>
    %199 = vector.shape_cast %195 : vector<8x128xf32> to vector<1x8x128xf32>
    tpu.vector_store %arg15[%196, %c0_145, %c0_146], %199 {strides = array<i32>} : memref<8x8x128xf32, #tpu.memory_space<vmem>>, vector<1x8x128xf32>,
    %200 = math.tanh %195 : vector<8x128xf32>
    %c7_i32_147 = arith.constant 7 : i32
    %201 = arith.index_cast %c7_i32_147 : i32 to index
    %c0_148 = arith.constant 0 : index
    %c0_149 = arith.constant 0 : index
    %202 = vector.load %arg15[%201, %c0_148, %c0_149] : memref<8x8x128xf32, #tpu.memory_space<vmem>>, vector<1x8x128xf32>
    %203 = vector.shape_cast %202 : vector<1x8x128xf32> to vector<8x128xf32>
    %c0_150 = arith.constant 0 : index
    %c0_151 = arith.constant 0 : index
    %204 = vector.load %arg9[%c0_150, %c0_151] : memref<128x128xf32, #tpu.memory_space<vmem>>, vector<128x128xf32>
    %cst_152 = arith.constant dense<0.000000e+00> : vector<8x128xf32>
    %205 = tpu.matmul %200, %204, %cst_152 {dimension_numbers = #tpu.dot_dimension_numbers<[1], [0], [0], [1], [0, 0, 1, 1], [], []>} : vector<8x128xf32>, vector<128x128xf32>, vector<8x128xf32> -> vector<8x128xf32>
    %206 = arith.addf %203, %205 : vector<8x128xf32>
    %207 = arith.index_cast %c7_i32_147 : i32 to index
    %c0_153 = arith.constant 0 : index
    %c0_154 = arith.constant 0 : index
    %208 = vector.load %arg15[%207, %c0_153, %c0_154] : memref<8x8x128xf32, #tpu.memory_space<vmem>>, vector<1x8x128xf32>
    %209 = vector.shape_cast %208 : vector<1x8x128xf32> to vector<8x128xf32>
    %210 = vector.shape_cast %206 : vector<8x128xf32> to vector<1x8x128xf32>
    tpu.vector_store %arg15[%207, %c0_153, %c0_154], %210 {strides = array<i32>} : memref<8x8x128xf32, #tpu.memory_space<vmem>>, vector<1x8x128xf32>,
    %211 = math.tanh %206 : vector<8x128xf32>
    %c8_i32_155 = arith.constant 8 : i32
    %c1_156 = arith.constant 1 : index
    %c0_157 = arith.constant 0 : index
    %c0_158 = arith.constant 0 : index
    %212 = vector.load %arg14[%c1_156, %c0_157, %c0_158] : memref<2x8x128xf32, #tpu.memory_space<vmem>>, vector<1x8x128xf32>
    %213 = vector.shape_cast %212 : vector<1x8x128xf32> to vector<8x128xf32>
    %214 = vector.shape_cast %211 : vector<8x128xf32> to vector<1x8x128xf32>
    tpu.vector_store %arg14[%c1_156, %c0_157, %c0_158], %214 {strides = array<i32>} : memref<2x8x128xf32, #tpu.memory_space<vmem>>, vector<1x8x128xf32>,
    %c0_159 = arith.constant 0 : index
    %c0_160 = arith.constant 0 : index
    %c0_161 = arith.constant 0 : index
    %215 = vector.load %arg15[%c0_159, %c0_160, %c0_161] : memref<8x8x128xf32, #tpu.memory_space<vmem>>, vector<8x8x128xf32>
    %216 = vector.shape_cast %215 : vector<8x8x128xf32> to vector<64x128xf32>
    %c0_162 = arith.constant 0 : index
    %c0_163 = arith.constant 0 : index
    %217 = vector.load %arg10[%c0_162, %c0_163] : memref<128x128xf32, #tpu.memory_space<vmem>>, vector<128x128xf32>
    %cst_164 = arith.constant dense<0.000000e+00> : vector<64x128xf32>
    %218 = tpu.matmul %216, %217, %cst_164 {dimension_numbers = #tpu.dot_dimension_numbers<[1], [0], [0], [1], [0, 0, 1, 1], [], []>} : vector<64x128xf32>, vector<128x128xf32>, vector<64x128xf32> -> vector<64x128xf32>
    %c0_165 = arith.constant 0 : index
    %c0_166 = arith.constant 0 : index
    %219 = vector.load %arg12[%c0_165, %c0_166] : memref<1x128xf32, #tpu.memory_space<vmem>>, vector<1x128xf32>
    %220 = vector.broadcast %219 : vector<1x128xf32> to vector<64x128xf32>
    %221 = arith.addf %218, %220 : vector<64x128xf32>
    %222 = math.tanh %221 : vector<64x128xf32>
    %223 = vector.shape_cast %222 : vector<64x128xf32> to vector<8x8x128xf32>
    %c0_167 = arith.constant 0 : index
    %c0_168 = arith.constant 0 : index
    %c0_169 = arith.constant 0 : index
    %224 = vector.load %arg13[%c0_167, %c0_168, %c0_169] : memref<8x8x128xf32, #tpu.memory_space<vmem>>, vector<8x8x128xf32>
    tpu.vector_store %arg13[%c0_167, %c0_168, %c0_169], %223 {strides = array<i32>} : memref<8x8x128xf32, #tpu.memory_space<vmem>>, vector<8x8x128xf32>,
    return
  }
  func.func @transform_0(%arg0: i32, %arg1: i32) -> (i32, i32, i32) {
    %c0_i32 = arith.constant 0 : i32
    %c0_i32_0 = arith.constant 0 : i32
    return %arg1, %arg0, %c0_i32 : i32, i32, i32
  }
  func.func @transform_1(%arg0: i32, %arg1: i32) -> (i32, i32) {
    %c0_i32 = arith.constant 0 : i32
    %c0_i32_0 = arith.constant 0 : i32
    %c0_i32_1 = arith.constant 0 : i32
    return %c0_i32, %c0_i32_0 : i32, i32
  }
  func.func @transform_2(%arg0: i32, %arg1: i32) -> (i32, i32) {
    %c0_i32 = arith.constant 0 : i32
    %c0_i32_0 = arith.constant 0 : i32
    %c0_i32_1 = arith.constant 0 : i32
    return %c0_i32, %c0_i32_0 : i32, i32
  }
  func.func @transform_3(%arg0: i32, %arg1: i32) -> (i32, i32) {
    %c0_i32 = arith.constant 0 : i32
    %c0_i32_0 = arith.constant 0 : i32
    %c0_i32_1 = arith.constant 0 : i32
    return %c0_i32, %c0_i32_0 : i32, i32
  }
  func.func @transform_4(%arg0: i32, %arg1: i32) -> (i32, i32) {
    %c0_i32 = arith.constant 0 : i32
    %c0_i32_0 = arith.constant 0 : i32
    %c0_i32_1 = arith.constant 0 : i32
    return %c0_i32, %c0_i32_0 : i32, i32
  }
  func.func @transform_5(%arg0: i32, %arg1: i32) -> (i32, i32) {
    %c0_i32 = arith.constant 0 : i32
    %c0_i32_0 = arith.constant 0 : i32
    %c0_i32_1 = arith.constant 0 : i32
    return %c0_i32, %c0_i32_0 : i32, i32
  }
  func.func @transform_6(%arg0: i32, %arg1: i32) -> (i32, i32) {
    %c0_i32 = arith.constant 0 : i32
    %c0_i32_0 = arith.constant 0 : i32
    %c0_i32_1 = arith.constant 0 : i32
    return %c0_i32, %c0_i32_0 : i32, i32
  }
  func.func @transform_7(%arg0: i32, %arg1: i32) -> (i32, i32) {
    %c0_i32 = arith.constant 0 : i32
    %c0_i32_0 = arith.constant 0 : i32
    %c0_i32_1 = arith.constant 0 : i32
    return %c0_i32, %c0_i32_0 : i32, i32
  }
  func.func @transform_8(%arg0: i32, %arg1: i32) -> (i32, i32) {
    %c0_i32 = arith.constant 0 : i32
    %c0_i32_0 = arith.constant 0 : i32
    %c0_i32_1 = arith.constant 0 : i32
    return %c0_i32, %c0_i32_0 : i32, i32
  }
  func.func @transform_9(%arg0: i32, %arg1: i32) -> (i32, i32) {
    %c0_i32 = arith.constant 0 : i32
    %c0_i32_0 = arith.constant 0 : i32
    %c0_i32_1 = arith.constant 0 : i32
    return %c0_i32, %c0_i32_0 : i32, i32
  }
  func.func @transform_10(%arg0: i32, %arg1: i32) -> (i32, i32) {
    %c0_i32 = arith.constant 0 : i32
    %c0_i32_0 = arith.constant 0 : i32
    %c0_i32_1 = arith.constant 0 : i32
    return %c0_i32, %c0_i32_0 : i32, i32
  }
  func.func @transform_11(%arg0: i32, %arg1: i32) -> (i32, i32, i32) {
    %c0_i32 = arith.constant 0 : i32
    %c0_i32_0 = arith.constant 0 : i32
    return %arg1, %arg0, %c0_i32 : i32, i32, i32
  }
  func.func @transform_12(%arg0: i32, %arg1: i32) -> (i32, i32, i32) {
    %c0_i32 = arith.constant 0 : i32
    %c0_i32_0 = arith.constant 0 : i32
    %c0_i32_1 = arith.constant 0 : i32
    return %c0_i32, %arg0, %c0_i32_0 : i32, i32, i32
  }
}

</mosaic_0001>

<llo_original>
// kernel: tpu_custom_call.1
$region0: #{tpu_custom_call.1}
  #allocation0 [shape = 'u32[]', space=smem, size = 0x4, offset = 0x4, fixed_abs, tag = 'smem constant byte address 0x4 - core index']
  #allocation1 [shape = 'u32[144,128]{1,0:T(1,128)}', space=vmem, size = 0x12000, scoped, tag = 'internal scratch']
  #allocation2 [shape = 'f32[8,8,128]{2,1,0:T(8,128)}', space=vmem, size = 0x8000, scoped, tag = 'scratch operand']
  %s0 = inlined_call_operand.hbm [shape: f32[8,8,128], index: 0, kind: input, shape index: {}]
  %s1 = inlined_call_operand.hbm [shape: f32[128,128], index: 1, kind: input, shape index: {}]
  %s2 = inlined_call_operand.hbm [shape: f32[128,128], index: 2, kind: input, shape index: {}]
  %s3 = inlined_call_operand.hbm [shape: f32[128,128], index: 3, kind: input, shape index: {}]
  %s4 = inlined_call_operand.vmem [shape: f32[1,128], index: 4, kind: input, shape index: {}]
  %s5 = inlined_call_operand.vmem [shape: f32[1,128], index: 5, kind: input, shape index: {}]
  %s6 = inlined_call_operand.hbm [shape: f32[128,128], index: 6, kind: input, shape index: {}]
  %s7 = inlined_call_operand.hbm [shape: f32[128,128], index: 7, kind: input, shape index: {}]
  %s8 = inlined_call_operand.hbm [shape: f32[128,128], index: 8, kind: input, shape index: {}]
  %s9 = inlined_call_operand.vmem [shape: f32[1,128], index: 9, kind: input, shape index: {}]
  %s10 = inlined_call_operand.vmem [shape: f32[1,128], index: 10, kind: input, shape index: {}]
  %s11 = inlined_call_operand.hbm [shape: f32[8,8,128], index: 11, kind: output, shape index: {0}]
  %s12 = inlined_call_operand.hbm [shape: f32[2,8,128], index: 12, kind: output, shape index: {1}]
  %13 = xla_tuple %s11, %s12
  %s14 = sld [smem:[#allocation0]]
  $region94: #{tpu_custom_call.1} parent=0
    _
  %s16 = ssub.s32 1, %s14
  %s17 = scalar_select 0, %s16, %s14
  $region1: #{tpu_custom_call.1} parent=0
    #allocation3 [shape = 'u8[32768]{0}', space=vmem, size = 0x8000, scoped, tag = 'input window, operand 0, single buffered']
    #allocation4 [shape = 's32[1]{0}', space=sflag, size = 0x4, scoped, tag = 'scoped memory for tpu_custom_call.1']
    #allocation5 [shape = 's32[1]{0}', space=sflag, size = 0x4, scoped, tag = 'scoped memory for tpu_custom_call.1']
    #allocation6 [shape = 'u8[65536]{0}', space=vmem, size = 0x10000, scoped, tag = 'input window, operand 1, single buffered']
    #allocation7 [shape = 's32[1]{0}', space=sflag, size = 0x4, scoped, tag = 'scoped memory for tpu_custom_call.1']
    #allocation8 [shape = 'u8[65536]{0}', space=vmem, size = 0x10000, scoped, tag = 'input window, operand 2, single buffered']
    #allocation9 [shape = 'u8[65536]{0}', space=vmem, size = 0x10000, scoped, tag = 'input window, operand 3, single buffered']
    #allocation10 [shape = 's32[1]{0}', space=sflag, size = 0x4, scoped, tag = 'scoped memory for tpu_custom_call.1']
    #allocation11 [shape = 'u8[65536]{0}', space=vmem, size = 0x10000, scoped, tag = 'input window, operand 6, single buffered']
    #allocation12 [shape = 'u8[65536]{0}', space=vmem, size = 0x10000, scoped, tag = 'input window, operand 7, single buffered']
    #allocation13 [shape = 's32[1]{0}', space=sflag, size = 0x4, scoped, tag = 'scoped memory for tpu_custom_call.1']
    #allocation14 [shape = 'u8[65536]{0}', space=vmem, size = 0x10000, scoped, tag = 'input window, operand 8, single buffered']
    #allocation15 [shape = 'u8[32768]{0}', space=vmem, size = 0x8000, scoped, tag = 'output window, operand 0, single buffered']
    #allocation16 [shape = 'u8[8192]{0}', space=vmem, size = 0x2000, scoped, tag = 'output window, operand 1, single buffered']
    #allocation17 [shape = 's32[1]{0}', space=sflag, size = 0x4, scoped, tag = 'scoped memory for tpu_custom_call.1']
    %18 = vsyncpa [#allocation4], 0
    %19 = vsyncpa [#allocation7], 0
    %20 = vsyncpa [#allocation10], 0
    %21 = vsyncpa [#allocation13], 0
    %22 = vsyncpa [#allocation5], 0
    %23 = vsyncpa [#allocation17], 0
    // Predicated region
    $region2: #{tpu_custom_call.1} parent=1 // pred_check
      _
    $region3: #{tpu_custom_call.1} parent=1 // pred_check_branch
      %25 = sbr.rel (0) target = $region5
    $region4: #{tpu_custom_call.1} parent=1 // pred_region
      %s27 = ssub.s32 1024, 1024
      %28 = vsyncadd [#allocation4], %s27
      %s29 = sshll.u32 [#allocation3], 4
      %s30 = int_to_ptr.vmem [resolvable:$true] %s29
      %35 = dma.hbm_to_vmem [thread:$0]  %s0, 1024, %s30, [#allocation4], 128, 128, 8
    $region5: #{tpu_custom_call.1} parent=1 // pred_fallthru
      _
    // Predicated region
    $region6: #{tpu_custom_call.1} parent=1 // pred_check
      _
    $region7: #{tpu_custom_call.1} parent=1 // pred_check_branch
      %37 = sbr.rel (0) target = $region9
    $region8: #{tpu_custom_call.1} parent=1 // pred_region
      %s39 = ssub.s32 2048, 2048
      %40 = vsyncadd [#allocation7], %s39
      %s41 = sshll.u32 [#allocation6], 4
      %s42 = int_to_ptr.vmem [resolvable:$true] %s41
      %47 = dma.hbm_to_vmem [thread:$0]  %s1, 2048, %s42, [#allocation7], 128, 128, 8
    $region9: #{tpu_custom_call.1} parent=1 // pred_fallthru
      _
    // Predicated region
    $region10: #{tpu_custom_call.1} parent=1 // pred_check
      _
    $region11: #{tpu_custom_call.1} parent=1 // pred_check_branch
      %49 = sbr.rel (0) target = $region13
    $region12: #{tpu_custom_call.1} parent=1 // pred_region
      %s51 = ssub.s32 2048, 2048
      %52 = vsyncadd [#allocation7], %s51
      %s53 = sshll.u32 [#allocation8], 4
      %s54 = int_to_ptr.vmem [resolvable:$true] %s53
      %59 = dma.hbm_to_vmem [thread:$0]  %s2, 2048, %s54, [#allocation7], 128, 128, 8
    $region13: #{tpu_custom_call.1} parent=1 // pred_fallthru
      _
    // Predicated region
    $region14: #{tpu_custom_call.1} parent=1 // pred_check
      _
    $region15: #{tpu_custom_call.1} parent=1 // pred_check_branch
      %61 = sbr.rel (0) target = $region17
    $region16: #{tpu_custom_call.1} parent=1 // pred_region
      %s63 = ssub.s32 2048, 2048
      %64 = vsyncadd [#allocation10], %s63
      %s65 = sshll.u32 [#allocation9], 4
      %s66 = int_to_ptr.vmem [resolvable:$true] %s65
      %71 = dma.hbm_to_vmem [thread:$0]  %s3, 2048, %s66, [#allocation10], 128, 128, 8
    $region17: #{tpu_custom_call.1} parent=1 // pred_fallthru
      _
    // Predicated region
    $region18: #{tpu_custom_call.1} parent=1 // pred_check
      _
    $region19: #{tpu_custom_call.1} parent=1 // pred_check_branch
      %73 = sbr.rel (0) target = $region21
    $region20: #{tpu_custom_call.1} parent=1 // pred_region
      _
    $region21: #{tpu_custom_call.1} parent=1 // pred_fallthru
      _
    // Predicated region
    $region22: #{tpu_custom_call.1} parent=1 // pred_check
      _
    $region23: #{tpu_custom_call.1} parent=1 // pred_check_branch
      %75 = sbr.rel (0) target = $region25
    $region24: #{tpu_custom_call.1} parent=1 // pred_region
      _
    $region25: #{tpu_custom_call.1} parent=1 // pred_fallthru
      _
    // Predicated region
    $region26: #{tpu_custom_call.1} parent=1 // pred_check
      _
    $region27: #{tpu_custom_call.1} parent=1 // pred_check_branch
      %77 = sbr.rel (0) target = $region29
    $region28: #{tpu_custom_call.1} parent=1 // pred_region
      %s79 = ssub.s32 2048, 2048
      %80 = vsyncadd [#allocation10], %s79
      %s81 = sshll.u32 [#allocation11], 4
      %s82 = int_to_ptr.vmem [resolvable:$true] %s81
      %87 = dma.hbm_to_vmem [thread:$0]  %s6, 2048, %s82, [#allocation10], 128, 128, 8
    $region29: #{tpu_custom_call.1} parent=1 // pred_fallthru
      _
    // Predicated region
    $region30: #{tpu_custom_call.1} parent=1 // pred_check
      _
    $region31: #{tpu_custom_call.1} parent=1 // pred_check_branch
      %89 = sbr.rel (0) target = $region33
    $region32: #{tpu_custom_call.1} parent=1 // pred_region
      %s91 = ssub.s32 2048, 2048
      %92 = vsyncadd [#allocation13], %s91
      %s93 = sshll.u32 [#allocation12], 4
      %s94 = int_to_ptr.vmem [resolvable:$true] %s93
      %99 = dma.hbm_to_vmem [thread:$0]  %s7, 2048, %s94, [#allocation13], 128, 128, 8
    $region33: #{tpu_custom_call.1} parent=1 // pred_fallthru
      _
    // Predicated region
    $region34: #{tpu_custom_call.1} parent=1 // pred_check
      _
    $region35: #{tpu_custom_call.1} parent=1 // pred_check_branch
      %101 = sbr.rel (0) target = $region37
    $region36: #{tpu_custom_call.1} parent=1 // pred_region
      %s103 = ssub.s32 2048, 2048
      %104 = vsyncadd [#allocation13], %s103
      %s105 = sshll.u32 [#allocation14], 4
      %s106 = int_to_ptr.vmem [resolvable:$true] %s105
      %111 = dma.hbm_to_vmem [thread:$0]  %s8, 2048, %s106, [#allocation13], 128, 128, 8
    $region37: #{tpu_custom_call.1} parent=1 // pred_fallthru
      _
    // Predicated region
    $region38: #{tpu_custom_call.1} parent=1 // pred_check
      _
    $region39: #{tpu_custom_call.1} parent=1 // pred_check_branch
      %113 = sbr.rel (0) target = $region41
    $region40: #{tpu_custom_call.1} parent=1 // pred_region
      _
    $region41: #{tpu_custom_call.1} parent=1 // pred_fallthru
      _
    // Predicated region
    $region42: #{tpu_custom_call.1} parent=1 // pred_check
      _
    $region43: #{tpu_custom_call.1} parent=1 // pred_check_branch
      %115 = sbr.rel (0) target = $region45
    $region44: #{tpu_custom_call.1} parent=1 // pred_region
      _
    $region45: #{tpu_custom_call.1} parent=1 // pred_fallthru
      _
    // Predicated region
    $region46: #{tpu_custom_call.1} parent=1 // pred_check
      _
    $region47: #{tpu_custom_call.1} parent=1 // pred_check_branch
      %117 = sbr.rel (0) target = $region49
    $region48: #{tpu_custom_call.1} parent=1 // pred_region
      %118 = dma.done [#allocation4], 1024
    $region49: #{tpu_custom_call.1} parent=1 // pred_fallthru
      _
    // Predicated region
    $region50: #{tpu_custom_call.1} parent=1 // pred_check
      _
    $region51: #{tpu_custom_call.1} parent=1 // pred_check_branch
      %120 = sbr.rel (0) target = $region53
    $region52: #{tpu_custom_call.1} parent=1 // pred_region
      %121 = dma.done [#allocation7], 2048
    $region53: #{tpu_custom_call.1} parent=1 // pred_fallthru
      _
    // Predicated region
    $region54: #{tpu_custom_call.1} parent=1 // pred_check
      _
    $region55: #{tpu_custom_call.1} parent=1 // pred_check_branch
      %123 = sbr.rel (0) target = $region57
    $region56: #{tpu_custom_call.1} parent=1 // pred_region
      %124 = dma.done [#allocation7], 2048
    $region57: #{tpu_custom_call.1} parent=1 // pred_fallthru
      _
    // Predicated region
    $region58: #{tpu_custom_call.1} parent=1 // pred_check
      _
    $region59: #{tpu_custom_call.1} parent=1 // pred_check_branch
      %126 = sbr.rel (0) target = $region61
    $region60: #{tpu_custom_call.1} parent=1 // pred_region
      %127 = dma.done [#allocation10], 2048
    $region61: #{tpu_custom_call.1} parent=1 // pred_fallthru
      _
    // Predicated region
    $region62: #{tpu_custom_call.1} parent=1 // pred_check
      _
    $region63: #{tpu_custom_call.1} parent=1 // pred_check_branch
      %129 = sbr.rel (0) target = $region65
    $region64: #{tpu_custom_call.1} parent=1 // pred_region
      %130 = dma.done [#allocation10], 2048
    $region65: #{tpu_custom_call.1} parent=1 // pred_fallthru
      _
    // Predicated region
    $region66: #{tpu_custom_call.1} parent=1 // pred_check
      _
    $region67: #{tpu_custom_call.1} parent=1 // pred_check_branch
      %132 = sbr.rel (0) target = $region69
    $region68: #{tpu_custom_call.1} parent=1 // pred_region
      %133 = dma.done [#allocation13], 2048
    $region69: #{tpu_custom_call.1} parent=1 // pred_fallthru
      _
    // Predicated region
    $region70: #{tpu_custom_call.1} parent=1 // pred_check
      _
    $region71: #{tpu_custom_call.1} parent=1 // pred_check_branch
      %135 = sbr.rel (0) target = $region73
    $region72: #{tpu_custom_call.1} parent=1 // pred_region
      %136 = dma.done [#allocation13], 2048
    $region73: #{tpu_custom_call.1} parent=1 // pred_fallthru
      _
    %p137 = scmp.eq.s32.totalorder 0, 0
    // Predicated region
    $region74: #{tpu_custom_call.1} parent=1 // pred_check
      %p138 = pneg %p137
    $region75: #{tpu_custom_call.1} parent=1 // pred_check_branch
      %140 = sbr.rel (%p138) target = $region77
    $region76: #{tpu_custom_call.1} parent=1 // pred_region
      %141 = vst [vmem:[#allocation16] sm:$0xff] 0.0
      %142 = vst [vmem:[#allocation16 + $0x8] sm:$0xff] 0.0
    $region77: #{tpu_custom_call.1} parent=1 // pred_fallthru
      _
    %v143 = vld [vmem:[#allocation3] sm:$0xff]
    %v144 = vld [vmem:[#allocation3 + $0x8] sm:$0xff]
    %v145 = vld [vmem:[#allocation3 + $0x10] sm:$0xff]
    %v146 = vld [vmem:[#allocation3 + $0x18] sm:$0xff]
    %v147 = vld [vmem:[#allocation3 + $0x20] sm:$0xff]
    %v148 = vld [vmem:[#allocation3 + $0x28] sm:$0xff]
    %v149 = vld [vmem:[#allocation3 + $0x30] sm:$0xff]
    %v150 = vld [vmem:[#allocation3 + $0x38] sm:$0xff]
    %v151 = vld [vmem:[#allocation6] sm:$0xff]
    %v152 = vld [vmem:[#allocation6 + $0x8] sm:$0xff]
    %v153 = vld [vmem:[#allocation6 + $0x10] sm:$0xff]
    %v154 = vld [vmem:[#allocation6 + $0x18] sm:$0xff]
    %v155 = vld [vmem:[#allocation6 + $0x20] sm:$0xff]
    %v156 = vld [vmem:[#allocation6 + $0x28] sm:$0xff]
    %v157 = vld [vmem:[#allocation6 + $0x30] sm:$0xff]
    %v158 = vld [vmem:[#allocation6 + $0x38] sm:$0xff]
    %v159 = vld [vmem:[#allocation6 + $0x40] sm:$0xff]
    %v160 = vld [vmem:[#allocation6 + $0x48] sm:$0xff]
    %v161 = vld [vmem:[#allocation6 + $0x50] sm:$0xff]
    %v162 = vld [vmem:[#allocation6 + $0x58] sm:$0xff]
    %v163 = vld [vmem:[#allocation6 + $0x60] sm:$0xff]
    %v164 = vld [vmem:[#allocation6 + $0x68] sm:$0xff]
    %v165 = vld [vmem:[#allocation6 + $0x70] sm:$0xff]
    %v166 = vld [vmem:[#allocation6 + $0x78] sm:$0xff]
    %v167 = vld [vmem:[%s4] sm:$0x1]
    %v169 = vlaneseq
    %v170 = vshrl.u32 %v169, 7
    %v171 = vsub.s32 0, %v170
    %v172 = vrot.slane %v167, %v171
    %174 = vmatprep.subr.mxu0 0.0
    %175 = vmatpush1.msra.mxu0 %v166
    %176 = vmatprep.subr.mxu0 0.0
    %177 = vmatpush1.msra.mxu0 %v165
    %178 = vmatprep.subr.mxu0 0.0
    %179 = vmatpush1.msra.mxu0 %v164
    %180 = vmatprep.subr.mxu0 0.0
    %181 = vmatpush1.msra.mxu0 %v163
    %182 = vmatprep.subr.mxu0 0.0
    %183 = vmatpush1.msra.mxu0 %v162
    %184 = vmatprep.subr.mxu0 0.0
    %185 = vmatpush1.msra.mxu0 %v161
    %186 = vmatprep.subr.mxu0 0.0
    %187 = vmatpush1.msra.mxu0 %v160
    %188 = vmatprep.subr.mxu0 0.0
    %189 = vmatpush1.msra.mxu0 %v159
    %190 = vmatprep.subr.mxu0 0.0
    %191 = vmatpush1.msra.mxu0 %v158
    %192 = vmatprep.subr.mxu0 0.0
    %193 = vmatpush1.msra.mxu0 %v157
    %194 = vmatprep.subr.mxu0 0.0
    %195 = vmatpush1.msra.mxu0 %v156
    %196 = vmatprep.subr.mxu0 0.0
    %197 = vmatpush1.msra.mxu0 %v155
    %198 = vmatprep.subr.mxu0 0.0
    %199 = vmatpush1.msra.mxu0 %v154
    %200 = vmatprep.subr.mxu0 0.0
    %201 = vmatpush1.msra.mxu0 %v153
    %202 = vmatprep.subr.mxu0 0.0
    %203 = vmatpush1.msra.mxu0 %v152
    %204 = vmatprep.subr.mxu0 0.0
    %205 = vmatpush1.msra.mxu0 %v151
    %206 = vmatprep.subr.mxu0 0.0
    %207 = vmatpush2.msra.mxu0 0.0
    %208 = vmatprep.subr.mxu0 0.0
    %209 = vmatpush2.msra.mxu0 0.0
    %210 = vmatprep.subr.mxu0 0.0
    %211 = vmatpush2.msra.mxu0 0.0
    %212 = vmatprep.subr.mxu0 0.0
    %213 = vmatpush2.msra.mxu0 0.0
    %214 = vmatprep.subr.mxu0 0.0
    %215 = vmatpush2.msra.mxu0 0.0
    %216 = vmatprep.subr.mxu0 0.0
    %217 = vmatpush2.msra.mxu0 0.0
    %218 = vmatprep.subr.mxu0 0.0
    %219 = vmatpush2.msra.mxu0 0.0
    %220 = vmatprep.subr.mxu0 0.0
    %221 = vmatpush2.msra.mxu0 0.0
    %222 = vmatprep.subr.mxu0 0.0
    %223 = vmatpush2.msra.mxu0 0.0
    %224 = vmatprep.subr.mxu0 0.0
    %225 = vmatpush2.msra.mxu0 0.0
    %226 = vmatprep.subr.mxu0 0.0
    %227 = vmatpush2.msra.mxu0 0.0
    %228 = vmatprep.subr.mxu0 0.0
    %229 = vmatpush2.msra.mxu0 0.0
    %230 = vmatprep.subr.mxu0 0.0
    %231 = vmatpush2.msra.mxu0 0.0
    %232 = vmatprep.subr.mxu0 0.0
    %233 = vmatpush2.msra.mxu0 0.0
    %234 = vmatprep.subr.mxu0 0.0
    %235 = vmatpush2.msra.mxu0 0.0
    %236 = vmatprep.subr.mxu0 0.0
    %237 = vmatpush2.msra.mxu0 0.0
    %238 = vmatprep.mubr.f32.mxu0 0.0
    %239 = vmatmul.mubr.f32.gmra.mxu0 %v143
    %v240 = vpop.f32.mrf.mxu0
    %v241 = vadd.f32 %v172, %v240
    %v242 = vpop.f32.mrf.mxu0
    %243 = vmatprep.mubr.f32.mxu0 0.0
    %244 = vmatmul.mubr.f32.gmra.mxu0 %v144
    %v245 = vpop.f32.mrf.mxu0
    %v246 = vadd.f32 %v172, %v245
    %v247 = vpop.f32.mrf.mxu0
    %248 = vmatprep.mubr.f32.mxu0 0.0
    %249 = vmatmul.mubr.f32.gmra.mxu0 %v145
    %v250 = vpop.f32.mrf.mxu0
    %v251 = vadd.f32 %v172, %v250
    %v252 = vpop.f32.mrf.mxu0
    %253 = vmatprep.mubr.f32.mxu0 0.0
    %254 = vmatmul.mubr.f32.gmra.mxu0 %v146
    %v255 = vpop.f32.mrf.mxu0
    %v256 = vadd.f32 %v172, %v255
    %v257 = vpop.f32.mrf.mxu0
    %258 = vmatprep.mubr.f32.mxu0 0.0
    %259 = vmatmul.mubr.f32.gmra.mxu0 %v147
    %v260 = vpop.f32.mrf.mxu0
    %v261 = vadd.f32 %v172, %v260
    %v262 = vpop.f32.mrf.mxu0
    %263 = vmatprep.mubr.f32.mxu0 0.0
    %264 = vmatmul.mubr.f32.gmra.mxu0 %v148
    %v265 = vpop.f32.mrf.mxu0
    %v266 = vadd.f32 %v172, %v265
    %v267 = vpop.f32.mrf.mxu0
    %268 = vmatprep.mubr.f32.mxu0 0.0
    %269 = vmatmul.mubr.f32.gmra.mxu0 %v149
    %v270 = vpop.f32.mrf.mxu0
    %v271 = vadd.f32 %v172, %v270
    %v272 = vpop.f32.mrf.mxu0
    %273 = vmatprep.mubr.f32.mxu0 0.0
    %274 = vmatmul.mubr.f32.gmra.mxu0 %v150
    %v275 = vpop.f32.mrf.mxu0
    %v276 = vadd.f32 %v172, %v275
    %v277 = vpop.f32.mrf.mxu0
    %278 = vdwg.mxu0
    %279 = vst [vmem:[#allocation2] sm:$0xff] %v241
    %280 = vst [vmem:[#allocation2 + $0x8] sm:$0xff] %v246
    %281 = vst [vmem:[#allocation2 + $0x10] sm:$0xff] %v251
    %282 = vst [vmem:[#allocation2 + $0x18] sm:$0xff] %v256
    %283 = vst [vmem:[#allocation2 + $0x20] sm:$0xff] %v261
    %284 = vst [vmem:[#allocation2 + $0x28] sm:$0xff] %v266
    %285 = vst [vmem:[#allocation2 + $0x30] sm:$0xff] %v271
    %286 = vst [vmem:[#allocation2 + $0x38] sm:$0xff] %v276
    %v287 = vld [vmem:[#allocation16] sm:$0xff]
    %v288 = vld [vmem:[#allocation2] sm:$0xff]
    %v289 = vld [vmem:[#allocation8] sm:$0xff]
    %v290 = vld [vmem:[#allocation8 + $0x8] sm:$0xff]
    %v291 = vld [vmem:[#allocation8 + $0x10] sm:$0xff]
    %v292 = vld [vmem:[#allocation8 + $0x18] sm:$0xff]
    %v293 = vld [vmem:[#allocation8 + $0x20] sm:$0xff]
    %v294 = vld [vmem:[#allocation8 + $0x28] sm:$0xff]
    %v295 = vld [vmem:[#allocation8 + $0x30] sm:$0xff]
    %v296 = vld [vmem:[#allocation8 + $0x38] sm:$0xff]
    %v297 = vld [vmem:[#allocation8 + $0x40] sm:$0xff]
    %v298 = vld [vmem:[#allocation8 + $0x48] sm:$0xff]
    %v299 = vld [vmem:[#allocation8 + $0x50] sm:$0xff]
    %v300 = vld [vmem:[#allocation8 + $0x58] sm:$0xff]
    %v301 = vld [vmem:[#allocation8 + $0x60] sm:$0xff]
    %v302 = vld [vmem:[#allocation8 + $0x68] sm:$0xff]
    %v303 = vld [vmem:[#allocation8 + $0x70] sm:$0xff]
    %v304 = vld [vmem:[#allocation8 + $0x78] sm:$0xff]
    %305 = vmatprep.subr.mxu0 0.0
    %306 = vmatpush1.msra.mxu0 %v304
    %307 = vmatprep.subr.mxu0 0.0
    %308 = vmatpush1.msra.mxu0 %v303
    %309 = vmatprep.subr.mxu0 0.0
    %310 = vmatpush1.msra.mxu0 %v302
    %311 = vmatprep.subr.mxu0 0.0
    %312 = vmatpush1.msra.mxu0 %v301
    %313 = vmatprep.subr.mxu0 0.0
    %314 = vmatpush1.msra.mxu0 %v300
    %315 = vmatprep.subr.mxu0 0.0
    %316 = vmatpush1.msra.mxu0 %v299
    %317 = vmatprep.subr.mxu0 0.0
    %318 = vmatpush1.msra.mxu0 %v298
    %319 = vmatprep.subr.mxu0 0.0
    %320 = vmatpush1.msra.mxu0 %v297
    %321 = vmatprep.subr.mxu0 0.0
    %322 = vmatpush1.msra.mxu0 %v296
    %323 = vmatprep.subr.mxu0 0.0
    %324 = vmatpush1.msra.mxu0 %v295
    %325 = vmatprep.subr.mxu0 0.0
    %326 = vmatpush1.msra.mxu0 %v294
    %327 = vmatprep.subr.mxu0 0.0
    %328 = vmatpush1.msra.mxu0 %v293
    %329 = vmatprep.subr.mxu0 0.0
    %330 = vmatpush1.msra.mxu0 %v292
    %331 = vmatprep.subr.mxu0 0.0
    %332 = vmatpush1.msra.mxu0 %v291
    %333 = vmatprep.subr.mxu0 0.0
    %334 = vmatpush1.msra.mxu0 %v290
    %335 = vmatprep.subr.mxu0 0.0
    %336 = vmatpush1.msra.mxu0 %v289
    %337 = vmatprep.subr.mxu0 0.0
    %338 = vmatpush2.msra.mxu0 0.0
    %339 = vmatprep.subr.mxu0 0.0
    %340 = vmatpush2.msra.mxu0 0.0
    %341 = vmatprep.subr.mxu0 0.0
    %342 = vmatpush2.msra.mxu0 0.0
    %343 = vmatprep.subr.mxu0 0.0
    %344 = vmatpush2.msra.mxu0 0.0
    %345 = vmatprep.subr.mxu0 0.0
    %346 = vmatpush2.msra.mxu0 0.0
    %347 = vmatprep.subr.mxu0 0.0
    %348 = vmatpush2.msra.mxu0 0.0
    %349 = vmatprep.subr.mxu0 0.0
    %350 = vmatpush2.msra.mxu0 0.0
    %351 = vmatprep.subr.mxu0 0.0
    %352 = vmatpush2.msra.mxu0 0.0
    %353 = vmatprep.subr.mxu0 0.0
    %354 = vmatpush2.msra.mxu0 0.0
    %355 = vmatprep.subr.mxu0 0.0
    %356 = vmatpush2.msra.mxu0 0.0
    %357 = vmatprep.subr.mxu0 0.0
    %358 = vmatpush2.msra.mxu0 0.0
    %359 = vmatprep.subr.mxu0 0.0
    %360 = vmatpush2.msra.mxu0 0.0
    %361 = vmatprep.subr.mxu0 0.0
    %362 = vmatpush2.msra.mxu0 0.0
    %363 = vmatprep.subr.mxu0 0.0
    %364 = vmatpush2.msra.mxu0 0.0
    %365 = vmatprep.subr.mxu0 0.0
    %366 = vmatpush2.msra.mxu0 0.0
    %367 = vmatprep.subr.mxu0 0.0
    %368 = vmatpush2.msra.mxu0 0.0
    %369 = vmatprep.mubr.f32.mxu0 0.0
    %370 = vmatmul.mubr.f32.gmra.mxu0 %v287
    %v371 = vpop.f32.mrf.mxu0
    %v372 = vadd.f32 0.0, %v371
    %v373 = vpop.f32.mrf.mxu0
    %374 = vdwg.mxu0
    %v375 = vadd.f32 %v288, %v372
    %376 = vst [vmem:[#allocation2] sm:$0xff] %v375
    %v377 = vtanh.pop %v375
    %s378 = scalar_lea.vmem [#allocation2], 8
    %v379 = vld [vmem:[%s378] sm:$0xff]
    %v380 = vld [vmem:[#allocation8] sm:$0xff]
    %v381 = vld [vmem:[#allocation8 + $0x8] sm:$0xff]
    %v382 = vld [vmem:[#allocation8 + $0x10] sm:$0xff]
    %v383 = vld [vmem:[#allocation8 + $0x18] sm:$0xff]
    %v384 = vld [vmem:[#allocation8 + $0x20] sm:$0xff]
    %v385 = vld [vmem:[#allocation8 + $0x28] sm:$0xff]
    %v386 = vld [vmem:[#allocation8 + $0x30] sm:$0xff]
    %v387 = vld [vmem:[#allocation8 + $0x38] sm:$0xff]
    %v388 = vld [vmem:[#allocation8 + $0x40] sm:$0xff]
    %v389 = vld [vmem:[#allocation8 + $0x48] sm:$0xff]
    %v390 = vld [vmem:[#allocation8 + $0x50] sm:$0xff]
    %v391 = vld [vmem:[#allocation8 + $0x58] sm:$0xff]
    %v392 = vld [vmem:[#allocation8 + $0x60] sm:$0xff]
    %v393 = vld [vmem:[#allocation8 + $0x68] sm:$0xff]
    %v394 = vld [vmem:[#allocation8 + $0x70] sm:$0xff]
    %v395 = vld [vmem:[#allocation8 + $0x78] sm:$0xff]
    %396 = vmatprep.subr.mxu0 0.0
    %397 = vmatpush1.msra.mxu0 %v395
    %398 = vmatprep.subr.mxu0 0.0
    %399 = vmatpush1.msra.mxu0 %v394
    %400 = vmatprep.subr.mxu0 0.0
    %401 = vmatpush1.msra.mxu0 %v393
    %402 = vmatprep.subr.mxu0 0.0
    %403 = vmatpush1.msra.mxu0 %v392
    %404 = vmatprep.subr.mxu0 0.0
    %405 = vmatpush1.msra.mxu0 %v391
    %406 = vmatprep.subr.mxu0 0.0
    %407 = vmatpush1.msra.mxu0 %v390
    %408 = vmatprep.subr.mxu0 0.0
    %409 = vmatpush1.msra.mxu0 %v389
    %410 = vmatprep.subr.mxu0 0.0
    %411 = vmatpush1.msra.mxu0 %v388
    %412 = vmatprep.subr.mxu0 0.0
    %413 = vmatpush1.msra.mxu0 %v387
    %414 = vmatprep.subr.mxu0 0.0
    %415 = vmatpush1.msra.mxu0 %v386
    %416 = vmatprep.subr.mxu0 0.0
    %417 = vmatpush1.msra.mxu0 %v385
    %418 = vmatprep.subr.mxu0 0.0
    %419 = vmatpush1.msra.mxu0 %v384
    %420 = vmatprep.subr.mxu0 0.0
    %421 = vmatpush1.msra.mxu0 %v383
    %422 = vmatprep.subr.mxu0 0.0
    %423 = vmatpush1.msra.mxu0 %v382
    %424 = vmatprep.subr.mxu0 0.0
    %425 = vmatpush1.msra.mxu0 %v381
    %426 = vmatprep.subr.mxu0 0.0
    %427 = vmatpush1.msra.mxu0 %v380
    %428 = vmatprep.subr.mxu0 0.0
    %429 = vmatpush2.msra.mxu0 0.0
    %430 = vmatprep.subr.mxu0 0.0
    %431 = vmatpush2.msra.mxu0 0.0
    %432 = vmatprep.subr.mxu0 0.0
    %433 = vmatpush2.msra.mxu0 0.0
    %434 = vmatprep.subr.mxu0 0.0
    %435 = vmatpush2.msra.mxu0 0.0
    %436 = vmatprep.subr.mxu0 0.0
    %437 = vmatpush2.msra.mxu0 0.0
    %438 = vmatprep.subr.mxu0 0.0
    %439 = vmatpush2.msra.mxu0 0.0
    %440 = vmatprep.subr.mxu0 0.0
    %441 = vmatpush2.msra.mxu0 0.0
    %442 = vmatprep.subr.mxu0 0.0
    %443 = vmatpush2.msra.mxu0 0.0
    %444 = vmatprep.subr.mxu0 0.0
    %445 = vmatpush2.msra.mxu0 0.0
    %446 = vmatprep.subr.mxu0 0.0
    %447 = vmatpush2.msra.mxu0 0.0
    %448 = vmatprep.subr.mxu0 0.0
    %449 = vmatpush2.msra.mxu0 0.0
    %450 = vmatprep.subr.mxu0 0.0
    %451 = vmatpush2.msra.mxu0 0.0
    %452 = vmatprep.subr.mxu0 0.0
    %453 = vmatpush2.msra.mxu0 0.0
    %454 = vmatprep.subr.mxu0 0.0
    %455 = vmatpush2.msra.mxu0 0.0
    %456 = vmatprep.subr.mxu0 0.0
    %457 = vmatpush2.msra.mxu0 0.0
    %458 = vmatprep.subr.mxu0 0.0
    %459 = vmatpush2.msra.mxu0 0.0
    %460 = vmatprep.mubr.f32.mxu0 0.0
    %461 = vmatmul.mubr.f32.gmra.mxu0 %v377
    %v462 = vpop.f32.mrf.mxu0
    %v463 = vadd.f32 0.0, %v462
    %v464 = vpop.f32.mrf.mxu0
    %465 = vdwg.mxu0
    %v466 = vadd.f32 %v379, %v463
    %467 = vst [vmem:[%s378] sm:$0xff] %v466
    %v468 = vtanh.pop %v466
    %s469 = scalar_lea.vmem [#allocation2], 16
    %v470 = vld [vmem:[%s469] sm:$0xff]
    %v471 = vld [vmem:[#allocation8] sm:$0xff]
    %v472 = vld [vmem:[#allocation8 + $0x8] sm:$0xff]
    %v473 = vld [vmem:[#allocation8 + $0x10] sm:$0xff]
    %v474 = vld [vmem:[#allocation8 + $0x18] sm:$0xff]
    %v475 = vld [vmem:[#allocation8 + $0x20] sm:$0xff]
    %v476 = vld [vmem:[#allocation8 + $0x28] sm:$0xff]
    %v477 = vld [vmem:[#allocation8 + $0x30] sm:$0xff]
    %v478 = vld [vmem:[#allocation8 + $0x38] sm:$0xff]
    %v479 = vld [vmem:[#allocation8 + $0x40] sm:$0xff]
    %v480 = vld [vmem:[#allocation8 + $0x48] sm:$0xff]
    %v481 = vld [vmem:[#allocation8 + $0x50] sm:$0xff]
    %v482 = vld [vmem:[#allocation8 + $0x58] sm:$0xff]
    %v483 = vld [vmem:[#allocation8 + $0x60] sm:$0xff]
    %v484 = vld [vmem:[#allocation8 + $0x68] sm:$0xff]
    %v485 = vld [vmem:[#allocation8 + $0x70] sm:$0xff]
    %v486 = vld [vmem:[#allocation8 + $0x78] sm:$0xff]
    %487 = vmatprep.subr.mxu0 0.0
    %488 = vmatpush1.msra.mxu0 %v486
    %489 = vmatprep.subr.mxu0 0.0
    %490 = vmatpush1.msra.mxu0 %v485
    %491 = vmatprep.subr.mxu0 0.0
    %492 = vmatpush1.msra.mxu0 %v484
    %493 = vmatprep.subr.mxu0 0.0
    %494 = vmatpush1.msra.mxu0 %v483
    %495 = vmatprep.subr.mxu0 0.0
    %496 = vmatpush1.msra.mxu0 %v482
    %497 = vmatprep.subr.mxu0 0.0
    %498 = vmatpush1.msra.mxu0 %v481
    %499 = vmatprep.subr.mxu0 0.0
    %500 = vmatpush1.msra.mxu0 %v480
    %501 = vmatprep.subr.mxu0 0.0
    %502 = vmatpush1.msra.mxu0 %v479
    %503 = vmatprep.subr.mxu0 0.0
    %504 = vmatpush1.msra.mxu0 %v478
    %505 = vmatprep.subr.mxu0 0.0
    %506 = vmatpush1.msra.mxu0 %v477
    %507 = vmatprep.subr.mxu0 0.0
    %508 = vmatpush1.msra.mxu0 %v476
    %509 = vmatprep.subr.mxu0 0.0
    %510 = vmatpush1.msra.mxu0 %v475
    %511 = vmatprep.subr.mxu0 0.0
    %512 = vmatpush1.msra.mxu0 %v474
    %513 = vmatprep.subr.mxu0 0.0
    %514 = vmatpush1.msra.mxu0 %v473
    %515 = vmatprep.subr.mxu0 0.0
    %516 = vmatpush1.msra.mxu0 %v472
    %517 = vmatprep.subr.mxu0 0.0
    %518 = vmatpush1.msra.mxu0 %v471
    %519 = vmatprep.subr.mxu0 0.0
    %520 = vmatpush2.msra.mxu0 0.0
    %521 = vmatprep.subr.mxu0 0.0
    %522 = vmatpush2.msra.mxu0 0.0
    %523 = vmatprep.subr.mxu0 0.0
    %524 = vmatpush2.msra.mxu0 0.0
    %525 = vmatprep.subr.mxu0 0.0
    %526 = vmatpush2.msra.mxu0 0.0
    %527 = vmatprep.subr.mxu0 0.0
    %528 = vmatpush2.msra.mxu0 0.0
    %529 = vmatprep.subr.mxu0 0.0
    %530 = vmatpush2.msra.mxu0 0.0
    %531 = vmatprep.subr.mxu0 0.0
    %532 = vmatpush2.msra.mxu0 0.0
    %533 = vmatprep.subr.mxu0 0.0
    %534 = vmatpush2.msra.mxu0 0.0
    %535 = vmatprep.subr.mxu0 0.0
    %536 = vmatpush2.msra.mxu0 0.0
    %537 = vmatprep.subr.mxu0 0.0
    %538 = vmatpush2.msra.mxu0 0.0
    %539 = vmatprep.subr.mxu0 0.0
    %540 = vmatpush2.msra.mxu0 0.0
    %541 = vmatprep.subr.mxu0 0.0
    %542 = vmatpush2.msra.mxu0 0.0
    %543 = vmatprep.subr.mxu0 0.0
    %544 = vmatpush2.msra.mxu0 0.0
    %545 = vmatprep.subr.mxu0 0.0
    %546 = vmatpush2.msra.mxu0 0.0
    %547 = vmatprep.subr.mxu0 0.0
    %548 = vmatpush2.msra.mxu0 0.0
    %549 = vmatprep.subr.mxu0 0.0
    %550 = vmatpush2.msra.mxu0 0.0
    %551 = vmatprep.mubr.f32.mxu0 0.0
    %552 = vmatmul.mubr.f32.gmra.mxu0 %v468
    %v553 = vpop.f32.mrf.mxu0
    %v554 = vadd.f32 0.0, %v553
    %v555 = vpop.f32.mrf.mxu0
    %556 = vdwg.mxu0
    %v557 = vadd.f32 %v470, %v554
    %558 = vst [vmem:[%s469] sm:$0xff] %v557
    %v559 = vtanh.pop %v557
    %s560 = scalar_lea.vmem [#allocation2], 24
    %v561 = vld [vmem:[%s560] sm:$0xff]
    %v562 = vld [vmem:[#allocation8] sm:$0xff]
    %v563 = vld [vmem:[#allocation8 + $0x8] sm:$0xff]
    %v564 = vld [vmem:[#allocation8 + $0x10] sm:$0xff]
    %v565 = vld [vmem:[#allocation8 + $0x18] sm:$0xff]
    %v566 = vld [vmem:[#allocation8 + $0x20] sm:$0xff]
    %v567 = vld [vmem:[#allocation8 + $0x28] sm:$0xff]
    %v568 = vld [vmem:[#allocation8 + $0x30] sm:$0xff]
    %v569 = vld [vmem:[#allocation8 + $0x38] sm:$0xff]
    %v570 = vld [vmem:[#allocation8 + $0x40] sm:$0xff]
    %v571 = vld [vmem:[#allocation8 + $0x48] sm:$0xff]
    %v572 = vld [vmem:[#allocation8 + $0x50] sm:$0xff]
    %v573 = vld [vmem:[#allocation8 + $0x58] sm:$0xff]
    %v574 = vld [vmem:[#allocation8 + $0x60] sm:$0xff]
    %v575 = vld [vmem:[#allocation8 + $0x68] sm:$0xff]
    %v576 = vld [vmem:[#allocation8 + $0x70] sm:$0xff]
    %v577 = vld [vmem:[#allocation8 + $0x78] sm:$0xff]
    %578 = vmatprep.subr.mxu0 0.0
    %579 = vmatpush1.msra.mxu0 %v577
    %580 = vmatprep.subr.mxu0 0.0
    %581 = vmatpush1.msra.mxu0 %v576
    %582 = vmatprep.subr.mxu0 0.0
    %583 = vmatpush1.msra.mxu0 %v575
    %584 = vmatprep.subr.mxu0 0.0
    %585 = vmatpush1.msra.mxu0 %v574
    %586 = vmatprep.subr.mxu0 0.0
    %587 = vmatpush1.msra.mxu0 %v573
    %588 = vmatprep.subr.mxu0 0.0
    %589 = vmatpush1.msra.mxu0 %v572
    %590 = vmatprep.subr.mxu0 0.0
    %591 = vmatpush1.msra.mxu0 %v571
    %592 = vmatprep.subr.mxu0 0.0
    %593 = vmatpush1.msra.mxu0 %v570
    %594 = vmatprep.subr.mxu0 0.0
    %595 = vmatpush1.msra.mxu0 %v569
    %596 = vmatprep.subr.mxu0 0.0
    %597 = vmatpush1.msra.mxu0 %v568
    %598 = vmatprep.subr.mxu0 0.0
    %599 = vmatpush1.msra.mxu0 %v567
    %600 = vmatprep.subr.mxu0 0.0
    %601 = vmatpush1.msra.mxu0 %v566
    %602 = vmatprep.subr.mxu0 0.0
    %603 = vmatpush1.msra.mxu0 %v565
    %604 = vmatprep.subr.mxu0 0.0
    %605 = vmatpush1.msra.mxu0 %v564
    %606 = vmatprep.subr.mxu0 0.0
    %607 = vmatpush1.msra.mxu0 %v563
    %608 = vmatprep.subr.mxu0 0.0
    %609 = vmatpush1.msra.mxu0 %v562
    %610 = vmatprep.subr.mxu0 0.0
    %611 = vmatpush2.msra.mxu0 0.0
    %612 = vmatprep.subr.mxu0 0.0
    %613 = vmatpush2.msra.mxu0 0.0
    %614 = vmatprep.subr.mxu0 0.0
    %615 = vmatpush2.msra.mxu0 0.0
    %616 = vmatprep.subr.mxu0 0.0
    %617 = vmatpush2.msra.mxu0 0.0
    %618 = vmatprep.subr.mxu0 0.0
    %619 = vmatpush2.msra.mxu0 0.0
    %620 = vmatprep.subr.mxu0 0.0
    %621 = vmatpush2.msra.mxu0 0.0
    %622 = vmatprep.subr.mxu0 0.0
    %623 = vmatpush2.msra.mxu0 0.0
    %624 = vmatprep.subr.mxu0 0.0
    %625 = vmatpush2.msra.mxu0 0.0
    %626 = vmatprep.subr.mxu0 0.0
    %627 = vmatpush2.msra.mxu0 0.0
    %628 = vmatprep.subr.mxu0 0.0
    %629 = vmatpush2.msra.mxu0 0.0
    %630 = vmatprep.subr.mxu0 0.0
    %631 = vmatpush2.msra.mxu0 0.0
    %632 = vmatprep.subr.mxu0 0.0
    %633 = vmatpush2.msra.mxu0 0.0
    %634 = vmatprep.subr.mxu0 0.0
    %635 = vmatpush2.msra.mxu0 0.0
    %636 = vmatprep.subr.mxu0 0.0
    %637 = vmatpush2.msra.mxu0 0.0
    %638 = vmatprep.subr.mxu0 0.0
    %639 = vmatpush2.msra.mxu0 0.0
    %640 = vmatprep.subr.mxu0 0.0
    %641 = vmatpush2.msra.mxu0 0.0
    %642 = vmatprep.mubr.f32.mxu0 0.0
    %643 = vmatmul.mubr.f32.gmra.mxu0 %v559
    %v644 = vpop.f32.mrf.mxu0
    %v645 = vadd.f32 0.0, %v644
    %v646 = vpop.f32.mrf.mxu0
    %647 = vdwg.mxu0
    %v648 = vadd.f32 %v561, %v645
    %649 = vst [vmem:[%s560] sm:$0xff] %v648
    %v650 = vtanh.pop %v648
    %s651 = scalar_lea.vmem [#allocation2], 32
    %v652 = vld [vmem:[%s651] sm:$0xff]
    %v653 = vld [vmem:[#allocation8] sm:$0xff]
    %v654 = vld [vmem:[#allocation8 + $0x8] sm:$0xff]
    %v655 = vld [vmem:[#allocation8 + $0x10] sm:$0xff]
    %v656 = vld [vmem:[#allocation8 + $0x18] sm:$0xff]
    %v657 = vld [vmem:[#allocation8 + $0x20] sm:$0xff]
    %v658 = vld [vmem:[#allocation8 + $0x28] sm:$0xff]
    %v659 = vld [vmem:[#allocation8 + $0x30] sm:$0xff]
    %v660 = vld [vmem:[#allocation8 + $0x38] sm:$0xff]
    %v661 = vld [vmem:[#allocation8 + $0x40] sm:$0xff]
    %v662 = vld [vmem:[#allocation8 + $0x48] sm:$0xff]
    %v663 = vld [vmem:[#allocation8 + $0x50] sm:$0xff]
    %v664 = vld [vmem:[#allocation8 + $0x58] sm:$0xff]
    %v665 = vld [vmem:[#allocation8 + $0x60] sm:$0xff]
    %v666 = vld [vmem:[#allocation8 + $0x68] sm:$0xff]
    %v667 = vld [vmem:[#allocation8 + $0x70] sm:$0xff]
    %v668 = vld [vmem:[#allocation8 + $0x78] sm:$0xff]
    %669 = vmatprep.subr.mxu0 0.0
    %670 = vmatpush1.msra.mxu0 %v668
    %671 = vmatprep.subr.mxu0 0.0
    %672 = vmatpush1.msra.mxu0 %v667
    %673 = vmatprep.subr.mxu0 0.0
    %674 = vmatpush1.msra.mxu0 %v666
    %675 = vmatprep.subr.mxu0 0.0
    %676 = vmatpush1.msra.mxu0 %v665
    %677 = vmatprep.subr.mxu0 0.0
    %678 = vmatpush1.msra.mxu0 %v664
    %679 = vmatprep.subr.mxu0 0.0
    %680 = vmatpush1.msra.mxu0 %v663
    %681 = vmatprep.subr.mxu0 0.0
    %682 = vmatpush1.msra.mxu0 %v662
    %683 = vmatprep.subr.mxu0 0.0
    %684 = vmatpush1.msra.mxu0 %v661
    %685 = vmatprep.subr.mxu0 0.0
    %686 = vmatpush1.msra.mxu0 %v660
    %687 = vmatprep.subr.mxu0 0.0
    %688 = vmatpush1.msra.mxu0 %v659
    %689 = vmatprep.subr.mxu0 0.0
    %690 = vmatpush1.msra.mxu0 %v658
    %691 = vmatprep.subr.mxu0 0.0
    %692 = vmatpush1.msra.mxu0 %v657
    %693 = vmatprep.subr.mxu0 0.0
    %694 = vmatpush1.msra.mxu0 %v656
    %695 = vmatprep.subr.mxu0 0.0
    %696 = vmatpush1.msra.mxu0 %v655
    %697 = vmatprep.subr.mxu0 0.0
    %698 = vmatpush1.msra.mxu0 %v654
    %699 = vmatprep.subr.mxu0 0.0
    %700 = vmatpush1.msra.mxu0 %v653
    %701 = vmatprep.subr.mxu0 0.0
    %702 = vmatpush2.msra.mxu0 0.0
    %703 = vmatprep.subr.mxu0 0.0
    %704 = vmatpush2.msra.mxu0 0.0
    %705 = vmatprep.subr.mxu0 0.0
    %706 = vmatpush2.msra.mxu0 0.0
    %707 = vmatprep.subr.mxu0 0.0
    %708 = vmatpush2.msra.mxu0 0.0
    %709 = vmatprep.subr.mxu0 0.0
    %710 = vmatpush2.msra.mxu0 0.0
    %711 = vmatprep.subr.mxu0 0.0
    %712 = vmatpush2.msra.mxu0 0.0
    %713 = vmatprep.subr.mxu0 0.0
    %714 = vmatpush2.msra.mxu0 0.0
    %715 = vmatprep.subr.mxu0 0.0
    %716 = vmatpush2.msra.mxu0 0.0
    %717 = vmatprep.subr.mxu0 0.0
    %718 = vmatpush2.msra.mxu0 0.0
    %719 = vmatprep.subr.mxu0 0.0
    %720 = vmatpush2.msra.mxu0 0.0
    %721 = vmatprep.subr.mxu0 0.0
    %722 = vmatpush2.msra.mxu0 0.0
    %723 = vmatprep.subr.mxu0 0.0
    %724 = vmatpush2.msra.mxu0 0.0
    %725 = vmatprep.subr.mxu0 0.0
    %726 = vmatpush2.msra.mxu0 0.0
    %727 = vmatprep.subr.mxu0 0.0
    %728 = vmatpush2.msra.mxu0 0.0
    %729 = vmatprep.subr.mxu0 0.0
    %730 = vmatpush2.msra.mxu0 0.0
    %731 = vmatprep.subr.mxu0 0.0
    %732 = vmatpush2.msra.mxu0 0.0
    %733 = vmatprep.mubr.f32.mxu0 0.0
    %734 = vmatmul.mubr.f32.gmra.mxu0 %v650
    %v735 = vpop.f32.mrf.mxu0
    %v736 = vadd.f32 0.0, %v735
    %v737 = vpop.f32.mrf.mxu0
    %738 = vdwg.mxu0
    %v739 = vadd.f32 %v652, %v736
    %740 = vst [vmem:[%s651] sm:$0xff] %v739
    %v741 = vtanh.pop %v739
    %s742 = scalar_lea.vmem [#allocation2], 40
    %v743 = vld [vmem:[%s742] sm:$0xff]
    %v744 = vld [vmem:[#allocation8] sm:$0xff]
    %v745 = vld [vmem:[#allocation8 + $0x8] sm:$0xff]
    %v746 = vld [vmem:[#allocation8 + $0x10] sm:$0xff]
    %v747 = vld [vmem:[#allocation8 + $0x18] sm:$0xff]
    %v748 = vld [vmem:[#allocation8 + $0x20] sm:$0xff]
    %v749 = vld [vmem:[#allocation8 + $0x28] sm:$0xff]
    %v750 = vld [vmem:[#allocation8 + $0x30] sm:$0xff]
    %v751 = vld [vmem:[#allocation8 + $0x38] sm:$0xff]
    %v752 = vld [vmem:[#allocation8 + $0x40] sm:$0xff]
    %v753 = vld [vmem:[#allocation8 + $0x48] sm:$0xff]
    %v754 = vld [vmem:[#allocation8 + $0x50] sm:$0xff]
    %v755 = vld [vmem:[#allocation8 + $0x58] sm:$0xff]
    %v756 = vld [vmem:[#allocation8 + $0x60] sm:$0xff]
    %v757 = vld [vmem:[#allocation8 + $0x68] sm:$0xff]
    %v758 = vld [vmem:[#allocation8 + $0x70] sm:$0xff]
    %v759 = vld [vmem:[#allocation8 + $0x78] sm:$0xff]
    %760 = vmatprep.subr.mxu0 0.0
    %761 = vmatpush1.msra.mxu0 %v759
    %762 = vmatprep.subr.mxu0 0.0
    %763 = vmatpush1.msra.mxu0 %v758
    %764 = vmatprep.subr.mxu0 0.0
    %765 = vmatpush1.msra.mxu0 %v757
    %766 = vmatprep.subr.mxu0 0.0
    %767 = vmatpush1.msra.mxu0 %v756
    %768 = vmatprep.subr.mxu0 0.0
    %769 = vmatpush1.msra.mxu0 %v755
    %770 = vmatprep.subr.mxu0 0.0
    %771 = vmatpush1.msra.mxu0 %v754
    %772 = vmatprep.subr.mxu0 0.0
    %773 = vmatpush1.msra.mxu0 %v753
    %774 = vmatprep.subr.mxu0 0.0
    %775 = vmatpush1.msra.mxu0 %v752
    %776 = vmatprep.subr.mxu0 0.0
    %777 = vmatpush1.msra.mxu0 %v751
    %778 = vmatprep.subr.mxu0 0.0
    %779 = vmatpush1.msra.mxu0 %v750
    %780 = vmatprep.subr.mxu0 0.0
    %781 = vmatpush1.msra.mxu0 %v749
    %782 = vmatprep.subr.mxu0 0.0
    %783 = vmatpush1.msra.mxu0 %v748
    %784 = vmatprep.subr.mxu0 0.0
    %785 = vmatpush1.msra.mxu0 %v747
    %786 = vmatprep.subr.mxu0 0.0
    %787 = vmatpush1.msra.mxu0 %v746
    %788 = vmatprep.subr.mxu0 0.0
    %789 = vmatpush1.msra.mxu0 %v745
    %790 = vmatprep.subr.mxu0 0.0
    %791 = vmatpush1.msra.mxu0 %v744
    %792 = vmatprep.subr.mxu0 0.0
    %793 = vmatpush2.msra.mxu0 0.0
    %794 = vmatprep.subr.mxu0 0.0
    %795 = vmatpush2.msra.mxu0 0.0
    %796 = vmatprep.subr.mxu0 0.0
    %797 = vmatpush2.msra.mxu0 0.0
    %798 = vmatprep.subr.mxu0 0.0
    %799 = vmatpush2.msra.mxu0 0.0
    %800 = vmatprep.subr.mxu0 0.0
    %801 = vmatpush2.msra.mxu0 0.0
    %802 = vmatprep.subr.mxu0 0.0
    %803 = vmatpush2.msra.mxu0 0.0
    %804 = vmatprep.subr.mxu0 0.0
    %805 = vmatpush2.msra.mxu0 0.0
    %806 = vmatprep.subr.mxu0 0.0
    %807 = vmatpush2.msra.mxu0 0.0
    %808 = vmatprep.subr.mxu0 0.0
    %809 = vmatpush2.msra.mxu0 0.0
    %810 = vmatprep.subr.mxu0 0.0
    %811 = vmatpush2.msra.mxu0 0.0
    %812 = vmatprep.subr.mxu0 0.0
    %813 = vmatpush2.msra.mxu0 0.0
    %814 = vmatprep.subr.mxu0 0.0
    %815 = vmatpush2.msra.mxu0 0.0
    %816 = vmatprep.subr.mxu0 0.0
    %817 = vmatpush2.msra.mxu0 0.0
    %818 = vmatprep.subr.mxu0 0.0
    %819 = vmatpush2.msra.mxu0 0.0
    %820 = vmatprep.subr.mxu0 0.0
    %821 = vmatpush2.msra.mxu0 0.0
    %822 = vmatprep.subr.mxu0 0.0
    %823 = vmatpush2.msra.mxu0 0.0
    %824 = vmatprep.mubr.f32.mxu0 0.0
    %825 = vmatmul.mubr.f32.gmra.mxu0 %v741
    %v826 = vpop.f32.mrf.mxu0
    %v827 = vadd.f32 0.0, %v826
    %v828 = vpop.f32.mrf.mxu0
    %829 = vdwg.mxu0
    %v830 = vadd.f32 %v743, %v827
    %831 = vst [vmem:[%s742] sm:$0xff] %v830
    %v832 = vtanh.pop %v830
    %s833 = scalar_lea.vmem [#allocation2], 48
    %v834 = vld [vmem:[%s833] sm:$0xff]
    %v835 = vld [vmem:[#allocation8] sm:$0xff]
    %v836 = vld [vmem:[#allocation8 + $0x8] sm:$0xff]
    %v837 = vld [vmem:[#allocation8 + $0x10] sm:$0xff]
    %v838 = vld [vmem:[#allocation8 + $0x18] sm:$0xff]
    %v839 = vld [vmem:[#allocation8 + $0x20] sm:$0xff]
    %v840 = vld [vmem:[#allocation8 + $0x28] sm:$0xff]
    %v841 = vld [vmem:[#allocation8 + $0x30] sm:$0xff]
    %v842 = vld [vmem:[#allocation8 + $0x38] sm:$0xff]
    %v843 = vld [vmem:[#allocation8 + $0x40] sm:$0xff]
    %v844 = vld [vmem:[#allocation8 + $0x48] sm:$0xff]
    %v845 = vld [vmem:[#allocation8 + $0x50] sm:$0xff]
    %v846 = vld [vmem:[#allocation8 + $0x58] sm:$0xff]
    %v847 = vld [vmem:[#allocation8 + $0x60] sm:$0xff]
    %v848 = vld [vmem:[#allocation8 + $0x68] sm:$0xff]
    %v849 = vld [vmem:[#allocation8 + $0x70] sm:$0xff]
    %v850 = vld [vmem:[#allocation8 + $0x78] sm:$0xff]
    %851 = vmatprep.subr.mxu0 0.0
    %852 = vmatpush1.msra.mxu0 %v850
    %853 = vmatprep.subr.mxu0 0.0
    %854 = vmatpush1.msra.mxu0 %v849
    %855 = vmatprep.subr.mxu0 0.0
    %856 = vmatpush1.msra.mxu0 %v848
    %857 = vmatprep.subr.mxu0 0.0
    %858 = vmatpush1.msra.mxu0 %v847
    %859 = vmatprep.subr.mxu0 0.0
    %860 = vmatpush1.msra.mxu0 %v846
    %861 = vmatprep.subr.mxu0 0.0
    %862 = vmatpush1.msra.mxu0 %v845
    %863 = vmatprep.subr.mxu0 0.0
    %864 = vmatpush1.msra.mxu0 %v844
    %865 = vmatprep.subr.mxu0 0.0
    %866 = vmatpush1.msra.mxu0 %v843
    %867 = vmatprep.subr.mxu0 0.0
    %868 = vmatpush1.msra.mxu0 %v842
    %869 = vmatprep.subr.mxu0 0.0
    %870 = vmatpush1.msra.mxu0 %v841
    %871 = vmatprep.subr.mxu0 0.0
    %872 = vmatpush1.msra.mxu0 %v840
    %873 = vmatprep.subr.mxu0 0.0
    %874 = vmatpush1.msra.mxu0 %v839
    %875 = vmatprep.subr.mxu0 0.0
    %876 = vmatpush1.msra.mxu0 %v838
    %877 = vmatprep.subr.mxu0 0.0
    %878 = vmatpush1.msra.mxu0 %v837
    %879 = vmatprep.subr.mxu0 0.0
    %880 = vmatpush1.msra.mxu0 %v836
    %881 = vmatprep.subr.mxu0 0.0
    %882 = vmatpush1.msra.mxu0 %v835
    %883 = vmatprep.subr.mxu0 0.0
    %884 = vmatpush2.msra.mxu0 0.0
    %885 = vmatprep.subr.mxu0 0.0
    %886 = vmatpush2.msra.mxu0 0.0
    %887 = vmatprep.subr.mxu0 0.0
    %888 = vmatpush2.msra.mxu0 0.0
    %889 = vmatprep.subr.mxu0 0.0
    %890 = vmatpush2.msra.mxu0 0.0
    %891 = vmatprep.subr.mxu0 0.0
    %892 = vmatpush2.msra.mxu0 0.0
    %893 = vmatprep.subr.mxu0 0.0
    %894 = vmatpush2.msra.mxu0 0.0
    %895 = vmatprep.subr.mxu0 0.0
    %896 = vmatpush2.msra.mxu0 0.0
    %897 = vmatprep.subr.mxu0 0.0
    %898 = vmatpush2.msra.mxu0 0.0
    %899 = vmatprep.subr.mxu0 0.0
    %900 = vmatpush2.msra.mxu0 0.0
    %901 = vmatprep.subr.mxu0 0.0
    %902 = vmatpush2.msra.mxu0 0.0
    %903 = vmatprep.subr.mxu0 0.0
    %904 = vmatpush2.msra.mxu0 0.0
    %905 = vmatprep.subr.mxu0 0.0
    %906 = vmatpush2.msra.mxu0 0.0
    %907 = vmatprep.subr.mxu0 0.0
    %908 = vmatpush2.msra.mxu0 0.0
    %909 = vmatprep.subr.mxu0 0.0
    %910 = vmatpush2.msra.mxu0 0.0
    %911 = vmatprep.subr.mxu0 0.0
    %912 = vmatpush2.msra.mxu0 0.0
    %913 = vmatprep.subr.mxu0 0.0
    %914 = vmatpush2.msra.mxu0 0.0
    %915 = vmatprep.mubr.f32.mxu0 0.0
    %916 = vmatmul.mubr.f32.gmra.mxu0 %v832
    %v917 = vpop.f32.mrf.mxu0
    %v918 = vadd.f32 0.0, %v917
    %v919 = vpop.f32.mrf.mxu0
    %920 = vdwg.mxu0
    %v921 = vadd.f32 %v834, %v918
    %922 = vst [vmem:[%s833] sm:$0xff] %v921
    %v923 = vtanh.pop %v921
    %s924 = scalar_lea.vmem [#allocation2], 56
    %v925 = vld [vmem:[%s924] sm:$0xff]
    %v926 = vld [vmem:[#allocation8] sm:$0xff]
    %v927 = vld [vmem:[#allocation8 + $0x8] sm:$0xff]
    %v928 = vld [vmem:[#allocation8 + $0x10] sm:$0xff]
    %v929 = vld [vmem:[#allocation8 + $0x18] sm:$0xff]
    %v930 = vld [vmem:[#allocation8 + $0x20] sm:$0xff]
    %v931 = vld [vmem:[#allocation8 + $0x28] sm:$0xff]
    %v932 = vld [vmem:[#allocation8 + $0x30] sm:$0xff]
    %v933 = vld [vmem:[#allocation8 + $0x38] sm:$0xff]
    %v934 = vld [vmem:[#allocation8 + $0x40] sm:$0xff]
    %v935 = vld [vmem:[#allocation8 + $0x48] sm:$0xff]
    %v936 = vld [vmem:[#allocation8 + $0x50] sm:$0xff]
    %v937 = vld [vmem:[#allocation8 + $0x58] sm:$0xff]
    %v938 = vld [vmem:[#allocation8 + $0x60] sm:$0xff]
    %v939 = vld [vmem:[#allocation8 + $0x68] sm:$0xff]
    %v940 = vld [vmem:[#allocation8 + $0x70] sm:$0xff]
    %v941 = vld [vmem:[#allocation8 + $0x78] sm:$0xff]
    %942 = vmatprep.subr.mxu0 0.0
    %943 = vmatpush1.msra.mxu0 %v941
    %944 = vmatprep.subr.mxu0 0.0
    %945 = vmatpush1.msra.mxu0 %v940
    %946 = vmatprep.subr.mxu0 0.0
    %947 = vmatpush1.msra.mxu0 %v939
    %948 = vmatprep.subr.mxu0 0.0
    %949 = vmatpush1.msra.mxu0 %v938
    %950 = vmatprep.subr.mxu0 0.0
    %951 = vmatpush1.msra.mxu0 %v937
    %952 = vmatprep.subr.mxu0 0.0
    %953 = vmatpush1.msra.mxu0 %v936
    %954 = vmatprep.subr.mxu0 0.0
    %955 = vmatpush1.msra.mxu0 %v935
    %956 = vmatprep.subr.mxu0 0.0
    %957 = vmatpush1.msra.mxu0 %v934
    %958 = vmatprep.subr.mxu0 0.0
    %959 = vmatpush1.msra.mxu0 %v933
    %960 = vmatprep.subr.mxu0 0.0
    %961 = vmatpush1.msra.mxu0 %v932
    %962 = vmatprep.subr.mxu0 0.0
    %963 = vmatpush1.msra.mxu0 %v931
    %964 = vmatprep.subr.mxu0 0.0
    %965 = vmatpush1.msra.mxu0 %v930
    %966 = vmatprep.subr.mxu0 0.0
    %967 = vmatpush1.msra.mxu0 %v929
    %968 = vmatprep.subr.mxu0 0.0
    %969 = vmatpush1.msra.mxu0 %v928
    %970 = vmatprep.subr.mxu0 0.0
    %971 = vmatpush1.msra.mxu0 %v927
    %972 = vmatprep.subr.mxu0 0.0
    %973 = vmatpush1.msra.mxu0 %v926
    %974 = vmatprep.subr.mxu0 0.0
    %975 = vmatpush2.msra.mxu0 0.0
    %976 = vmatprep.subr.mxu0 0.0
    %977 = vmatpush2.msra.mxu0 0.0
    %978 = vmatprep.subr.mxu0 0.0
    %979 = vmatpush2.msra.mxu0 0.0
    %980 = vmatprep.subr.mxu0 0.0
    %981 = vmatpush2.msra.mxu0 0.0
    %982 = vmatprep.subr.mxu0 0.0
    %983 = vmatpush2.msra.mxu0 0.0
    %984 = vmatprep.subr.mxu0 0.0
    %985 = vmatpush2.msra.mxu0 0.0
    %986 = vmatprep.subr.mxu0 0.0
    %987 = vmatpush2.msra.mxu0 0.0
    %988 = vmatprep.subr.mxu0 0.0
    %989 = vmatpush2.msra.mxu0 0.0
    %990 = vmatprep.subr.mxu0 0.0
    %991 = vmatpush2.msra.mxu0 0.0
    %992 = vmatprep.subr.mxu0 0.0
    %993 = vmatpush2.msra.mxu0 0.0
    %994 = vmatprep.subr.mxu0 0.0
    %995 = vmatpush2.msra.mxu0 0.0
    %996 = vmatprep.subr.mxu0 0.0
    %997 = vmatpush2.msra.mxu0 0.0
    %998 = vmatprep.subr.mxu0 0.0
    %999 = vmatpush2.msra.mxu0 0.0
    %1000 = vmatprep.subr.mxu0 0.0
    %1001 = vmatpush2.msra.mxu0 0.0
    %1002 = vmatprep.subr.mxu0 0.0
    %1003 = vmatpush2.msra.mxu0 0.0
    %1004 = vmatprep.subr.mxu0 0.0
    %1005 = vmatpush2.msra.mxu0 0.0
    %1006 = vmatprep.mubr.f32.mxu0 0.0
    %1007 = vmatmul.mubr.f32.gmra.mxu0 %v923
    %v1008 = vpop.f32.mrf.mxu0
    %v1009 = vadd.f32 0.0, %v1008
    %v1010 = vpop.f32.mrf.mxu0
    %1011 = vdwg.mxu0
    %v1012 = vadd.f32 %v925, %v1009
    %1013 = vst [vmem:[%s924] sm:$0xff] %v1012
    %v1014 = vtanh.pop %v1012
    %1015 = vst [vmem:[#allocation16] sm:$0xff] %v1014
    %v1016 = vld [vmem:[#allocation2] sm:$0xff]
    %v1017 = vld [vmem:[#allocation2 + $0x8] sm:$0xff]
    %v1018 = vld [vmem:[#allocation2 + $0x10] sm:$0xff]
    %v1019 = vld [vmem:[#allocation2 + $0x18] sm:$0xff]
    %v1020 = vld [vmem:[#allocation2 + $0x20] sm:$0xff]
    %v1021 = vld [vmem:[#allocation2 + $0x28] sm:$0xff]
    %v1022 = vld [vmem:[#allocation2 + $0x30] sm:$0xff]
    %v1023 = vld [vmem:[#allocation2 + $0x38] sm:$0xff]
    %v1024 = vld [vmem:[#allocation9] sm:$0xff]
    %v1025 = vld [vmem:[#allocation9 + $0x8] sm:$0xff]
    %v1026 = vld [vmem:[#allocation9 + $0x10] sm:$0xff]
    %v1027 = vld [vmem:[#allocation9 + $0x18] sm:$0xff]
    %v1028 = vld [vmem:[#allocation9 + $0x20] sm:$0xff]
    %v1029 = vld [vmem:[#allocation9 + $0x28] sm:$0xff]
    %v1030 = vld [vmem:[#allocation9 + $0x30] sm:$0xff]
    %v1031 = vld [vmem:[#allocation9 + $0x38] sm:$0xff]
    %v1032 = vld [vmem:[#allocation9 + $0x40] sm:$0xff]
    %v1033 = vld [vmem:[#allocation9 + $0x48] sm:$0xff]
    %v1034 = vld [vmem:[#allocation9 + $0x50] sm:$0xff]
    %v1035 = vld [vmem:[#allocation9 + $0x58] sm:$0xff]
    %v1036 = vld [vmem:[#allocation9 + $0x60] sm:$0xff]
    %v1037 = vld [vmem:[#allocation9 + $0x68] sm:$0xff]
    %v1038 = vld [vmem:[#allocation9 + $0x70] sm:$0xff]
    %v1039 = vld [vmem:[#allocation9 + $0x78] sm:$0xff]
    %v1040 = vld [vmem:[%s5] sm:$0x1]
    %v1042 = vlaneseq
    %v1043 = vshrl.u32 %v1042, 7
    %v1044 = vsub.s32 0, %v1043
    %v1045 = vrot.slane %v1040, %v1044
    %1047 = vmatprep.subr.mxu0 0.0
    %1048 = vmatpush1.msra.mxu0 %v1039
    %1049 = vmatprep.subr.mxu0 0.0
    %1050 = vmatpush1.msra.mxu0 %v1038
    %1051 = vmatprep.subr.mxu0 0.0
    %1052 = vmatpush1.msra.mxu0 %v1037
    %1053 = vmatprep.subr.mxu0 0.0
    %1054 = vmatpush1.msra.mxu0 %v1036
    %1055 = vmatprep.subr.mxu0 0.0
    %1056 = vmatpush1.msra.mxu0 %v1035
    %1057 = vmatprep.subr.mxu0 0.0
    %1058 = vmatpush1.msra.mxu0 %v1034
    %1059 = vmatprep.subr.mxu0 0.0
    %1060 = vmatpush1.msra.mxu0 %v1033
    %1061 = vmatprep.subr.mxu0 0.0
    %1062 = vmatpush1.msra.mxu0 %v1032
    %1063 = vmatprep.subr.mxu0 0.0
    %1064 = vmatpush1.msra.mxu0 %v1031
    %1065 = vmatprep.subr.mxu0 0.0
    %1066 = vmatpush1.msra.mxu0 %v1030
    %1067 = vmatprep.subr.mxu0 0.0
    %1068 = vmatpush1.msra.mxu0 %v1029
    %1069 = vmatprep.subr.mxu0 0.0
    %1070 = vmatpush1.msra.mxu0 %v1028
    %1071 = vmatprep.subr.mxu0 0.0
    %1072 = vmatpush1.msra.mxu0 %v1027
    %1073 = vmatprep.subr.mxu0 0.0
    %1074 = vmatpush1.msra.mxu0 %v1026
    %1075 = vmatprep.subr.mxu0 0.0
    %1076 = vmatpush1.msra.mxu0 %v1025
    %1077 = vmatprep.subr.mxu0 0.0
    %1078 = vmatpush1.msra.mxu0 %v1024
    %1079 = vmatprep.subr.mxu0 0.0
    %1080 = vmatpush2.msra.mxu0 0.0
    %1081 = vmatprep.subr.mxu0 0.0
    %1082 = vmatpush2.msra.mxu0 0.0
    %1083 = vmatprep.subr.mxu0 0.0
    %1084 = vmatpush2.msra.mxu0 0.0
    %1085 = vmatprep.subr.mxu0 0.0
    %1086 = vmatpush2.msra.mxu0 0.0
    %1087 = vmatprep.subr.mxu0 0.0
    %1088 = vmatpush2.msra.mxu0 0.0
    %1089 = vmatprep.subr.mxu0 0.0
    %1090 = vmatpush2.msra.mxu0 0.0
    %1091 = vmatprep.subr.mxu0 0.0
    %1092 = vmatpush2.msra.mxu0 0.0
    %1093 = vmatprep.subr.mxu0 0.0
    %1094 = vmatpush2.msra.mxu0 0.0
    %1095 = vmatprep.subr.mxu0 0.0
    %1096 = vmatpush2.msra.mxu0 0.0
    %1097 = vmatprep.subr.mxu0 0.0
    %1098 = vmatpush2.msra.mxu0 0.0
    %1099 = vmatprep.subr.mxu0 0.0
    %1100 = vmatpush2.msra.mxu0 0.0
    %1101 = vmatprep.subr.mxu0 0.0
    %1102 = vmatpush2.msra.mxu0 0.0
    %1103 = vmatprep.subr.mxu0 0.0
    %1104 = vmatpush2.msra.mxu0 0.0
    %1105 = vmatprep.subr.mxu0 0.0
    %1106 = vmatpush2.msra.mxu0 0.0
    %1107 = vmatprep.subr.mxu0 0.0
    %1108 = vmatpush2.msra.mxu0 0.0
    %1109 = vmatprep.subr.mxu0 0.0
    %1110 = vmatpush2.msra.mxu0 0.0
    %1111 = vmatprep.mubr.f32.mxu0 0.0
    %1112 = vmatmul.mubr.f32.gmra.mxu0 %v1016
    %v1113 = vpop.f32.mrf.mxu0
    %v1114 = vadd.f32 %v1045, %v1113
    %v1115 = vpop.f32.mrf.mxu0
    %1116 = vmatprep.mubr.f32.mxu0 0.0
    %1117 = vmatmul.mubr.f32.gmra.mxu0 %v1017
    %v1118 = vpop.f32.mrf.mxu0
    %v1119 = vadd.f32 %v1045, %v1118
    %v1120 = vpop.f32.mrf.mxu0
    %1121 = vmatprep.mubr.f32.mxu0 0.0
    %1122 = vmatmul.mubr.f32.gmra.mxu0 %v1018
    %v1123 = vpop.f32.mrf.mxu0
    %v1124 = vadd.f32 %v1045, %v1123
    %v1125 = vpop.f32.mrf.mxu0
    %1126 = vmatprep.mubr.f32.mxu0 0.0
    %1127 = vmatmul.mubr.f32.gmra.mxu0 %v1019
    %v1128 = vpop.f32.mrf.mxu0
    %v1129 = vadd.f32 %v1045, %v1128
    %v1130 = vpop.f32.mrf.mxu0
    %1131 = vmatprep.mubr.f32.mxu0 0.0
    %1132 = vmatmul.mubr.f32.gmra.mxu0 %v1020
    %v1133 = vpop.f32.mrf.mxu0
    %v1134 = vadd.f32 %v1045, %v1133
    %v1135 = vpop.f32.mrf.mxu0
    %1136 = vmatprep.mubr.f32.mxu0 0.0
    %1137 = vmatmul.mubr.f32.gmra.mxu0 %v1021
    %v1138 = vpop.f32.mrf.mxu0
    %v1139 = vadd.f32 %v1045, %v1138
    %v1140 = vpop.f32.mrf.mxu0
    %1141 = vmatprep.mubr.f32.mxu0 0.0
    %1142 = vmatmul.mubr.f32.gmra.mxu0 %v1022
    %v1143 = vpop.f32.mrf.mxu0
    %v1144 = vadd.f32 %v1045, %v1143
    %v1145 = vpop.f32.mrf.mxu0
    %1146 = vmatprep.mubr.f32.mxu0 0.0
    %1147 = vmatmul.mubr.f32.gmra.mxu0 %v1023
    %v1148 = vpop.f32.mrf.mxu0
    %v1149 = vadd.f32 %v1045, %v1148
    %v1150 = vpop.f32.mrf.mxu0
    %1151 = vdwg.mxu0
    %v1152 = vtanh.pop %v1114
    %v1153 = vtanh.pop %v1119
    %v1154 = vtanh.pop %v1124
    %v1155 = vtanh.pop %v1129
    %v1156 = vtanh.pop %v1134
    %v1157 = vtanh.pop %v1139
    %v1158 = vtanh.pop %v1144
    %v1159 = vtanh.pop %v1149
    %v1160 = vld [vmem:[#allocation11] sm:$0xff]
    %v1161 = vld [vmem:[#allocation11 + $0x8] sm:$0xff]
    %v1162 = vld [vmem:[#allocation11 + $0x10] sm:$0xff]
    %v1163 = vld [vmem:[#allocation11 + $0x18] sm:$0xff]
    %v1164 = vld [vmem:[#allocation11 + $0x20] sm:$0xff]
    %v1165 = vld [vmem:[#allocation11 + $0x28] sm:$0xff]
    %v1166 = vld [vmem:[#allocation11 + $0x30] sm:$0xff]
    %v1167 = vld [vmem:[#allocation11 + $0x38] sm:$0xff]
    %v1168 = vld [vmem:[#allocation11 + $0x40] sm:$0xff]
    %v1169 = vld [vmem:[#allocation11 + $0x48] sm:$0xff]
    %v1170 = vld [vmem:[#allocation11 + $0x50] sm:$0xff]
    %v1171 = vld [vmem:[#allocation11 + $0x58] sm:$0xff]
    %v1172 = vld [vmem:[#allocation11 + $0x60] sm:$0xff]
    %v1173 = vld [vmem:[#allocation11 + $0x68] sm:$0xff]
    %v1174 = vld [vmem:[#allocation11 + $0x70] sm:$0xff]
    %v1175 = vld [vmem:[#allocation11 + $0x78] sm:$0xff]
    %v1176 = vld [vmem:[%s9] sm:$0x1]
    %v1178 = vlaneseq
    %v1179 = vshrl.u32 %v1178, 7
    %v1180 = vsub.s32 0, %v1179
    %v1181 = vrot.slane %v1176, %v1180
    %1183 = vmatprep.subr.mxu0 0.0
    %1184 = vmatpush1.msra.mxu0 %v1175
    %1185 = vmatprep.subr.mxu0 0.0
    %1186 = vmatpush1.msra.mxu0 %v1174
    %1187 = vmatprep.subr.mxu0 0.0
    %1188 = vmatpush1.msra.mxu0 %v1173
    %1189 = vmatprep.subr.mxu0 0.0
    %1190 = vmatpush1.msra.mxu0 %v1172
    %1191 = vmatprep.subr.mxu0 0.0
    %1192 = vmatpush1.msra.mxu0 %v1171
    %1193 = vmatprep.subr.mxu0 0.0
    %1194 = vmatpush1.msra.mxu0 %v1170
    %1195 = vmatprep.subr.mxu0 0.0
    %1196 = vmatpush1.msra.mxu0 %v1169
    %1197 = vmatprep.subr.mxu0 0.0
    %1198 = vmatpush1.msra.mxu0 %v1168
    %1199 = vmatprep.subr.mxu0 0.0
    %1200 = vmatpush1.msra.mxu0 %v1167
    %1201 = vmatprep.subr.mxu0 0.0
    %1202 = vmatpush1.msra.mxu0 %v1166
    %1203 = vmatprep.subr.mxu0 0.0
    %1204 = vmatpush1.msra.mxu0 %v1165
    %1205 = vmatprep.subr.mxu0 0.0
    %1206 = vmatpush1.msra.mxu0 %v1164
    %1207 = vmatprep.subr.mxu0 0.0
    %1208 = vmatpush1.msra.mxu0 %v1163
    %1209 = vmatprep.subr.mxu0 0.0
    %1210 = vmatpush1.msra.mxu0 %v1162
    %1211 = vmatprep.subr.mxu0 0.0
    %1212 = vmatpush1.msra.mxu0 %v1161
    %1213 = vmatprep.subr.mxu0 0.0
    %1214 = vmatpush1.msra.mxu0 %v1160
    %1215 = vmatprep.subr.mxu0 0.0
    %1216 = vmatpush2.msra.mxu0 0.0
    %1217 = vmatprep.subr.mxu0 0.0
    %1218 = vmatpush2.msra.mxu0 0.0
    %1219 = vmatprep.subr.mxu0 0.0
    %1220 = vmatpush2.msra.mxu0 0.0
    %1221 = vmatprep.subr.mxu0 0.0
    %1222 = vmatpush2.msra.mxu0 0.0
    %1223 = vmatprep.subr.mxu0 0.0
    %1224 = vmatpush2.msra.mxu0 0.0
    %1225 = vmatprep.subr.mxu0 0.0
    %1226 = vmatpush2.msra.mxu0 0.0
    %1227 = vmatprep.subr.mxu0 0.0
    %1228 = vmatpush2.msra.mxu0 0.0
    %1229 = vmatprep.subr.mxu0 0.0
    %1230 = vmatpush2.msra.mxu0 0.0
    %1231 = vmatprep.subr.mxu0 0.0
    %1232 = vmatpush2.msra.mxu0 0.0
    %1233 = vmatprep.subr.mxu0 0.0
    %1234 = vmatpush2.msra.mxu0 0.0
    %1235 = vmatprep.subr.mxu0 0.0
    %1236 = vmatpush2.msra.mxu0 0.0
    %1237 = vmatprep.subr.mxu0 0.0
    %1238 = vmatpush2.msra.mxu0 0.0
    %1239 = vmatprep.subr.mxu0 0.0
    %1240 = vmatpush2.msra.mxu0 0.0
    %1241 = vmatprep.subr.mxu0 0.0
    %1242 = vmatpush2.msra.mxu0 0.0
    %1243 = vmatprep.subr.mxu0 0.0
    %1244 = vmatpush2.msra.mxu0 0.0
    %1245 = vmatprep.subr.mxu0 0.0
    %1246 = vmatpush2.msra.mxu0 0.0
    %1247 = vmatprep.mubr.f32.mxu0 0.0
    %1248 = vmatmul.mubr.f32.gmra.mxu0 %v1152
    %v1249 = vpop.f32.mrf.mxu0
    %v1250 = vadd.f32 %v1181, %v1249
    %v1251 = vpop.f32.mrf.mxu0
    %1252 = vmatprep.mubr.f32.mxu0 0.0
    %1253 = vmatmul.mubr.f32.gmra.mxu0 %v1153
    %v1254 = vpop.f32.mrf.mxu0
    %v1255 = vadd.f32 %v1181, %v1254
    %v1256 = vpop.f32.mrf.mxu0
    %1257 = vmatprep.mubr.f32.mxu0 0.0
    %1258 = vmatmul.mubr.f32.gmra.mxu0 %v1154
    %v1259 = vpop.f32.mrf.mxu0
    %v1260 = vadd.f32 %v1181, %v1259
    %v1261 = vpop.f32.mrf.mxu0
    %1262 = vmatprep.mubr.f32.mxu0 0.0
    %1263 = vmatmul.mubr.f32.gmra.mxu0 %v1155
    %v1264 = vpop.f32.mrf.mxu0
    %v1265 = vadd.f32 %v1181, %v1264
    %v1266 = vpop.f32.mrf.mxu0
    %1267 = vmatprep.mubr.f32.mxu0 0.0
    %1268 = vmatmul.mubr.f32.gmra.mxu0 %v1156
    %v1269 = vpop.f32.mrf.mxu0
    %v1270 = vadd.f32 %v1181, %v1269
    %v1271 = vpop.f32.mrf.mxu0
    %1272 = vmatprep.mubr.f32.mxu0 0.0
    %1273 = vmatmul.mubr.f32.gmra.mxu0 %v1157
    %v1274 = vpop.f32.mrf.mxu0
    %v1275 = vadd.f32 %v1181, %v1274
    %v1276 = vpop.f32.mrf.mxu0
    %1277 = vmatprep.mubr.f32.mxu0 0.0
    %1278 = vmatmul.mubr.f32.gmra.mxu0 %v1158
    %v1279 = vpop.f32.mrf.mxu0
    %v1280 = vadd.f32 %v1181, %v1279
    %v1281 = vpop.f32.mrf.mxu0
    %1282 = vmatprep.mubr.f32.mxu0 0.0
    %1283 = vmatmul.mubr.f32.gmra.mxu0 %v1159
    %v1284 = vpop.f32.mrf.mxu0
    %v1285 = vadd.f32 %v1181, %v1284
    %v1286 = vpop.f32.mrf.mxu0
    %1287 = vdwg.mxu0
    %1288 = vst [vmem:[#allocation2] sm:$0xff] %v1250
    %1289 = vst [vmem:[#allocation2 + $0x8] sm:$0xff] %v1255
    %1290 = vst [vmem:[#allocation2 + $0x10] sm:$0xff] %v1260
    %1291 = vst [vmem:[#allocation2 + $0x18] sm:$0xff] %v1265
    %1292 = vst [vmem:[#allocation2 + $0x20] sm:$0xff] %v1270
    %1293 = vst [vmem:[#allocation2 + $0x28] sm:$0xff] %v1275
    %1294 = vst [vmem:[#allocation2 + $0x30] sm:$0xff] %v1280
    %1295 = vst [vmem:[#allocation2 + $0x38] sm:$0xff] %v1285
    %s1296 = scalar_lea.vmem [#allocation16], 8
    %v1297 = vld [vmem:[%s1296] sm:$0xff]
    %v1298 = vld [vmem:[#allocation2] sm:$0xff]
    %v1299 = vld [vmem:[#allocation12] sm:$0xff]
    %v1300 = vld [vmem:[#allocation12 + $0x8] sm:$0xff]
    %v1301 = vld [vmem:[#allocation12 + $0x10] sm:$0xff]
    %v1302 = vld [vmem:[#allocation12 + $0x18] sm:$0xff]
    %v1303 = vld [vmem:[#allocation12 + $0x20] sm:$0xff]
    %v1304 = vld [vmem:[#allocation12 + $0x28] sm:$0xff]
    %v1305 = vld [vmem:[#allocation12 + $0x30] sm:$0xff]
    %v1306 = vld [vmem:[#allocation12 + $0x38] sm:$0xff]
    %v1307 = vld [vmem:[#allocation12 + $0x40] sm:$0xff]
    %v1308 = vld [vmem:[#allocation12 + $0x48] sm:$0xff]
    %v1309 = vld [vmem:[#allocation12 + $0x50] sm:$0xff]
    %v1310 = vld [vmem:[#allocation12 + $0x58] sm:$0xff]
    %v1311 = vld [vmem:[#allocation12 + $0x60] sm:$0xff]
    %v1312 = vld [vmem:[#allocation12 + $0x68] sm:$0xff]
    %v1313 = vld [vmem:[#allocation12 + $0x70] sm:$0xff]
    %v1314 = vld [vmem:[#allocation12 + $0x78] sm:$0xff]
    %1315 = vmatprep.subr.mxu0 0.0
    %1316 = vmatpush1.msra.mxu0 %v1314
    %1317 = vmatprep.subr.mxu0 0.0
    %1318 = vmatpush1.msra.mxu0 %v1313
    %1319 = vmatprep.subr.mxu0 0.0
    %1320 = vmatpush1.msra.mxu0 %v1312
    %1321 = vmatprep.subr.mxu0 0.0
    %1322 = vmatpush1.msra.mxu0 %v1311
    %1323 = vmatprep.subr.mxu0 0.0
    %1324 = vmatpush1.msra.mxu0 %v1310
    %1325 = vmatprep.subr.mxu0 0.0
    %1326 = vmatpush1.msra.mxu0 %v1309
    %1327 = vmatprep.subr.mxu0 0.0
    %1328 = vmatpush1.msra.mxu0 %v1308
    %1329 = vmatprep.subr.mxu0 0.0
    %1330 = vmatpush1.msra.mxu0 %v1307
    %1331 = vmatprep.subr.mxu0 0.0
    %1332 = vmatpush1.msra.mxu0 %v1306
    %1333 = vmatprep.subr.mxu0 0.0
    %1334 = vmatpush1.msra.mxu0 %v1305
    %1335 = vmatprep.subr.mxu0 0.0
    %1336 = vmatpush1.msra.mxu0 %v1304
    %1337 = vmatprep.subr.mxu0 0.0
    %1338 = vmatpush1.msra.mxu0 %v1303
    %1339 = vmatprep.subr.mxu0 0.0
    %1340 = vmatpush1.msra.mxu0 %v1302
    %1341 = vmatprep.subr.mxu0 0.0
    %1342 = vmatpush1.msra.mxu0 %v1301
    %1343 = vmatprep.subr.mxu0 0.0
    %1344 = vmatpush1.msra.mxu0 %v1300
    %1345 = vmatprep.subr.mxu0 0.0
    %1346 = vmatpush1.msra.mxu0 %v1299
    %1347 = vmatprep.subr.mxu0 0.0
    %1348 = vmatpush2.msra.mxu0 0.0
    %1349 = vmatprep.subr.mxu0 0.0
    %1350 = vmatpush2.msra.mxu0 0.0
    %1351 = vmatprep.subr.mxu0 0.0
    %1352 = vmatpush2.msra.mxu0 0.0
    %1353 = vmatprep.subr.mxu0 0.0
    %1354 = vmatpush2.msra.mxu0 0.0
    %1355 = vmatprep.subr.mxu0 0.0
    %1356 = vmatpush2.msra.mxu0 0.0
    %1357 = vmatprep.subr.mxu0 0.0
    %1358 = vmatpush2.msra.mxu0 0.0
    %1359 = vmatprep.subr.mxu0 0.0
    %1360 = vmatpush2.msra.mxu0 0.0
    %1361 = vmatprep.subr.mxu0 0.0
    %1362 = vmatpush2.msra.mxu0 0.0
    %1363 = vmatprep.subr.mxu0 0.0
    %1364 = vmatpush2.msra.mxu0 0.0
    %1365 = vmatprep.subr.mxu0 0.0
    %1366 = vmatpush2.msra.mxu0 0.0
    %1367 = vmatprep.subr.mxu0 0.0
    %1368 = vmatpush2.msra.mxu0 0.0
    %1369 = vmatprep.subr.mxu0 0.0
    %1370 = vmatpush2.msra.mxu0 0.0
    %1371 = vmatprep.subr.mxu0 0.0
    %1372 = vmatpush2.msra.mxu0 0.0
    %1373 = vmatprep.subr.mxu0 0.0
    %1374 = vmatpush2.msra.mxu0 0.0
    %1375 = vmatprep.subr.mxu0 0.0
    %1376 = vmatpush2.msra.mxu0 0.0
    %1377 = vmatprep.subr.mxu0 0.0
    %1378 = vmatpush2.msra.mxu0 0.0
    %1379 = vmatprep.mubr.f32.mxu0 0.0
    %1380 = vmatmul.mubr.f32.gmra.mxu0 %v1297
    %v1381 = vpop.f32.mrf.mxu0
    %v1382 = vadd.f32 0.0, %v1381
    %v1383 = vpop.f32.mrf.mxu0
    %1384 = vdwg.mxu0
    %v1385 = vadd.f32 %v1298, %v1382
    %1386 = vst [vmem:[#allocation2] sm:$0xff] %v1385
    %v1387 = vtanh.pop %v1385
    %v1388 = vld [vmem:[%s378] sm:$0xff]
    %v1389 = vld [vmem:[#allocation12] sm:$0xff]
    %v1390 = vld [vmem:[#allocation12 + $0x8] sm:$0xff]
    %v1391 = vld [vmem:[#allocation12 + $0x10] sm:$0xff]
    %v1392 = vld [vmem:[#allocation12 + $0x18] sm:$0xff]
    %v1393 = vld [vmem:[#allocation12 + $0x20] sm:$0xff]
    %v1394 = vld [vmem:[#allocation12 + $0x28] sm:$0xff]
    %v1395 = vld [vmem:[#allocation12 + $0x30] sm:$0xff]
    %v1396 = vld [vmem:[#allocation12 + $0x38] sm:$0xff]
    %v1397 = vld [vmem:[#allocation12 + $0x40] sm:$0xff]
    %v1398 = vld [vmem:[#allocation12 + $0x48] sm:$0xff]
    %v1399 = vld [vmem:[#allocation12 + $0x50] sm:$0xff]
    %v1400 = vld [vmem:[#allocation12 + $0x58] sm:$0xff]
    %v1401 = vld [vmem:[#allocation12 + $0x60] sm:$0xff]
    %v1402 = vld [vmem:[#allocation12 + $0x68] sm:$0xff]
    %v1403 = vld [vmem:[#allocation12 + $0x70] sm:$0xff]
    %v1404 = vld [vmem:[#allocation12 + $0x78] sm:$0xff]
    %1405 = vmatprep.subr.mxu0 0.0
    %1406 = vmatpush1.msra.mxu0 %v1404
    %1407 = vmatprep.subr.mxu0 0.0
    %1408 = vmatpush1.msra.mxu0 %v1403
    %1409 = vmatprep.subr.mxu0 0.0
    %1410 = vmatpush1.msra.mxu0 %v1402
    %1411 = vmatprep.subr.mxu0 0.0
    %1412 = vmatpush1.msra.mxu0 %v1401
    %1413 = vmatprep.subr.mxu0 0.0
    %1414 = vmatpush1.msra.mxu0 %v1400
    %1415 = vmatprep.subr.mxu0 0.0
    %1416 = vmatpush1.msra.mxu0 %v1399
    %1417 = vmatprep.subr.mxu0 0.0
    %1418 = vmatpush1.msra.mxu0 %v1398
    %1419 = vmatprep.subr.mxu0 0.0
    %1420 = vmatpush1.msra.mxu0 %v1397
    %1421 = vmatprep.subr.mxu0 0.0
    %1422 = vmatpush1.msra.mxu0 %v1396
    %1423 = vmatprep.subr.mxu0 0.0
    %1424 = vmatpush1.msra.mxu0 %v1395
    %1425 = vmatprep.subr.mxu0 0.0
    %1426 = vmatpush1.msra.mxu0 %v1394
    %1427 = vmatprep.subr.mxu0 0.0
    %1428 = vmatpush1.msra.mxu0 %v1393
    %1429 = vmatprep.subr.mxu0 0.0
    %1430 = vmatpush1.msra.mxu0 %v1392
    %1431 = vmatprep.subr.mxu0 0.0
    %1432 = vmatpush1.msra.mxu0 %v1391
    %1433 = vmatprep.subr.mxu0 0.0
    %1434 = vmatpush1.msra.mxu0 %v1390
    %1435 = vmatprep.subr.mxu0 0.0
    %1436 = vmatpush1.msra.mxu0 %v1389
    %1437 = vmatprep.subr.mxu0 0.0
    %1438 = vmatpush2.msra.mxu0 0.0
    %1439 = vmatprep.subr.mxu0 0.0
    %1440 = vmatpush2.msra.mxu0 0.0
    %1441 = vmatprep.subr.mxu0 0.0
    %1442 = vmatpush2.msra.mxu0 0.0
    %1443 = vmatprep.subr.mxu0 0.0
    %1444 = vmatpush2.msra.mxu0 0.0
    %1445 = vmatprep.subr.mxu0 0.0
    %1446 = vmatpush2.msra.mxu0 0.0
    %1447 = vmatprep.subr.mxu0 0.0
    %1448 = vmatpush2.msra.mxu0 0.0
    %1449 = vmatprep.subr.mxu0 0.0
    %1450 = vmatpush2.msra.mxu0 0.0
    %1451 = vmatprep.subr.mxu0 0.0
    %1452 = vmatpush2.msra.mxu0 0.0
    %1453 = vmatprep.subr.mxu0 0.0
    %1454 = vmatpush2.msra.mxu0 0.0
    %1455 = vmatprep.subr.mxu0 0.0
    %1456 = vmatpush2.msra.mxu0 0.0
    %1457 = vmatprep.subr.mxu0 0.0
    %1458 = vmatpush2.msra.mxu0 0.0
    %1459 = vmatprep.subr.mxu0 0.0
    %1460 = vmatpush2.msra.mxu0 0.0
    %1461 = vmatprep.subr.mxu0 0.0
    %1462 = vmatpush2.msra.mxu0 0.0
    %1463 = vmatprep.subr.mxu0 0.0
    %1464 = vmatpush2.msra.mxu0 0.0
    %1465 = vmatprep.subr.mxu0 0.0
    %1466 = vmatpush2.msra.mxu0 0.0
    %1467 = vmatprep.subr.mxu0 0.0
    %1468 = vmatpush2.msra.mxu0 0.0
    %1469 = vmatprep.mubr.f32.mxu0 0.0
    %1470 = vmatmul.mubr.f32.gmra.mxu0 %v1387
    %v1471 = vpop.f32.mrf.mxu0
    %v1472 = vadd.f32 0.0, %v1471
    %v1473 = vpop.f32.mrf.mxu0
    %1474 = vdwg.mxu0
    %v1475 = vadd.f32 %v1388, %v1472
    %1476 = vst [vmem:[%s378] sm:$0xff] %v1475
    %v1477 = vtanh.pop %v1475
    %v1478 = vld [vmem:[%s469] sm:$0xff]
    %v1479 = vld [vmem:[#allocation12] sm:$0xff]
    %v1480 = vld [vmem:[#allocation12 + $0x8] sm:$0xff]
    %v1481 = vld [vmem:[#allocation12 + $0x10] sm:$0xff]
    %v1482 = vld [vmem:[#allocation12 + $0x18] sm:$0xff]
    %v1483 = vld [vmem:[#allocation12 + $0x20] sm:$0xff]
    %v1484 = vld [vmem:[#allocation12 + $0x28] sm:$0xff]
    %v1485 = vld [vmem:[#allocation12 + $0x30] sm:$0xff]
    %v1486 = vld [vmem:[#allocation12 + $0x38] sm:$0xff]
    %v1487 = vld [vmem:[#allocation12 + $0x40] sm:$0xff]
    %v1488 = vld [vmem:[#allocation12 + $0x48] sm:$0xff]
    %v1489 = vld [vmem:[#allocation12 + $0x50] sm:$0xff]
    %v1490 = vld [vmem:[#allocation12 + $0x58] sm:$0xff]
    %v1491 = vld [vmem:[#allocation12 + $0x60] sm:$0xff]
    %v1492 = vld [vmem:[#allocation12 + $0x68] sm:$0xff]
    %v1493 = vld [vmem:[#allocation12 + $0x70] sm:$0xff]
    %v1494 = vld [vmem:[#allocation12 + $0x78] sm:$0xff]
    %1495 = vmatprep.subr.mxu0 0.0
    %1496 = vmatpush1.msra.mxu0 %v1494
    %1497 = vmatprep.subr.mxu0 0.0
    %1498 = vmatpush1.msra.mxu0 %v1493
    %1499 = vmatprep.subr.mxu0 0.0
    %1500 = vmatpush1.msra.mxu0 %v1492
    %1501 = vmatprep.subr.mxu0 0.0
    %1502 = vmatpush1.msra.mxu0 %v1491
    %1503 = vmatprep.subr.mxu0 0.0
    %1504 = vmatpush1.msra.mxu0 %v1490
    %1505 = vmatprep.subr.mxu0 0.0
    %1506 = vmatpush1.msra.mxu0 %v1489
    %1507 = vmatprep.subr.mxu0 0.0
    %1508 = vmatpush1.msra.mxu0 %v1488
    %1509 = vmatprep.subr.mxu0 0.0
    %1510 = vmatpush1.msra.mxu0 %v1487
    %1511 = vmatprep.subr.mxu0 0.0
    %1512 = vmatpush1.msra.mxu0 %v1486
    %1513 = vmatprep.subr.mxu0 0.0
    %1514 = vmatpush1.msra.mxu0 %v1485
    %1515 = vmatprep.subr.mxu0 0.0
    %1516 = vmatpush1.msra.mxu0 %v1484
    %1517 = vmatprep.subr.mxu0 0.0
    %1518 = vmatpush1.msra.mxu0 %v1483
    %1519 = vmatprep.subr.mxu0 0.0
    %1520 = vmatpush1.msra.mxu0 %v1482
    %1521 = vmatprep.subr.mxu0 0.0
    %1522 = vmatpush1.msra.mxu0 %v1481
    %1523 = vmatprep.subr.mxu0 0.0
    %1524 = vmatpush1.msra.mxu0 %v1480
    %1525 = vmatprep.subr.mxu0 0.0
    %1526 = vmatpush1.msra.mxu0 %v1479
    %1527 = vmatprep.subr.mxu0 0.0
    %1528 = vmatpush2.msra.mxu0 0.0
    %1529 = vmatprep.subr.mxu0 0.0
    %1530 = vmatpush2.msra.mxu0 0.0
    %1531 = vmatprep.subr.mxu0 0.0
    %1532 = vmatpush2.msra.mxu0 0.0
    %1533 = vmatprep.subr.mxu0 0.0
    %1534 = vmatpush2.msra.mxu0 0.0
    %1535 = vmatprep.subr.mxu0 0.0
    %1536 = vmatpush2.msra.mxu0 0.0
    %1537 = vmatprep.subr.mxu0 0.0
    %1538 = vmatpush2.msra.mxu0 0.0
    %1539 = vmatprep.subr.mxu0 0.0
    %1540 = vmatpush2.msra.mxu0 0.0
    %1541 = vmatprep.subr.mxu0 0.0
    %1542 = vmatpush2.msra.mxu0 0.0
    %1543 = vmatprep.subr.mxu0 0.0
    %1544 = vmatpush2.msra.mxu0 0.0
    %1545 = vmatprep.subr.mxu0 0.0
    %1546 = vmatpush2.msra.mxu0 0.0
    %1547 = vmatprep.subr.mxu0 0.0
    %1548 = vmatpush2.msra.mxu0 0.0
    %1549 = vmatprep.subr.mxu0 0.0
    %1550 = vmatpush2.msra.mxu0 0.0
    %1551 = vmatprep.subr.mxu0 0.0
    %1552 = vmatpush2.msra.mxu0 0.0
    %1553 = vmatprep.subr.mxu0 0.0
    %1554 = vmatpush2.msra.mxu0 0.0
    %1555 = vmatprep.subr.mxu0 0.0
    %1556 = vmatpush2.msra.mxu0 0.0
    %1557 = vmatprep.subr.mxu0 0.0
    %1558 = vmatpush2.msra.mxu0 0.0
    %1559 = vmatprep.mubr.f32.mxu0 0.0
    %1560 = vmatmul.mubr.f32.gmra.mxu0 %v1477
    %v1561 = vpop.f32.mrf.mxu0
    %v1562 = vadd.f32 0.0, %v1561
    %v1563 = vpop.f32.mrf.mxu0
    %1564 = vdwg.mxu0
    %v1565 = vadd.f32 %v1478, %v1562
    %1566 = vst [vmem:[%s469] sm:$0xff] %v1565
    %v1567 = vtanh.pop %v1565
    %v1568 = vld [vmem:[%s560] sm:$0xff]
    %v1569 = vld [vmem:[#allocation12] sm:$0xff]
    %v1570 = vld [vmem:[#allocation12 + $0x8] sm:$0xff]
    %v1571 = vld [vmem:[#allocation12 + $0x10] sm:$0xff]
    %v1572 = vld [vmem:[#allocation12 + $0x18] sm:$0xff]
    %v1573 = vld [vmem:[#allocation12 + $0x20] sm:$0xff]
    %v1574 = vld [vmem:[#allocation12 + $0x28] sm:$0xff]
    %v1575 = vld [vmem:[#allocation12 + $0x30] sm:$0xff]
    %v1576 = vld [vmem:[#allocation12 + $0x38] sm:$0xff]
    %v1577 = vld [vmem:[#allocation12 + $0x40] sm:$0xff]
    %v1578 = vld [vmem:[#allocation12 + $0x48] sm:$0xff]
    %v1579 = vld [vmem:[#allocation12 + $0x50] sm:$0xff]
    %v1580 = vld [vmem:[#allocation12 + $0x58] sm:$0xff]
    %v1581 = vld [vmem:[#allocation12 + $0x60] sm:$0xff]
    %v1582 = vld [vmem:[#allocation12 + $0x68] sm:$0xff]
    %v1583 = vld [vmem:[#allocation12 + $0x70] sm:$0xff]
    %v1584 = vld [vmem:[#allocation12 + $0x78] sm:$0xff]
    %1585 = vmatprep.subr.mxu0 0.0
    %1586 = vmatpush1.msra.mxu0 %v1584
    %1587 = vmatprep.subr.mxu0 0.0
    %1588 = vmatpush1.msra.mxu0 %v1583
    %1589 = vmatprep.subr.mxu0 0.0
    %1590 = vmatpush1.msra.mxu0 %v1582
    %1591 = vmatprep.subr.mxu0 0.0
    %1592 = vmatpush1.msra.mxu0 %v1581
    %1593 = vmatprep.subr.mxu0 0.0
    %1594 = vmatpush1.msra.mxu0 %v1580
    %1595 = vmatprep.subr.mxu0 0.0
    %1596 = vmatpush1.msra.mxu0 %v1579
    %1597 = vmatprep.subr.mxu0 0.0
    %1598 = vmatpush1.msra.mxu0 %v1578
    %1599 = vmatprep.subr.mxu0 0.0
    %1600 = vmatpush1.msra.mxu0 %v1577
    %1601 = vmatprep.subr.mxu0 0.0
    %1602 = vmatpush1.msra.mxu0 %v1576
    %1603 = vmatprep.subr.mxu0 0.0
    %1604 = vmatpush1.msra.mxu0 %v1575
    %1605 = vmatprep.subr.mxu0 0.0
    %1606 = vmatpush1.msra.mxu0 %v1574
    %1607 = vmatprep.subr.mxu0 0.0
    %1608 = vmatpush1.msra.mxu0 %v1573
    %1609 = vmatprep.subr.mxu0 0.0
    %1610 = vmatpush1.msra.mxu0 %v1572
    %1611 = vmatprep.subr.mxu0 0.0
    %1612 = vmatpush1.msra.mxu0 %v1571
    %1613 = vmatprep.subr.mxu0 0.0
    %1614 = vmatpush1.msra.mxu0 %v1570
    %1615 = vmatprep.subr.mxu0 0.0
    %1616 = vmatpush1.msra.mxu0 %v1569
    %1617 = vmatprep.subr.mxu0 0.0
    %1618 = vmatpush2.msra.mxu0 0.0
    %1619 = vmatprep.subr.mxu0 0.0
    %1620 = vmatpush2.msra.mxu0 0.0
    %1621 = vmatprep.subr.mxu0 0.0
    %1622 = vmatpush2.msra.mxu0 0.0
    %1623 = vmatprep.subr.mxu0 0.0
    %1624 = vmatpush2.msra.mxu0 0.0
    %1625 = vmatprep.subr.mxu0 0.0
    %1626 = vmatpush2.msra.mxu0 0.0
    %1627 = vmatprep.subr.mxu0 0.0
    %1628 = vmatpush2.msra.mxu0 0.0
    %1629 = vmatprep.subr.mxu0 0.0
    %1630 = vmatpush2.msra.mxu0 0.0
    %1631 = vmatprep.subr.mxu0 0.0
    %1632 = vmatpush2.msra.mxu0 0.0
    %1633 = vmatprep.subr.mxu0 0.0
    %1634 = vmatpush2.msra.mxu0 0.0
    %1635 = vmatprep.subr.mxu0 0.0
    %1636 = vmatpush2.msra.mxu0 0.0
    %1637 = vmatprep.subr.mxu0 0.0
    %1638 = vmatpush2.msra.mxu0 0.0
    %1639 = vmatprep.subr.mxu0 0.0
    %1640 = vmatpush2.msra.mxu0 0.0
    %1641 = vmatprep.subr.mxu0 0.0
    %1642 = vmatpush2.msra.mxu0 0.0
    %1643 = vmatprep.subr.mxu0 0.0
    %1644 = vmatpush2.msra.mxu0 0.0
    %1645 = vmatprep.subr.mxu0 0.0
    %1646 = vmatpush2.msra.mxu0 0.0
    %1647 = vmatprep.subr.mxu0 0.0
    %1648 = vmatpush2.msra.mxu0 0.0
    %1649 = vmatprep.mubr.f32.mxu0 0.0
    %1650 = vmatmul.mubr.f32.gmra.mxu0 %v1567
    %v1651 = vpop.f32.mrf.mxu0
    %v1652 = vadd.f32 0.0, %v1651
    %v1653 = vpop.f32.mrf.mxu0
    %1654 = vdwg.mxu0
    %v1655 = vadd.f32 %v1568, %v1652
    %1656 = vst [vmem:[%s560] sm:$0xff] %v1655
    %v1657 = vtanh.pop %v1655
    %v1658 = vld [vmem:[%s651] sm:$0xff]
    %v1659 = vld [vmem:[#allocation12] sm:$0xff]
    %v1660 = vld [vmem:[#allocation12 + $0x8] sm:$0xff]
    %v1661 = vld [vmem:[#allocation12 + $0x10] sm:$0xff]
    %v1662 = vld [vmem:[#allocation12 + $0x18] sm:$0xff]
    %v1663 = vld [vmem:[#allocation12 + $0x20] sm:$0xff]
    %v1664 = vld [vmem:[#allocation12 + $0x28] sm:$0xff]
    %v1665 = vld [vmem:[#allocation12 + $0x30] sm:$0xff]
    %v1666 = vld [vmem:[#allocation12 + $0x38] sm:$0xff]
    %v1667 = vld [vmem:[#allocation12 + $0x40] sm:$0xff]
    %v1668 = vld [vmem:[#allocation12 + $0x48] sm:$0xff]
    %v1669 = vld [vmem:[#allocation12 + $0x50] sm:$0xff]
    %v1670 = vld [vmem:[#allocation12 + $0x58] sm:$0xff]
    %v1671 = vld [vmem:[#allocation12 + $0x60] sm:$0xff]
    %v1672 = vld [vmem:[#allocation12 + $0x68] sm:$0xff]
    %v1673 = vld [vmem:[#allocation12 + $0x70] sm:$0xff]
    %v1674 = vld [vmem:[#allocation12 + $0x78] sm:$0xff]
    %1675 = vmatprep.subr.mxu0 0.0
    %1676 = vmatpush1.msra.mxu0 %v1674
    %1677 = vmatprep.subr.mxu0 0.0
    %1678 = vmatpush1.msra.mxu0 %v1673
    %1679 = vmatprep.subr.mxu0 0.0
    %1680 = vmatpush1.msra.mxu0 %v1672
    %1681 = vmatprep.subr.mxu0 0.0
    %1682 = vmatpush1.msra.mxu0 %v1671
    %1683 = vmatprep.subr.mxu0 0.0
    %1684 = vmatpush1.msra.mxu0 %v1670
    %1685 = vmatprep.subr.mxu0 0.0
    %1686 = vmatpush1.msra.mxu0 %v1669
    %1687 = vmatprep.subr.mxu0 0.0
    %1688 = vmatpush1.msra.mxu0 %v1668
    %1689 = vmatprep.subr.mxu0 0.0
    %1690 = vmatpush1.msra.mxu0 %v1667
    %1691 = vmatprep.subr.mxu0 0.0
    %1692 = vmatpush1.msra.mxu0 %v1666
    %1693 = vmatprep.subr.mxu0 0.0
    %1694 = vmatpush1.msra.mxu0 %v1665
    %1695 = vmatprep.subr.mxu0 0.0
    %1696 = vmatpush1.msra.mxu0 %v1664
    %1697 = vmatprep.subr.mxu0 0.0
    %1698 = vmatpush1.msra.mxu0 %v1663
    %1699 = vmatprep.subr.mxu0 0.0
    %1700 = vmatpush1.msra.mxu0 %v1662
    %1701 = vmatprep.subr.mxu0 0.0
    %1702 = vmatpush1.msra.mxu0 %v1661
    %1703 = vmatprep.subr.mxu0 0.0
    %1704 = vmatpush1.msra.mxu0 %v1660
    %1705 = vmatprep.subr.mxu0 0.0
    %1706 = vmatpush1.msra.mxu0 %v1659
    %1707 = vmatprep.subr.mxu0 0.0
    %1708 = vmatpush2.msra.mxu0 0.0
    %1709 = vmatprep.subr.mxu0 0.0
    %1710 = vmatpush2.msra.mxu0 0.0
    %1711 = vmatprep.subr.mxu0 0.0
    %1712 = vmatpush2.msra.mxu0 0.0
    %1713 = vmatprep.subr.mxu0 0.0
    %1714 = vmatpush2.msra.mxu0 0.0
    %1715 = vmatprep.subr.mxu0 0.0
    %1716 = vmatpush2.msra.mxu0 0.0
    %1717 = vmatprep.subr.mxu0 0.0
    %1718 = vmatpush2.msra.mxu0 0.0
    %1719 = vmatprep.subr.mxu0 0.0
    %1720 = vmatpush2.msra.mxu0 0.0
    %1721 = vmatprep.subr.mxu0 0.0
    %1722 = vmatpush2.msra.mxu0 0.0
    %1723 = vmatprep.subr.mxu0 0.0
    %1724 = vmatpush2.msra.mxu0 0.0
    %1725 = vmatprep.subr.mxu0 0.0
    %1726 = vmatpush2.msra.mxu0 0.0
    %1727 = vmatprep.subr.mxu0 0.0
    %1728 = vmatpush2.msra.mxu0 0.0
    %1729 = vmatprep.subr.mxu0 0.0
    %1730 = vmatpush2.msra.mxu0 0.0
    %1731 = vmatprep.subr.mxu0 0.0
    %1732 = vmatpush2.msra.mxu0 0.0
    %1733 = vmatprep.subr.mxu0 0.0
    %1734 = vmatpush2.msra.mxu0 0.0
    %1735 = vmatprep.subr.mxu0 0.0
    %1736 = vmatpush2.msra.mxu0 0.0
    %1737 = vmatprep.subr.mxu0 0.0
    %1738 = vmatpush2.msra.mxu0 0.0
    %1739 = vmatprep.mubr.f32.mxu0 0.0
    %1740 = vmatmul.mubr.f32.gmra.mxu0 %v1657
    %v1741 = vpop.f32.mrf.mxu0
    %v1742 = vadd.f32 0.0, %v1741
    %v1743 = vpop.f32.mrf.mxu0
    %1744 = vdwg.mxu0
    %v1745 = vadd.f32 %v1658, %v1742
    %1746 = vst [vmem:[%s651] sm:$0xff] %v1745
    %v1747 = vtanh.pop %v1745
    %v1748 = vld [vmem:[%s742] sm:$0xff]
    %v1749 = vld [vmem:[#allocation12] sm:$0xff]
    %v1750 = vld [vmem:[#allocation12 + $0x8] sm:$0xff]
    %v1751 = vld [vmem:[#allocation12 + $0x10] sm:$0xff]
    %v1752 = vld [vmem:[#allocation12 + $0x18] sm:$0xff]
    %v1753 = vld [vmem:[#allocation12 + $0x20] sm:$0xff]
    %v1754 = vld [vmem:[#allocation12 + $0x28] sm:$0xff]
    %v1755 = vld [vmem:[#allocation12 + $0x30] sm:$0xff]
    %v1756 = vld [vmem:[#allocation12 + $0x38] sm:$0xff]
    %v1757 = vld [vmem:[#allocation12 + $0x40] sm:$0xff]
    %v1758 = vld [vmem:[#allocation12 + $0x48] sm:$0xff]
    %v1759 = vld [vmem:[#allocation12 + $0x50] sm:$0xff]
    %v1760 = vld [vmem:[#allocation12 + $0x58] sm:$0xff]
    %v1761 = vld [vmem:[#allocation12 + $0x60] sm:$0xff]
    %v1762 = vld [vmem:[#allocation12 + $0x68] sm:$0xff]
    %v1763 = vld [vmem:[#allocation12 + $0x70] sm:$0xff]
    %v1764 = vld [vmem:[#allocation12 + $0x78] sm:$0xff]
    %1765 = vmatprep.subr.mxu0 0.0
    %1766 = vmatpush1.msra.mxu0 %v1764
    %1767 = vmatprep.subr.mxu0 0.0
    %1768 = vmatpush1.msra.mxu0 %v1763
    %1769 = vmatprep.subr.mxu0 0.0
    %1770 = vmatpush1.msra.mxu0 %v1762
    %1771 = vmatprep.subr.mxu0 0.0
    %1772 = vmatpush1.msra.mxu0 %v1761
    %1773 = vmatprep.subr.mxu0 0.0
    %1774 = vmatpush1.msra.mxu0 %v1760
    %1775 = vmatprep.subr.mxu0 0.0
    %1776 = vmatpush1.msra.mxu0 %v1759
    %1777 = vmatprep.subr.mxu0 0.0
    %1778 = vmatpush1.msra.mxu0 %v1758
    %1779 = vmatprep.subr.mxu0 0.0
    %1780 = vmatpush1.msra.mxu0 %v1757
    %1781 = vmatprep.subr.mxu0 0.0
    %1782 = vmatpush1.msra.mxu0 %v1756
    %1783 = vmatprep.subr.mxu0 0.0
    %1784 = vmatpush1.msra.mxu0 %v1755
    %1785 = vmatprep.subr.mxu0 0.0
    %1786 = vmatpush1.msra.mxu0 %v1754
    %1787 = vmatprep.subr.mxu0 0.0
    %1788 = vmatpush1.msra.mxu0 %v1753
    %1789 = vmatprep.subr.mxu0 0.0
    %1790 = vmatpush1.msra.mxu0 %v1752
    %1791 = vmatprep.subr.mxu0 0.0
    %1792 = vmatpush1.msra.mxu0 %v1751
    %1793 = vmatprep.subr.mxu0 0.0
    %1794 = vmatpush1.msra.mxu0 %v1750
    %1795 = vmatprep.subr.mxu0 0.0
    %1796 = vmatpush1.msra.mxu0 %v1749
    %1797 = vmatprep.subr.mxu0 0.0
    %1798 = vmatpush2.msra.mxu0 0.0
    %1799 = vmatprep.subr.mxu0 0.0
    %1800 = vmatpush2.msra.mxu0 0.0
    %1801 = vmatprep.subr.mxu0 0.0
    %1802 = vmatpush2.msra.mxu0 0.0
    %1803 = vmatprep.subr.mxu0 0.0
    %1804 = vmatpush2.msra.mxu0 0.0
    %1805 = vmatprep.subr.mxu0 0.0
    %1806 = vmatpush2.msra.mxu0 0.0
    %1807 = vmatprep.subr.mxu0 0.0
    %1808 = vmatpush2.msra.mxu0 0.0
    %1809 = vmatprep.subr.mxu0 0.0
    %1810 = vmatpush2.msra.mxu0 0.0
    %1811 = vmatprep.subr.mxu0 0.0
    %1812 = vmatpush2.msra.mxu0 0.0
    %1813 = vmatprep.subr.mxu0 0.0
    %1814 = vmatpush2.msra.mxu0 0.0
    %1815 = vmatprep.subr.mxu0 0.0
    %1816 = vmatpush2.msra.mxu0 0.0
    %1817 = vmatprep.subr.mxu0 0.0
    %1818 = vmatpush2.msra.mxu0 0.0
    %1819 = vmatprep.subr.mxu0 0.0
    %1820 = vmatpush2.msra.mxu0 0.0
    %1821 = vmatprep.subr.mxu0 0.0
    %1822 = vmatpush2.msra.mxu0 0.0
    %1823 = vmatprep.subr.mxu0 0.0
    %1824 = vmatpush2.msra.mxu0 0.0
    %1825 = vmatprep.subr.mxu0 0.0
    %1826 = vmatpush2.msra.mxu0 0.0
    %1827 = vmatprep.subr.mxu0 0.0
    %1828 = vmatpush2.msra.mxu0 0.0
    %1829 = vmatprep.mubr.f32.mxu0 0.0
    %1830 = vmatmul.mubr.f32.gmra.mxu0 %v1747
    %v1831 = vpop.f32.mrf.mxu0
    %v1832 = vadd.f32 0.0, %v1831
    %v1833 = vpop.f32.mrf.mxu0
    %1834 = vdwg.mxu0
    %v1835 = vadd.f32 %v1748, %v1832
    %1836 = vst [vmem:[%s742] sm:$0xff] %v1835
    %v1837 = vtanh.pop %v1835
    %v1838 = vld [vmem:[%s833] sm:$0xff]
    %v1839 = vld [vmem:[#allocation12] sm:$0xff]
    %v1840 = vld [vmem:[#allocation12 + $0x8] sm:$0xff]
    %v1841 = vld [vmem:[#allocation12 + $0x10] sm:$0xff]
    %v1842 = vld [vmem:[#allocation12 + $0x18] sm:$0xff]
    %v1843 = vld [vmem:[#allocation12 + $0x20] sm:$0xff]
    %v1844 = vld [vmem:[#allocation12 + $0x28] sm:$0xff]
    %v1845 = vld [vmem:[#allocation12 + $0x30] sm:$0xff]
    %v1846 = vld [vmem:[#allocation12 + $0x38] sm:$0xff]
    %v1847 = vld [vmem:[#allocation12 + $0x40] sm:$0xff]
    %v1848 = vld [vmem:[#allocation12 + $0x48] sm:$0xff]
    %v1849 = vld [vmem:[#allocation12 + $0x50] sm:$0xff]
    %v1850 = vld [vmem:[#allocation12 + $0x58] sm:$0xff]
    %v1851 = vld [vmem:[#allocation12 + $0x60] sm:$0xff]
    %v1852 = vld [vmem:[#allocation12 + $0x68] sm:$0xff]
    %v1853 = vld [vmem:[#allocation12 + $0x70] sm:$0xff]
    %v1854 = vld [vmem:[#allocation12 + $0x78] sm:$0xff]
    %1855 = vmatprep.subr.mxu0 0.0
    %1856 = vmatpush1.msra.mxu0 %v1854
    %1857 = vmatprep.subr.mxu0 0.0
    %1858 = vmatpush1.msra.mxu0 %v1853
    %1859 = vmatprep.subr.mxu0 0.0
    %1860 = vmatpush1.msra.mxu0 %v1852
    %1861 = vmatprep.subr.mxu0 0.0
    %1862 = vmatpush1.msra.mxu0 %v1851
    %1863 = vmatprep.subr.mxu0 0.0
    %1864 = vmatpush1.msra.mxu0 %v1850
    %1865 = vmatprep.subr.mxu0 0.0
    %1866 = vmatpush1.msra.mxu0 %v1849
    %1867 = vmatprep.subr.mxu0 0.0
    %1868 = vmatpush1.msra.mxu0 %v1848
    %1869 = vmatprep.subr.mxu0 0.0
    %1870 = vmatpush1.msra.mxu0 %v1847
    %1871 = vmatprep.subr.mxu0 0.0
    %1872 = vmatpush1.msra.mxu0 %v1846
    %1873 = vmatprep.subr.mxu0 0.0
    %1874 = vmatpush1.msra.mxu0 %v1845
    %1875 = vmatprep.subr.mxu0 0.0
    %1876 = vmatpush1.msra.mxu0 %v1844
    %1877 = vmatprep.subr.mxu0 0.0
    %1878 = vmatpush1.msra.mxu0 %v1843
    %1879 = vmatprep.subr.mxu0 0.0
    %1880 = vmatpush1.msra.mxu0 %v1842
    %1881 = vmatprep.subr.mxu0 0.0
    %1882 = vmatpush1.msra.mxu0 %v1841
    %1883 = vmatprep.subr.mxu0 0.0
    %1884 = vmatpush1.msra.mxu0 %v1840
    %1885 = vmatprep.subr.mxu0 0.0
    %1886 = vmatpush1.msra.mxu0 %v1839
    %1887 = vmatprep.subr.mxu0 0.0
    %1888 = vmatpush2.msra.mxu0 0.0
    %1889 = vmatprep.subr.mxu0 0.0
    %1890 = vmatpush2.msra.mxu0 0.0
    %1891 = vmatprep.subr.mxu0 0.0
    %1892 = vmatpush2.msra.mxu0 0.0
    %1893 = vmatprep.subr.mxu0 0.0
    %1894 = vmatpush2.msra.mxu0 0.0
    %1895 = vmatprep.subr.mxu0 0.0
    %1896 = vmatpush2.msra.mxu0 0.0
    %1897 = vmatprep.subr.mxu0 0.0
    %1898 = vmatpush2.msra.mxu0 0.0
    %1899 = vmatprep.subr.mxu0 0.0
    %1900 = vmatpush2.msra.mxu0 0.0
    %1901 = vmatprep.subr.mxu0 0.0
    %1902 = vmatpush2.msra.mxu0 0.0
    %1903 = vmatprep.subr.mxu0 0.0
    %1904 = vmatpush2.msra.mxu0 0.0
    %1905 = vmatprep.subr.mxu0 0.0
    %1906 = vmatpush2.msra.mxu0 0.0
    %1907 = vmatprep.subr.mxu0 0.0
    %1908 = vmatpush2.msra.mxu0 0.0
    %1909 = vmatprep.subr.mxu0 0.0
    %1910 = vmatpush2.msra.mxu0 0.0
    %1911 = vmatprep.subr.mxu0 0.0
    %1912 = vmatpush2.msra.mxu0 0.0
    %1913 = vmatprep.subr.mxu0 0.0
    %1914 = vmatpush2.msra.mxu0 0.0
    %1915 = vmatprep.subr.mxu0 0.0
    %1916 = vmatpush2.msra.mxu0 0.0
    %1917 = vmatprep.subr.mxu0 0.0
    %1918 = vmatpush2.msra.mxu0 0.0
    %1919 = vmatprep.mubr.f32.mxu0 0.0
    %1920 = vmatmul.mubr.f32.gmra.mxu0 %v1837
    %v1921 = vpop.f32.mrf.mxu0
    %v1922 = vadd.f32 0.0, %v1921
    %v1923 = vpop.f32.mrf.mxu0
    %1924 = vdwg.mxu0
    %v1925 = vadd.f32 %v1838, %v1922
    %1926 = vst [vmem:[%s833] sm:$0xff] %v1925
    %v1927 = vtanh.pop %v1925
    %v1928 = vld [vmem:[%s924] sm:$0xff]
    %v1929 = vld [vmem:[#allocation12] sm:$0xff]
    %v1930 = vld [vmem:[#allocation12 + $0x8] sm:$0xff]
    %v1931 = vld [vmem:[#allocation12 + $0x10] sm:$0xff]
    %v1932 = vld [vmem:[#allocation12 + $0x18] sm:$0xff]
    %v1933 = vld [vmem:[#allocation12 + $0x20] sm:$0xff]
    %v1934 = vld [vmem:[#allocation12 + $0x28] sm:$0xff]
    %v1935 = vld [vmem:[#allocation12 + $0x30] sm:$0xff]
    %v1936 = vld [vmem:[#allocation12 + $0x38] sm:$0xff]
    %v1937 = vld [vmem:[#allocation12 + $0x40] sm:$0xff]
    %v1938 = vld [vmem:[#allocation12 + $0x48] sm:$0xff]
    %v1939 = vld [vmem:[#allocation12 + $0x50] sm:$0xff]
    %v1940 = vld [vmem:[#allocation12 + $0x58] sm:$0xff]
    %v1941 = vld [vmem:[#allocation12 + $0x60] sm:$0xff]
    %v1942 = vld [vmem:[#allocation12 + $0x68] sm:$0xff]
    %v1943 = vld [vmem:[#allocation12 + $0x70] sm:$0xff]
    %v1944 = vld [vmem:[#allocation12 + $0x78] sm:$0xff]
    %1945 = vmatprep.subr.mxu0 0.0
    %1946 = vmatpush1.msra.mxu0 %v1944
    %1947 = vmatprep.subr.mxu0 0.0
    %1948 = vmatpush1.msra.mxu0 %v1943
    %1949 = vmatprep.subr.mxu0 0.0
    %1950 = vmatpush1.msra.mxu0 %v1942
    %1951 = vmatprep.subr.mxu0 0.0
    %1952 = vmatpush1.msra.mxu0 %v1941
    %1953 = vmatprep.subr.mxu0 0.0
    %1954 = vmatpush1.msra.mxu0 %v1940
    %1955 = vmatprep.subr.mxu0 0.0
    %1956 = vmatpush1.msra.mxu0 %v1939
    %1957 = vmatprep.subr.mxu0 0.0
    %1958 = vmatpush1.msra.mxu0 %v1938
    %1959 = vmatprep.subr.mxu0 0.0
    %1960 = vmatpush1.msra.mxu0 %v1937
    %1961 = vmatprep.subr.mxu0 0.0
    %1962 = vmatpush1.msra.mxu0 %v1936
    %1963 = vmatprep.subr.mxu0 0.0
    %1964 = vmatpush1.msra.mxu0 %v1935
    %1965 = vmatprep.subr.mxu0 0.0
    %1966 = vmatpush1.msra.mxu0 %v1934
    %1967 = vmatprep.subr.mxu0 0.0
    %1968 = vmatpush1.msra.mxu0 %v1933
    %1969 = vmatprep.subr.mxu0 0.0
    %1970 = vmatpush1.msra.mxu0 %v1932
    %1971 = vmatprep.subr.mxu0 0.0
    %1972 = vmatpush1.msra.mxu0 %v1931
    %1973 = vmatprep.subr.mxu0 0.0
    %1974 = vmatpush1.msra.mxu0 %v1930
    %1975 = vmatprep.subr.mxu0 0.0
    %1976 = vmatpush1.msra.mxu0 %v1929
    %1977 = vmatprep.subr.mxu0 0.0
    %1978 = vmatpush2.msra.mxu0 0.0
    %1979 = vmatprep.subr.mxu0 0.0
    %1980 = vmatpush2.msra.mxu0 0.0
    %1981 = vmatprep.subr.mxu0 0.0
    %1982 = vmatpush2.msra.mxu0 0.0
    %1983 = vmatprep.subr.mxu0 0.0
    %1984 = vmatpush2.msra.mxu0 0.0
    %1985 = vmatprep.subr.mxu0 0.0
    %1986 = vmatpush2.msra.mxu0 0.0
    %1987 = vmatprep.subr.mxu0 0.0
    %1988 = vmatpush2.msra.mxu0 0.0
    %1989 = vmatprep.subr.mxu0 0.0
    %1990 = vmatpush2.msra.mxu0 0.0
    %1991 = vmatprep.subr.mxu0 0.0
    %1992 = vmatpush2.msra.mxu0 0.0
    %1993 = vmatprep.subr.mxu0 0.0
    %1994 = vmatpush2.msra.mxu0 0.0
    %1995 = vmatprep.subr.mxu0 0.0
    %1996 = vmatpush2.msra.mxu0 0.0
    %1997 = vmatprep.subr.mxu0 0.0
    %1998 = vmatpush2.msra.mxu0 0.0
    %1999 = vmatprep.subr.mxu0 0.0
    %2000 = vmatpush2.msra.mxu0 0.0
    %2001 = vmatprep.subr.mxu0 0.0
    %2002 = vmatpush2.msra.mxu0 0.0
    %2003 = vmatprep.subr.mxu0 0.0
    %2004 = vmatpush2.msra.mxu0 0.0
    %2005 = vmatprep.subr.mxu0 0.0
    %2006 = vmatpush2.msra.mxu0 0.0
    %2007 = vmatprep.subr.mxu0 0.0
    %2008 = vmatpush2.msra.mxu0 0.0
    %2009 = vmatprep.mubr.f32.mxu0 0.0
    %2010 = vmatmul.mubr.f32.gmra.mxu0 %v1927
    %v2011 = vpop.f32.mrf.mxu0
    %v2012 = vadd.f32 0.0, %v2011
    %v2013 = vpop.f32.mrf.mxu0
    %2014 = vdwg.mxu0
    %v2015 = vadd.f32 %v1928, %v2012
    %2016 = vst [vmem:[%s924] sm:$0xff] %v2015
    %v2017 = vtanh.pop %v2015
    %2018 = vst [vmem:[%s1296] sm:$0xff] %v2017
    %v2019 = vld [vmem:[#allocation2] sm:$0xff]
    %v2020 = vld [vmem:[#allocation2 + $0x8] sm:$0xff]
    %v2021 = vld [vmem:[#allocation2 + $0x10] sm:$0xff]
    %v2022 = vld [vmem:[#allocation2 + $0x18] sm:$0xff]
    %v2023 = vld [vmem:[#allocation2 + $0x20] sm:$0xff]
    %v2024 = vld [vmem:[#allocation2 + $0x28] sm:$0xff]
    %v2025 = vld [vmem:[#allocation2 + $0x30] sm:$0xff]
    %v2026 = vld [vmem:[#allocation2 + $0x38] sm:$0xff]
    %v2027 = vld [vmem:[#allocation14] sm:$0xff]
    %v2028 = vld [vmem:[#allocation14 + $0x8] sm:$0xff]
    %v2029 = vld [vmem:[#allocation14 + $0x10] sm:$0xff]
    %v2030 = vld [vmem:[#allocation14 + $0x18] sm:$0xff]
    %v2031 = vld [vmem:[#allocation14 + $0x20] sm:$0xff]
    %v2032 = vld [vmem:[#allocation14 + $0x28] sm:$0xff]
    %v2033 = vld [vmem:[#allocation14 + $0x30] sm:$0xff]
    %v2034 = vld [vmem:[#allocation14 + $0x38] sm:$0xff]
    %v2035 = vld [vmem:[#allocation14 + $0x40] sm:$0xff]
    %v2036 = vld [vmem:[#allocation14 + $0x48] sm:$0xff]
    %v2037 = vld [vmem:[#allocation14 + $0x50] sm:$0xff]
    %v2038 = vld [vmem:[#allocation14 + $0x58] sm:$0xff]
    %v2039 = vld [vmem:[#allocation14 + $0x60] sm:$0xff]
    %v2040 = vld [vmem:[#allocation14 + $0x68] sm:$0xff]
    %v2041 = vld [vmem:[#allocation14 + $0x70] sm:$0xff]
    %v2042 = vld [vmem:[#allocation14 + $0x78] sm:$0xff]
    %v2043 = vld [vmem:[%s10] sm:$0x1]
    %v2045 = vlaneseq
    %v2046 = vshrl.u32 %v2045, 7
    %v2047 = vsub.s32 0, %v2046
    %v2048 = vrot.slane %v2043, %v2047
    %2050 = vmatprep.subr.mxu0 0.0
    %2051 = vmatpush1.msra.mxu0 %v2042
    %2052 = vmatprep.subr.mxu0 0.0
    %2053 = vmatpush1.msra.mxu0 %v2041
    %2054 = vmatprep.subr.mxu0 0.0
    %2055 = vmatpush1.msra.mxu0 %v2040
    %2056 = vmatprep.subr.mxu0 0.0
    %2057 = vmatpush1.msra.mxu0 %v2039
    %2058 = vmatprep.subr.mxu0 0.0
    %2059 = vmatpush1.msra.mxu0 %v2038
    %2060 = vmatprep.subr.mxu0 0.0
    %2061 = vmatpush1.msra.mxu0 %v2037
    %2062 = vmatprep.subr.mxu0 0.0
    %2063 = vmatpush1.msra.mxu0 %v2036
    %2064 = vmatprep.subr.mxu0 0.0
    %2065 = vmatpush1.msra.mxu0 %v2035
    %2066 = vmatprep.subr.mxu0 0.0
    %2067 = vmatpush1.msra.mxu0 %v2034
    %2068 = vmatprep.subr.mxu0 0.0
    %2069 = vmatpush1.msra.mxu0 %v2033
    %2070 = vmatprep.subr.mxu0 0.0
    %2071 = vmatpush1.msra.mxu0 %v2032
    %2072 = vmatprep.subr.mxu0 0.0
    %2073 = vmatpush1.msra.mxu0 %v2031
    %2074 = vmatprep.subr.mxu0 0.0
    %2075 = vmatpush1.msra.mxu0 %v2030
    %2076 = vmatprep.subr.mxu0 0.0
    %2077 = vmatpush1.msra.mxu0 %v2029
    %2078 = vmatprep.subr.mxu0 0.0
    %2079 = vmatpush1.msra.mxu0 %v2028
    %2080 = vmatprep.subr.mxu0 0.0
    %2081 = vmatpush1.msra.mxu0 %v2027
    %2082 = vmatprep.subr.mxu0 0.0
    %2083 = vmatpush2.msra.mxu0 0.0
    %2084 = vmatprep.subr.mxu0 0.0
    %2085 = vmatpush2.msra.mxu0 0.0
    %2086 = vmatprep.subr.mxu0 0.0
    %2087 = vmatpush2.msra.mxu0 0.0
    %2088 = vmatprep.subr.mxu0 0.0
    %2089 = vmatpush2.msra.mxu0 0.0
    %2090 = vmatprep.subr.mxu0 0.0
    %2091 = vmatpush2.msra.mxu0 0.0
    %2092 = vmatprep.subr.mxu0 0.0
    %2093 = vmatpush2.msra.mxu0 0.0
    %2094 = vmatprep.subr.mxu0 0.0
    %2095 = vmatpush2.msra.mxu0 0.0
    %2096 = vmatprep.subr.mxu0 0.0
    %2097 = vmatpush2.msra.mxu0 0.0
    %2098 = vmatprep.subr.mxu0 0.0
    %2099 = vmatpush2.msra.mxu0 0.0
    %2100 = vmatprep.subr.mxu0 0.0
    %2101 = vmatpush2.msra.mxu0 0.0
    %2102 = vmatprep.subr.mxu0 0.0
    %2103 = vmatpush2.msra.mxu0 0.0
    %2104 = vmatprep.subr.mxu0 0.0
    %2105 = vmatpush2.msra.mxu0 0.0
    %2106 = vmatprep.subr.mxu0 0.0
    %2107 = vmatpush2.msra.mxu0 0.0
    %2108 = vmatprep.subr.mxu0 0.0
    %2109 = vmatpush2.msra.mxu0 0.0
    %2110 = vmatprep.subr.mxu0 0.0
    %2111 = vmatpush2.msra.mxu0 0.0
    %2112 = vmatprep.subr.mxu0 0.0
    %2113 = vmatpush2.msra.mxu0 0.0
    %2114 = vmatprep.mubr.f32.mxu0 0.0
    %2115 = vmatmul.mubr.f32.gmra.mxu0 %v2019
    %v2116 = vpop.f32.mrf.mxu0
    %v2117 = vadd.f32 %v2048, %v2116
    %v2118 = vpop.f32.mrf.mxu0
    %2119 = vmatprep.mubr.f32.mxu0 0.0
    %2120 = vmatmul.mubr.f32.gmra.mxu0 %v2020
    %v2121 = vpop.f32.mrf.mxu0
    %v2122 = vadd.f32 %v2048, %v2121
    %v2123 = vpop.f32.mrf.mxu0
    %2124 = vmatprep.mubr.f32.mxu0 0.0
    %2125 = vmatmul.mubr.f32.gmra.mxu0 %v2021
    %v2126 = vpop.f32.mrf.mxu0
    %v2127 = vadd.f32 %v2048, %v2126
    %v2128 = vpop.f32.mrf.mxu0
    %2129 = vmatprep.mubr.f32.mxu0 0.0
    %2130 = vmatmul.mubr.f32.gmra.mxu0 %v2022
    %v2131 = vpop.f32.mrf.mxu0
    %v2132 = vadd.f32 %v2048, %v2131
    %v2133 = vpop.f32.mrf.mxu0
    %2134 = vmatprep.mubr.f32.mxu0 0.0
    %2135 = vmatmul.mubr.f32.gmra.mxu0 %v2023
    %v2136 = vpop.f32.mrf.mxu0
    %v2137 = vadd.f32 %v2048, %v2136
    %v2138 = vpop.f32.mrf.mxu0
    %2139 = vmatprep.mubr.f32.mxu0 0.0
    %2140 = vmatmul.mubr.f32.gmra.mxu0 %v2024
    %v2141 = vpop.f32.mrf.mxu0
    %v2142 = vadd.f32 %v2048, %v2141
    %v2143 = vpop.f32.mrf.mxu0
    %2144 = vmatprep.mubr.f32.mxu0 0.0
    %2145 = vmatmul.mubr.f32.gmra.mxu0 %v2025
    %v2146 = vpop.f32.mrf.mxu0
    %v2147 = vadd.f32 %v2048, %v2146
    %v2148 = vpop.f32.mrf.mxu0
    %2149 = vmatprep.mubr.f32.mxu0 0.0
    %2150 = vmatmul.mubr.f32.gmra.mxu0 %v2026
    %v2151 = vpop.f32.mrf.mxu0
    %v2152 = vadd.f32 %v2048, %v2151
    %v2153 = vpop.f32.mrf.mxu0
    %2154 = vdwg.mxu0
    %v2155 = vtanh.pop %v2117
    %v2156 = vtanh.pop %v2122
    %v2157 = vtanh.pop %v2127
    %v2158 = vtanh.pop %v2132
    %v2159 = vtanh.pop %v2137
    %v2160 = vtanh.pop %v2142
    %v2161 = vtanh.pop %v2147
    %v2162 = vtanh.pop %v2152
    %2163 = vst [vmem:[#allocation15] sm:$0xff] %v2155
    %2164 = vst [vmem:[#allocation15 + $0x8] sm:$0xff] %v2156
    %2165 = vst [vmem:[#allocation15 + $0x10] sm:$0xff] %v2157
    %2166 = vst [vmem:[#allocation15 + $0x18] sm:$0xff] %v2158
    %2167 = vst [vmem:[#allocation15 + $0x20] sm:$0xff] %v2159
    %2168 = vst [vmem:[#allocation15 + $0x28] sm:$0xff] %v2160
    %2169 = vst [vmem:[#allocation15 + $0x30] sm:$0xff] %v2161
    %2170 = vst [vmem:[#allocation15 + $0x38] sm:$0xff] %v2162
    // Predicated region
    $region78: #{tpu_custom_call.1} parent=1 // pred_check
      _
    $region79: #{tpu_custom_call.1} parent=1 // pred_check_branch
      %2172 = sbr.rel (0) target = $region81
    $region80: #{tpu_custom_call.1} parent=1 // pred_region
      %s2174 = ssub.s32 1024, 1024
      %2175 = vsyncadd [#allocation5], %s2174
      %s2176 = sshll.u32 [#allocation15], 4
      %s2177 = int_to_ptr.vmem [resolvable:$true] %s2176
      %2182 = dma.vmem_to_hbm [thread:$0]  %s2177, 1024, %s11, [#allocation5], 128, 128, 8
    $region81: #{tpu_custom_call.1} parent=1 // pred_fallthru
      _
    // Predicated region
    $region82: #{tpu_custom_call.1} parent=1 // pred_check
      _
    $region83: #{tpu_custom_call.1} parent=1 // pred_check_branch
      %2184 = sbr.rel (0) target = $region85
    $region84: #{tpu_custom_call.1} parent=1 // pred_region
      %s2186 = ssub.s32 256, 256
      %2187 = vsyncadd [#allocation17], %s2186
      %s2188 = sshll.u32 [#allocation16], 4
      %s2189 = int_to_ptr.vmem [resolvable:$true] %s2188
      %2194 = dma.vmem_to_hbm [thread:$0]  %s2189, 256, %s12, [#allocation17], 128, 128, 8
    $region85: #{tpu_custom_call.1} parent=1 // pred_fallthru
      _
    // Predicated region
    $region86: #{tpu_custom_call.1} parent=1 // pred_check
      _
    $region87: #{tpu_custom_call.1} parent=1 // pred_check_branch
      %2196 = sbr.rel (0) target = $region89
    $region88: #{tpu_custom_call.1} parent=1 // pred_region
      %2197 = dma.done [#allocation5], 1024
    $region89: #{tpu_custom_call.1} parent=1 // pred_fallthru
      _
    // Predicated region
    $region90: #{tpu_custom_call.1} parent=1 // pred_check
      _
    $region91: #{tpu_custom_call.1} parent=1 // pred_check_branch
      %2199 = sbr.rel (0) target = $region93
    $region92: #{tpu_custom_call.1} parent=1 // pred_region
      %2200 = dma.done [#allocation17], 256
    $region93: #{tpu_custom_call.1} parent=1 // pred_fallthru
      _
    %2201 = vsyncpa [#allocation4], 1
    %2202 = vsyncpa [#allocation7], 1
    %2203 = vsyncpa [#allocation10], 1
    %2204 = vsyncpa [#allocation13], 1
    %2205 = vsyncpa [#allocation5], 1
    %2206 = vsyncpa [#allocation17], 1

</llo_original>
